<compile_context>
chip_gen: v7x
topology: tpu7x:2x2x1
jax: 0.10.0
libtpu: 0.0.40
codegen_flags: <defaults>
</compile_context>

<pallas_src>
import functools

import jax
import jax.numpy as jnp
import numpy as np
from jax import lax
from jax.experimental import pallas as pl
from jax.experimental.pallas import tpu as pltpu


def _round_up(x, m):
    return (x + m - 1) // m * m


def _cdiv(a, b):
    return -(-a // b)


# ----------------------------------------------------------------------------
# Trace-time hardware queries (best-effort, always fall back safely).
# ----------------------------------------------------------------------------
def _vmem_capacity_bytes():
    try:
        cap = int(pltpu.get_tpu_info().vmem_capacity_bytes)
        if cap > 0:
            return cap
    except Exception:
        pass
    return 64 * 1024 * 1024  # conservative: v7x per-TensorCore VMEM


def _num_tensorcores():
    try:
        info = pltpu.get_tpu_info()
        for attr in ("num_cores", "core_count", "num_tensorcores",
                     "tensorcore_count"):
            n = getattr(info, attr, None)
            if n is not None and int(n) > 0:
                return int(n)
    except Exception:
        pass
    try:
        kind = (getattr(jax.devices()[0], "device_kind", "") or "").lower()
        if "v7" in kind or "7x" in kind:
            return 2
    except Exception:
        pass
    return 1


# ----------------------------------------------------------------------------
# Weight packing: PyTorch layout -> padded / transposed / gate-aligned layout.
# Call ONCE and cache the result across forward calls (pure weight plumbing;
# it must not live inside the per-step jit).
# ----------------------------------------------------------------------------
def prepare_lstm_weights(w_ih, w_hh, b_ih, b_hh, *, compute_dtype=jnp.bfloat16):
    """w_ih: (4H, I), w_hh: (4H, H), biases (4H,), gate order [i, f, g, o].
    Each gate block is placed at column offset k*h_pad so in-kernel gate
    slices are 128-lane aligned."""
    H = int(w_hh.shape[1])
    I = int(w_ih.shape[1])
    h_pad = _round_up(H, 128)
    i_pad = _round_up(I, 128)
    wih_t = jnp.zeros((i_pad, 4 * h_pad), compute_dtype)
    whh_t = jnp.zeros((h_pad, 4 * h_pad), compute_dtype)
    bias = jnp.zeros((1, 4 * h_pad), jnp.float32)
    b_sum = (b_ih + b_hh).astype(jnp.float32)
    for k in range(4):
        wih_t = wih_t.at[:I, k * h_pad:k * h_pad + H].set(
            w_ih[k * H:(k + 1) * H, :].T.astype(compute_dtype))
        whh_t = whh_t.at[:H, k * h_pad:k * h_pad + H].set(
            w_hh[k * H:(k + 1) * H, :].T.astype(compute_dtype))
        bias = bias.at[0, k * h_pad:k * h_pad + H].set(b_sum[k * H:(k + 1) * H])
    packed = {"wih_t": wih_t, "whh_t": whh_t, "bias": bias}
    meta = {"input_size": I, "hidden_size": H, "i_pad": i_pad, "h_pad": h_pad}
    return packed, meta


# ----------------------------------------------------------------------------
# Kernel 1: time-parallel input projection  xg = x @ Wih^T
# (bias is added later, in the recurrence kernel, in f32).
# ----------------------------------------------------------------------------
def _xproj_kernel(x_ref, wih_t_ref, xg_ref):
    t, b, i = x_ref.shape
    x2 = x_ref[...].reshape(t * b, i).astype(wih_t_ref.dtype)
    g = jnp.dot(x2, wih_t_ref[...], preferred_element_type=jnp.float32)
    xg_ref[...] = g.reshape(t, b, -1).astype(xg_ref.dtype)


# ----------------------------------------------------------------------------
# Kernel 2: sequential LSTM recurrence, `chunk` timesteps per grid step.
# Grid = (batch_shards, n_chunks); h_ref / c_ref (block index constant along
# the chunk axis => VMEM-resident) hold the recurrent state.  Whh is DMA'd
# once per (core, batch shard) into a single VMEM scratch copy.
# ----------------------------------------------------------------------------
def _lstm_chunk_kernel(xg_ref, bias_ref, whh_hbm_ref, out_ref, h_ref, c_ref,
                       whh_vmem, dma_sem, *, h_pad, chunk, seq_len,
                       first_masked_chunk, need_mask, compute_dtype, unroll):
    ci = pl.program_id(1)          # sequential chunk axis
    H = h_pad

    @pl.when(ci == 0)
    def _():
        # Single VMEM copy of the constant recurrent weight (no
        # double-buffering of a block that never changes).
        cp = pltpu.make_async_copy(whh_hbm_ref, whh_vmem, dma_sem)
        cp.start()
        cp.wait()
        h_ref[...] = jnp.zeros_like(h_ref)
        c_ref[...] = jnp.zeros_like(c_ref)

    bias = bias_ref[...]           # (1, 4*H) f32, broadcasts over batch

    # TODO(synk): for very small batch, drive the MXU with
    # pltpu.matmul_push_rhs / matmul_acc_lhs / matmul_pop so Whh stays resident
    # in the MXU staging registers across the unrolled loop (verify on the
    # bundle dump; v7x has MRB pop semantics).
    def make_step(masked):
        def step(j, carry):
            h, c = carry
            gates = (xg_ref[j].astype(jnp.float32)
                     + jnp.dot(h.astype(compute_dtype), whh_vmem[...],
                               preferred_element_type=jnp.float32)
                     + bias)
            # PyTorch gate order [i, f, g, o]; slices are 128-lane aligned.
            i_g = jax.nn.sigmoid(gates[:, 0 * H:1 * H])
            f_g = jax.nn.sigmoid(gates[:, 1 * H:2 * H])
            g_g = jnp.tanh(gates[:, 2 * H:3 * H])
            o_g = jax.nn.sigmoid(gates[:, 3 * H:4 * H])
            c_new = f_g * c + i_g * g_g
            h_new = o_g * jnp.tanh(c_new)
            if masked:  # only emitted for chunks that contain padded timesteps
                valid = (ci * chunk + j) < seq_len
                h_new = jnp.where(valid, h_new, h)
                c_new = jnp.where(valid, c_new, c)
            out_ref[j] = h_new.astype(out_ref.dtype)
            return h_new, c_new
        return step

    def run(masked):
        h_f, c_f = lax.fori_loop(0, chunk, make_step(masked),
                                 (h_ref[...], c_ref[...]), unroll=unroll)
        h_ref[...] = h_f
        c_ref[...] = c_f

    if need_mask:
        @pl.when(ci >= first_masked_chunk)
        def _():
            run(True)

        @pl.when(ci < first_masked_chunk)
        def _():
            run(False)
    else:
        run(False)


# ----------------------------------------------------------------------------
# LSTM forward (Pallas).
# ----------------------------------------------------------------------------
def lstm_forward_pallas(v, packed, meta, *, chunk=None, batch_shards=None):
    wih_t, whh_t, bias = packed["wih_t"], packed["whh_t"], packed["bias"]
    compute_dtype = wih_t.dtype          # MXU dtype follows the packed weights
    seq_len, batch, input_size = v.shape
    hidden_size = meta["hidden_size"]
    h_pad, i_pad = meta["h_pad"], meta["i_pad"]
    if input_size != meta["input_size"]:
        raise ValueError("packed weights do not match input_size")
    gh = 4 * h_pad

    b_pad = _round_up(batch, 8)          # sublane alignment
    cap = _vmem_capacity_bytes()
    budget = (cap * 3) // 4              # ~48 MiB on v7x, ~96 MiB on v5e/v6e
    headroom = 4 << 20

    # ---- batch sharding across TensorCores (v7x megacore) ------------------
    if batch_shards is None:
        batch_shards = 2 if (_num_tensorcores() >= 2 and b_pad >= 16
                             and b_pad % 16 == 0) else 1
    batch_shards = max(1, int(batch_shards))
    if b_pad % (8 * batch_shards) != 0:
        batch_shards = 1
    b_blk = b_pad // batch_shards

    cd_bytes = jnp.dtype(compute_dtype).itemsize
    xg_bytes = cd_bytes                  # xg stored in compute dtype
    in_bytes = jnp.dtype(v.dtype).itemsize

    # ---- recurrence chunk: amortize grid overhead, bounded by VMEM ---------
    fixed = (h_pad * gh * cd_bytes       # Whh (single VMEM copy)
             + 4 * b_blk * h_pad * 4     # resident h_n / c_n state (x2 bufs)
             + 2 * 8 * gh * 4)           # bias (tiny)
    per_t = 2 * b_blk * gh * xg_bytes + 2 * b_blk * h_pad * 4
    tc_cap = 64 if chunk is None else max(1, int(chunk))
    tc = max(1, min(tc_cap, (budget - fixed - headroom) // per_t))
    tc = min(tc, max(1, seq_len))
    tc = _cdiv(seq_len, _cdiv(seq_len, tc))   # minimize sequence padding

    # ---- x-projection tiling: MXU LHS rows = xt*b_pad >= 256 if possible ---
    m = max(1, _cdiv(256, b_pad * tc))
    m = min(m, _cdiv(seq_len, tc))            # don't over-pad tiny sequences
    xt = tn = None
    xproj_need = 0
    for cand_tn in (gh, 2 * h_pad, h_pad):    # all divide gh, 128-multiples
        mm = m
        while mm >= 1:
            need = (2 * tc * mm * b_pad * i_pad * in_bytes
                    + 2 * i_pad * cand_tn * cd_bytes
                    + 2 * tc * mm * b_pad * cand_tn * xg_bytes)
            if need + headroom <= budget:
                xt, tn, xproj_need = tc * mm, cand_tn, need
                break
            mm -= 1
        if xt is not None:
            break
    if xt is None:                            # extreme fallback
        xt, tn = tc, h_pad
        xproj_need = (2 * xt * b_pad * i_pad * in_bytes
                      + 2 * i_pad * tn * cd_bytes
                      + 2 * xt * b_pad * tn * xg_bytes)

    s_pad = _round_up(seq_len, xt)
    n_chunks = s_pad // tc
    n_xt = s_pad // xt
    n_gh = gh // tn
    need_mask = (s_pad != seq_len)
    first_masked_chunk = seq_len // tc

    # ---- pad the input (skipped when the caller already aligned it) --------
    if (s_pad, b_pad, i_pad) != (seq_len, batch, input_size):
        v_p = jnp.pad(v, ((0, s_pad - seq_len), (0, b_pad - batch),
                          (0, i_pad - input_size)))
    else:
        v_p = v

    # ---- 1) time-parallel input projection ---------------------------------
    vmem_x = int(min((cap * 7) // 8, max(32 << 20, xproj_need + (8 << 20))))
    xg = pl.pallas_call(
        _xproj_kernel,
        out_shape=jax.ShapeDtypeStruct((s_pad, b_pad, gh), compute_dtype),
        grid_spec=pltpu.PrefetchScalarGridSpec(
            num_scalar_prefetch=0,
            grid=(n_gh, n_xt),
            in_specs=[
                pl.BlockSpec((xt, b_pad, i_pad), lambda n, t: (t, 0, 0)),
                pl.BlockSpec((i_pad, tn), lambda n, t: (0, n)),
            ],
            out_specs=pl.BlockSpec((xt, b_pad, tn), lambda n, t: (t, 0, n)),
        ),
        compiler_params=pltpu.CompilerParams(
            dimension_semantics=("parallel", "parallel"),
            vmem_limit_bytes=vmem_x),
    )(v_p, wih_t)

    # ---- 2) sequential recurrence (chunked) --------------------------------
    rec_need = fixed + per_t * tc
    vmem_r = int(min((cap * 7) // 8, max(32 << 20, rec_need + (8 << 20))))

    kernel = functools.partial(
        _lstm_chunk_kernel, h_pad=h_pad, chunk=tc, seq_len=seq_len,
        first_masked_chunk=first_masked_chunk, need_mask=need_mask,
        compute_dtype=compute_dtype, unroll=min(tc, 8))

    out_p, h_n_p, c_n_p = pl.pallas_call(
        kernel,
        out_shape=(
            jax.ShapeDtypeStruct((s_pad, b_pad, h_pad), jnp.float32),
            jax.ShapeDtypeStruct((b_pad, h_pad), jnp.float32),
            jax.ShapeDtypeStruct((b_pad, h_pad), jnp.float32),
        ),
        grid_spec=pltpu.PrefetchScalarGridSpec(
            num_scalar_prefetch=0,
            grid=(batch_shards, n_chunks),
            in_specs=[
                pl.BlockSpec((tc, b_blk, gh), lambda bb, c: (c, bb, 0)),
                pl.BlockSpec((1, gh), lambda bb, c: (0, 0)),
                pl.BlockSpec(memory_space=pl.ANY),   # Whh stays in HBM
            ],
            out_specs=[
                pl.BlockSpec((tc, b_blk, h_pad), lambda bb, c: (c, bb, 0)),
                pl.BlockSpec((b_blk, h_pad), lambda bb, c: (bb, 0)),
                pl.BlockSpec((b_blk, h_pad), lambda bb, c: (bb, 0)),
            ],
            scratch_shapes=[
                pltpu.VMEM((h_pad, gh), compute_dtype),  # single Whh copy
                pltpu.SemaphoreType.DMA,
            ],
        ),
        compiler_params=pltpu.CompilerParams(
            dimension_semantics=("parallel", "arbitrary"),  # true recurrence
            vmem_limit_bytes=vmem_r),
    )(xg, bias, whh_t)
    # TODO(synk): if profiling shows the recurrence is latency-bound with MXU
    # slack (tiny batch), fuse the x-projection into this kernel and drop the
    # xg HBM roundtrip entirely (measure on v7x first: it loses kernel 1's
    # megacore split).

    out = out_p[:seq_len, :batch, :hidden_size]
    h_n = h_n_p[:batch, :hidden_size]
    c_n = c_n_p[:batch, :hidden_size]
    return out, h_n, c_n


# ----------------------------------------------------------------------------
# MyRNNBase forward (mode='LSTM', bidirectional=False, dropout_p=0.0,
# enable_layer_norm=False).  `packed`/`meta` come from prepare_lstm_weights
# (call it once and cache it; bind `meta` statically, e.g. via partial).
# ----------------------------------------------------------------------------
def my_rnn_base_forward(v, mask, packed, meta, *, chunk=None, batch_shards=None):
    # NOTE: `mask` is accepted but unused, exactly as in the PyTorch forward.
    del mask
    out, h_n, c_n = lstm_forward_pallas(v, packed, meta, chunk=chunk,
                                        batch_shards=batch_shards)
    # dropout_p = 0.0 -> nn.Dropout is the identity.
    # TODO(synk): training-mode dropout (p>0), bidirectional, GRU mode and
    # enable_layer_norm=True are not implemented (not used in this config).
    o_unsort = out
    hidden = (h_n[None, :, :], c_n[None, :, :])   # (1, batch, hidden) each
    return o_unsort, hidden


# ----------------------------------------------------------------------------
# Deterministic parameter init matching reset_parameters():
#   weight_ih: xavier_uniform, weight_hh: orthogonal, biases: 0.
# ----------------------------------------------------------------------------
def init_params(key, input_size, hidden_size):
    k1, k2 = jax.random.split(key)
    H4 = 4 * hidden_size
    bound = float(np.sqrt(6.0 / (input_size + H4)))
    w_ih = jax.random.uniform(k1, (H4, input_size), jnp.float32, -bound, bound)
    a = jax.random.normal(k2, (H4, hidden_size), jnp.float32)
    q, r = jnp.linalg.qr(a)
    q = q * jnp.sign(jnp.diagonal(r))[None, :]
    w_hh = q
    b_ih = jnp.zeros((H4,), jnp.float32)
    b_hh = jnp.zeros((H4,), jnp.float32)
    return {"weight_ih_l0": w_ih, "weight_hh_l0": w_hh,
            "bias_ih_l0": b_ih, "bias_hh_l0": b_hh}


# Pure-JAX reference for correctness checking.
def lstm_reference(v, params):
    w_ih = params["weight_ih_l0"]
    w_hh = params["weight_hh_l0"]
    b = params["bias_ih_l0"] + params["bias_hh_l0"]
    H = w_hh.shape[1]
    batch = v.shape[1]

    def step(carry, x_t):
        h, c = carry
        gates = x_t @ w_ih.T + h @ w_hh.T + b
        i = jax.nn.sigmoid(gates[:, 0 * H:1 * H])
        f = jax.nn.sigmoid(gates[:, 1 * H:2 * H])
        g = jnp.tanh(gates[:, 2 * H:3 * H])
        o = jax.nn.sigmoid(gates[:, 3 * H:4 * H])
        c_new = f * c + i * g
        h_new = o * jnp.tanh(c_new)
        return (h_new, c_new), h_new

    init = (jnp.zeros((batch, H), jnp.float32),
            jnp.zeros((batch, H), jnp.float32))
    (h_n, c_n), outs = lax.scan(step, init, v)
    return outs, h_n, c_n


if __name__ == "__main__":
    seq_len, batch, input_size, hidden_size = 8, 4, 16, 32

    key = jax.random.PRNGKey(0)
    k_v, k_p = jax.random.split(key)
    v = jax.random.normal(k_v, (seq_len, batch, input_size), jnp.float32)
    mask = jnp.ones((batch, seq_len), jnp.float32)  # unused, as in PyTorch
    params = init_params(k_p, input_size, hidden_size)

    ref_out, ref_h, ref_c = lstm_reference(v, params)

    # ---- f32 MXU path: tight match against the f32 reference ---------------
    packed32, meta32 = prepare_lstm_weights(          # pack ONCE, reuse
        params["weight_ih_l0"], params["weight_hh_l0"],
        params["bias_ih_l0"], params["bias_hh_l0"],
        compute_dtype=jnp.float32)
    fwd_f32 = jax.jit(functools.partial(my_rnn_base_forward, meta=meta32))
    out, (h_n, c_n) = fwd_f32(v, mask, packed32)
    jax.block_until_ready((out, h_n, c_n))
    np.testing.assert_allclose(np.asarray(out), np.asarray(ref_out),
                               atol=1e-5, rtol=1e-5)
    np.testing.assert_allclose(np.asarray(h_n[0]), np.asarray(ref_h),
                               atol=1e-5, rtol=1e-5)
    np.testing.assert_allclose(np.asarray(c_n[0]), np.asarray(ref_c),
                               atol=1e-5, rtol=1e-5)
    assert out.shape == (seq_len, batch, hidden_size)
    assert h_n.shape == (1, batch, hidden_size)
    assert c_n.shape == (1, batch, hidden_size)

    # ---- bf16 MXU path (default packing, recommended on v5e/v6e/v7x) -------
    # Note: bf16 recurrence error compounds with seq_len; tolerance is sized
    # for this short demo sequence.
    packed16, meta16 = prepare_lstm_weights(
        params["weight_ih_l0"], params["weight_hh_l0"],
        params["bias_ih_l0"], params["bias_hh_l0"],
        compute_dtype=jnp.bfloat16)
    fwd_bf16 = jax.jit(functools.partial(my_rnn_base_forward, meta=meta16))
    out_b, (h_b, c_b) = fwd_bf16(v, mask, packed16)
    jax.block_until_ready((out_b, h_b, c_b))
    np.testing.assert_allclose(np.asarray(out_b), np.asarray(ref_out),
                               atol=7.5e-2, rtol=0)
    np.testing.assert_allclose(np.asarray(h_b[0]), np.asarray(ref_h),
                               atol=7.5e-2, rtol=0)
    np.testing.assert_allclose(np.asarray(c_b[0]), np.asarray(ref_c),
                               atol=7.5e-2, rtol=0)

    print("KERNEL_OK")
</pallas_src>

<mosaic_0001>
module attributes {stable_mosaic.version = 11 : i64} {
  func.func @_xproj_kernel(%arg0: i32, %arg1: i32, %arg2: memref<8x8x128xf32, #tpu.memory_space<vmem>>, %arg3: memref<128x512xf32, #tpu.memory_space<vmem>>, %arg4: memref<8x8x512xf32, #tpu.memory_space<vmem>>) attributes {dimension_semantics = [#tpu.dimension_semantics<parallel>, #tpu.dimension_semantics<parallel>], iteration_bounds = array<i64: 1, 1>, scalar_prefetch = 0 : i64, scratch_operands = 0 : i64, tpu.core_type = #tpu.core_type<tc>, window_params = [{transform_indices = @transform_0, window_bounds = array<i64: 8, 8, 128>}, {transform_indices = @transform_1, window_bounds = array<i64: 128, 512>}, {transform_indices = @transform_2, window_bounds = array<i64: 8, 8, 512>}]} {
    %c0 = arith.constant 0 : index
    %c0_0 = arith.constant 0 : index
    %c0_1 = arith.constant 0 : index
    %0 = vector.load %arg2[%c0, %c0_0, %c0_1] : memref<8x8x128xf32, #tpu.memory_space<vmem>>, vector<8x8x128xf32>
    %1 = vector.shape_cast %0 : vector<8x8x128xf32> to vector<64x128xf32>
    %c0_2 = arith.constant 0 : index
    %c0_3 = arith.constant 0 : index
    %2 = vector.load %arg3[%c0_2, %c0_3] : memref<128x512xf32, #tpu.memory_space<vmem>>, vector<128x512xf32>
    %cst = arith.constant dense<0.000000e+00> : vector<64x512xf32>
    %3 = tpu.matmul %1, %2, %cst {dimension_numbers = #tpu.dot_dimension_numbers<[1], [0], [0], [1], [0, 0, 1, 1], [], []>} : vector<64x128xf32>, vector<128x512xf32>, vector<64x512xf32> -> vector<64x512xf32>
    %4 = vector.shape_cast %3 : vector<64x512xf32> to vector<8x8x512xf32>
    %c0_4 = arith.constant 0 : index
    %c0_5 = arith.constant 0 : index
    %c0_6 = arith.constant 0 : index
    %5 = vector.load %arg4[%c0_4, %c0_5, %c0_6] : memref<8x8x512xf32, #tpu.memory_space<vmem>>, vector<8x8x512xf32>
    tpu.vector_store %arg4[%c0_4, %c0_5, %c0_6], %4 {strides = array<i32>} : memref<8x8x512xf32, #tpu.memory_space<vmem>>, vector<8x8x512xf32>,
    return
  }
  func.func @transform_0(%arg0: i32, %arg1: i32) -> (i32, i32, i32) {
    %c0_i32 = arith.constant 0 : i32
    %c0_i32_0 = arith.constant 0 : i32
    %c0_i32_1 = arith.constant 0 : i32
    return %arg1, %c0_i32, %c0_i32_0 : i32, i32, i32
  }
  func.func @transform_1(%arg0: i32, %arg1: i32) -> (i32, i32) {
    %c0_i32 = arith.constant 0 : i32
    %c0_i32_0 = arith.constant 0 : i32
    return %c0_i32, %arg0 : i32, i32
  }
  func.func @transform_2(%arg0: i32, %arg1: i32) -> (i32, i32, i32) {
    %c0_i32 = arith.constant 0 : i32
    %c0_i32_0 = arith.constant 0 : i32
    return %arg1, %c0_i32, %arg0 : i32, i32, i32
  }
}

module attributes {stable_mosaic.version = 11 : i64} {
  func.func @_lstm_chunk_kernel(%arg0: i32, %arg1: i32, %arg2: memref<8x8x512xf32, #tpu.memory_space<vmem>>, %arg3: memref<1x512xf32, #tpu.memory_space<vmem>>, %arg4: memref<128x512xf32, #tpu.memory_space<any>>, %arg5: memref<8x8x128xf32, #tpu.memory_space<vmem>>, %arg6: memref<8x128xf32, #tpu.memory_space<vmem>>, %arg7: memref<8x128xf32, #tpu.memory_space<vmem>>, %arg8: memref<128x512xf32, #tpu.memory_space<vmem>>, %arg9: memref<!tpu.dma_semaphore, #tpu.memory_space<semaphore_mem>>) attributes {dimension_semantics = [#tpu.dimension_semantics<parallel>, #tpu.dimension_semantics<arbitrary>], iteration_bounds = array<i64: 1, 1>, scalar_prefetch = 0 : i64, scratch_operands = 2 : i64, tpu.core_type = #tpu.core_type<tc>, window_params = [{transform_indices = @transform_0, window_bounds = array<i64: 8, 8, 512>}, {pipeline_mode = #tpu.pipeline_mode<synchronous>, transform_indices = @transform_1, window_bounds = array<i64: 1, 512>}, {}, {transform_indices = @transform_3, window_bounds = array<i64: 8, 8, 128>}, {transform_indices = @transform_4, window_bounds = array<i64: 8, 128>}, {transform_indices = @transform_5, window_bounds = array<i64: 8, 128>}]} {
    %c0_i32 = arith.constant 0 : i32
    %0 = arith.cmpi eq, %arg1, %c0_i32 : i32
    %1 = arith.extui %0 : i1 to i32
    %c0_i32_0 = arith.constant 0 : i32
    %2 = arith.cmpi ne, %1, %c0_i32_0 : i32
    scf.if %2 {
      tpu.enqueue_dma source(%arg4 : memref<128x512xf32, #tpu.memory_space<any>>) target(%arg8 : memref<128x512xf32, #tpu.memory_space<vmem>>) target_semaphore(%arg9 : memref<!tpu.dma_semaphore, #tpu.memory_space<semaphore_mem>>)
      tpu.wait_dma2 semaphore(%arg9 : memref<!tpu.dma_semaphore, #tpu.memory_space<semaphore_mem>>) src(%arg4 : memref<128x512xf32, #tpu.memory_space<any>>) dst(%arg8 : memref<128x512xf32, #tpu.memory_space<vmem>>)
      %cst_90 = arith.constant 0.000000e+00 : f32
      %304 = vector.broadcast %cst_90 : f32 to vector<8x128xf32>
      %c0_91 = arith.constant 0 : index
      %c0_92 = arith.constant 0 : index
      %305 = vector.load %arg6[%c0_91, %c0_92] : memref<8x128xf32, #tpu.memory_space<vmem>>, vector<8x128xf32>
      tpu.vector_store %arg6[%c0_91, %c0_92], %304 {strides = array<i32>} : memref<8x128xf32, #tpu.memory_space<vmem>>, vector<8x128xf32>,
      %cst_93 = arith.constant 0.000000e+00 : f32
      %306 = vector.broadcast %cst_93 : f32 to vector<8x128xf32>
      %c0_94 = arith.constant 0 : index
      %c0_95 = arith.constant 0 : index
      %307 = vector.load %arg7[%c0_94, %c0_95] : memref<8x128xf32, #tpu.memory_space<vmem>>, vector<8x128xf32>
      tpu.vector_store %arg7[%c0_94, %c0_95], %306 {strides = array<i32>} : memref<8x128xf32, #tpu.memory_space<vmem>>, vector<8x128xf32>,
    } else {
    }
    %c0 = arith.constant 0 : index
    %c0_1 = arith.constant 0 : index
    %3 = vector.load %arg3[%c0, %c0_1] : memref<1x512xf32, #tpu.memory_space<vmem>>, vector<1x512xf32>
    %c0_2 = arith.constant 0 : index
    %c0_3 = arith.constant 0 : index
    %4 = vector.load %arg6[%c0_2, %c0_3] : memref<8x128xf32, #tpu.memory_space<vmem>>, vector<8x128xf32>
    %c0_4 = arith.constant 0 : index
    %c0_5 = arith.constant 0 : index
    %5 = vector.load %arg7[%c0_4, %c0_5] : memref<8x128xf32, #tpu.memory_space<vmem>>, vector<8x128xf32>
    %c0_i32_6 = arith.constant 0 : i32
    %6 = arith.index_cast %c0_i32_6 : i32 to index
    %c0_7 = arith.constant 0 : index
    %c0_8 = arith.constant 0 : index
    %7 = vector.load %arg2[%6, %c0_7, %c0_8] : memref<8x8x512xf32, #tpu.memory_space<vmem>>, vector<1x8x512xf32>
    %8 = vector.shape_cast %7 : vector<1x8x512xf32> to vector<8x512xf32>
    %c0_9 = arith.constant 0 : index
    %c0_10 = arith.constant 0 : index
    %9 = vector.load %arg8[%c0_9, %c0_10] : memref<128x512xf32, #tpu.memory_space<vmem>>, vector<128x512xf32>
    %cst = arith.constant dense<0.000000e+00> : vector<8x512xf32>
    %10 = tpu.matmul %4, %9, %cst {dimension_numbers = #tpu.dot_dimension_numbers<[1], [0], [0], [1], [0, 0, 1, 1], [], []>} : vector<8x128xf32>, vector<128x512xf32>, vector<8x512xf32> -> vector<8x512xf32>
    %11 = arith.addf %8, %10 : vector<8x512xf32>
    %12 = vector.broadcast %3 : vector<1x512xf32> to vector<8x512xf32>
    %13 = arith.addf %11, %12 : vector<8x512xf32>
    %14 = vector.extract_strided_slice %13 {offsets = [0, 0], sizes = [8, 128], strides = [1, 1]} : vector<8x512xf32> to vector<8x128xf32>
    %15 = arith.negf %14 : vector<8x128xf32>
    %16 = math.exp %15 : vector<8x128xf32>
    %cst_11 = arith.constant 1.000000e+00 : f32
    %17 = vector.broadcast %cst_11 : f32 to vector<8x128xf32>
    %18 = arith.addf %17, %16 : vector<8x128xf32>
    %19 = arith.divf %17, %18 : vector<8x128xf32>
    %20 = vector.extract_strided_slice %13 {offsets = [0, 128], sizes = [8, 128], strides = [1, 1]} : vector<8x512xf32> to vector<8x128xf32>
    %21 = arith.negf %20 : vector<8x128xf32>
    %22 = math.exp %21 : vector<8x128xf32>
    %cst_12 = arith.constant 1.000000e+00 : f32
    %23 = vector.broadcast %cst_12 : f32 to vector<8x128xf32>
    %24 = arith.addf %23, %22 : vector<8x128xf32>
    %25 = arith.divf %23, %24 : vector<8x128xf32>
    %26 = vector.extract_strided_slice %13 {offsets = [0, 256], sizes = [8, 128], strides = [1, 1]} : vector<8x512xf32> to vector<8x128xf32>
    %27 = math.tanh %26 : vector<8x128xf32>
    %28 = vector.extract_strided_slice %13 {offsets = [0, 384], sizes = [8, 128], strides = [1, 1]} : vector<8x512xf32> to vector<8x128xf32>
    %29 = arith.negf %28 : vector<8x128xf32>
    %30 = math.exp %29 : vector<8x128xf32>
    %cst_13 = arith.constant 1.000000e+00 : f32
    %31 = vector.broadcast %cst_13 : f32 to vector<8x128xf32>
    %32 = arith.addf %31, %30 : vector<8x128xf32>
    %33 = arith.divf %31, %32 : vector<8x128xf32>
    %34 = arith.mulf %25, %5 : vector<8x128xf32>
    %35 = arith.mulf %19, %27 : vector<8x128xf32>
    %36 = arith.addf %34, %35 : vector<8x128xf32>
    %37 = math.tanh %36 : vector<8x128xf32>
    %38 = arith.mulf %33, %37 : vector<8x128xf32>
    %39 = arith.index_cast %c0_i32_6 : i32 to index
    %c0_14 = arith.constant 0 : index
    %c0_15 = arith.constant 0 : index
    %40 = vector.load %arg5[%39, %c0_14, %c0_15] : memref<8x8x128xf32, #tpu.memory_space<vmem>>, vector<1x8x128xf32>
    %41 = vector.shape_cast %40 : vector<1x8x128xf32> to vector<8x128xf32>
    %42 = vector.shape_cast %38 : vector<8x128xf32> to vector<1x8x128xf32>
    tpu.vector_store %arg5[%39, %c0_14, %c0_15], %42 {strides = array<i32>} : memref<8x8x128xf32, #tpu.memory_space<vmem>>, vector<1x8x128xf32>,
    %c1_i32 = arith.constant 1 : i32
    %43 = arith.index_cast %c1_i32 : i32 to index
    %c0_16 = arith.constant 0 : index
    %c0_17 = arith.constant 0 : index
    %44 = vector.load %arg2[%43, %c0_16, %c0_17] : memref<8x8x512xf32, #tpu.memory_space<vmem>>, vector<1x8x512xf32>
    %45 = vector.shape_cast %44 : vector<1x8x512xf32> to vector<8x512xf32>
    %c0_18 = arith.constant 0 : index
    %c0_19 = arith.constant 0 : index
    %46 = vector.load %arg8[%c0_18, %c0_19] : memref<128x512xf32, #tpu.memory_space<vmem>>, vector<128x512xf32>
    %cst_20 = arith.constant dense<0.000000e+00> : vector<8x512xf32>
    %47 = tpu.matmul %38, %46, %cst_20 {dimension_numbers = #tpu.dot_dimension_numbers<[1], [0], [0], [1], [0, 0, 1, 1], [], []>} : vector<8x128xf32>, vector<128x512xf32>, vector<8x512xf32> -> vector<8x512xf32>
    %48 = arith.addf %45, %47 : vector<8x512xf32>
    %49 = vector.broadcast %3 : vector<1x512xf32> to vector<8x512xf32>
    %50 = arith.addf %48, %49 : vector<8x512xf32>
    %51 = vector.extract_strided_slice %50 {offsets = [0, 0], sizes = [8, 128], strides = [1, 1]} : vector<8x512xf32> to vector<8x128xf32>
    %52 = arith.negf %51 : vector<8x128xf32>
    %53 = math.exp %52 : vector<8x128xf32>
    %cst_21 = arith.constant 1.000000e+00 : f32
    %54 = vector.broadcast %cst_21 : f32 to vector<8x128xf32>
    %55 = arith.addf %54, %53 : vector<8x128xf32>
    %56 = arith.divf %54, %55 : vector<8x128xf32>
    %57 = vector.extract_strided_slice %50 {offsets = [0, 128], sizes = [8, 128], strides = [1, 1]} : vector<8x512xf32> to vector<8x128xf32>
    %58 = arith.negf %57 : vector<8x128xf32>
    %59 = math.exp %58 : vector<8x128xf32>
    %cst_22 = arith.constant 1.000000e+00 : f32
    %60 = vector.broadcast %cst_22 : f32 to vector<8x128xf32>
    %61 = arith.addf %60, %59 : vector<8x128xf32>
    %62 = arith.divf %60, %61 : vector<8x128xf32>
    %63 = vector.extract_strided_slice %50 {offsets = [0, 256], sizes = [8, 128], strides = [1, 1]} : vector<8x512xf32> to vector<8x128xf32>
    %64 = math.tanh %63 : vector<8x128xf32>
    %65 = vector.extract_strided_slice %50 {offsets = [0, 384], sizes = [8, 128], strides = [1, 1]} : vector<8x512xf32> to vector<8x128xf32>
    %66 = arith.negf %65 : vector<8x128xf32>
    %67 = math.exp %66 : vector<8x128xf32>
    %cst_23 = arith.constant 1.000000e+00 : f32
    %68 = vector.broadcast %cst_23 : f32 to vector<8x128xf32>
    %69 = arith.addf %68, %67 : vector<8x128xf32>
    %70 = arith.divf %68, %69 : vector<8x128xf32>
    %71 = arith.mulf %62, %36 : vector<8x128xf32>
    %72 = arith.mulf %56, %64 : vector<8x128xf32>
    %73 = arith.addf %71, %72 : vector<8x128xf32>
    %74 = math.tanh %73 : vector<8x128xf32>
    %75 = arith.mulf %70, %74 : vector<8x128xf32>
    %76 = arith.index_cast %c1_i32 : i32 to index
    %c0_24 = arith.constant 0 : index
    %c0_25 = arith.constant 0 : index
    %77 = vector.load %arg5[%76, %c0_24, %c0_25] : memref<8x8x128xf32, #tpu.memory_space<vmem>>, vector<1x8x128xf32>
    %78 = vector.shape_cast %77 : vector<1x8x128xf32> to vector<8x128xf32>
    %79 = vector.shape_cast %75 : vector<8x128xf32> to vector<1x8x128xf32>
    tpu.vector_store %arg5[%76, %c0_24, %c0_25], %79 {strides = array<i32>} : memref<8x8x128xf32, #tpu.memory_space<vmem>>, vector<1x8x128xf32>,
    %c2_i32 = arith.constant 2 : i32
    %80 = arith.index_cast %c2_i32 : i32 to index
    %c0_26 = arith.constant 0 : index
    %c0_27 = arith.constant 0 : index
    %81 = vector.load %arg2[%80, %c0_26, %c0_27] : memref<8x8x512xf32, #tpu.memory_space<vmem>>, vector<1x8x512xf32>
    %82 = vector.shape_cast %81 : vector<1x8x512xf32> to vector<8x512xf32>
    %c0_28 = arith.constant 0 : index
    %c0_29 = arith.constant 0 : index
    %83 = vector.load %arg8[%c0_28, %c0_29] : memref<128x512xf32, #tpu.memory_space<vmem>>, vector<128x512xf32>
    %cst_30 = arith.constant dense<0.000000e+00> : vector<8x512xf32>
    %84 = tpu.matmul %75, %83, %cst_30 {dimension_numbers = #tpu.dot_dimension_numbers<[1], [0], [0], [1], [0, 0, 1, 1], [], []>} : vector<8x128xf32>, vector<128x512xf32>, vector<8x512xf32> -> vector<8x512xf32>
    %85 = arith.addf %82, %84 : vector<8x512xf32>
    %86 = vector.broadcast %3 : vector<1x512xf32> to vector<8x512xf32>
    %87 = arith.addf %85, %86 : vector<8x512xf32>
    %88 = vector.extract_strided_slice %87 {offsets = [0, 0], sizes = [8, 128], strides = [1, 1]} : vector<8x512xf32> to vector<8x128xf32>
    %89 = arith.negf %88 : vector<8x128xf32>
    %90 = math.exp %89 : vector<8x128xf32>
    %cst_31 = arith.constant 1.000000e+00 : f32
    %91 = vector.broadcast %cst_31 : f32 to vector<8x128xf32>
    %92 = arith.addf %91, %90 : vector<8x128xf32>
    %93 = arith.divf %91, %92 : vector<8x128xf32>
    %94 = vector.extract_strided_slice %87 {offsets = [0, 128], sizes = [8, 128], strides = [1, 1]} : vector<8x512xf32> to vector<8x128xf32>
    %95 = arith.negf %94 : vector<8x128xf32>
    %96 = math.exp %95 : vector<8x128xf32>
    %cst_32 = arith.constant 1.000000e+00 : f32
    %97 = vector.broadcast %cst_32 : f32 to vector<8x128xf32>
    %98 = arith.addf %97, %96 : vector<8x128xf32>
    %99 = arith.divf %97, %98 : vector<8x128xf32>
    %100 = vector.extract_strided_slice %87 {offsets = [0, 256], sizes = [8, 128], strides = [1, 1]} : vector<8x512xf32> to vector<8x128xf32>
    %101 = math.tanh %100 : vector<8x128xf32>
    %102 = vector.extract_strided_slice %87 {offsets = [0, 384], sizes = [8, 128], strides = [1, 1]} : vector<8x512xf32> to vector<8x128xf32>
    %103 = arith.negf %102 : vector<8x128xf32>
    %104 = math.exp %103 : vector<8x128xf32>
    %cst_33 = arith.constant 1.000000e+00 : f32
    %105 = vector.broadcast %cst_33 : f32 to vector<8x128xf32>
    %106 = arith.addf %105, %104 : vector<8x128xf32>
    %107 = arith.divf %105, %106 : vector<8x128xf32>
    %108 = arith.mulf %99, %73 : vector<8x128xf32>
    %109 = arith.mulf %93, %101 : vector<8x128xf32>
    %110 = arith.addf %108, %109 : vector<8x128xf32>
    %111 = math.tanh %110 : vector<8x128xf32>
    %112 = arith.mulf %107, %111 : vector<8x128xf32>
    %113 = arith.index_cast %c2_i32 : i32 to index
    %c0_34 = arith.constant 0 : index
    %c0_35 = arith.constant 0 : index
    %114 = vector.load %arg5[%113, %c0_34, %c0_35] : memref<8x8x128xf32, #tpu.memory_space<vmem>>, vector<1x8x128xf32>
    %115 = vector.shape_cast %114 : vector<1x8x128xf32> to vector<8x128xf32>
    %116 = vector.shape_cast %112 : vector<8x128xf32> to vector<1x8x128xf32>
    tpu.vector_store %arg5[%113, %c0_34, %c0_35], %116 {strides = array<i32>} : memref<8x8x128xf32, #tpu.memory_space<vmem>>, vector<1x8x128xf32>,
    %c3_i32 = arith.constant 3 : i32
    %117 = arith.index_cast %c3_i32 : i32 to index
    %c0_36 = arith.constant 0 : index
    %c0_37 = arith.constant 0 : index
    %118 = vector.load %arg2[%117, %c0_36, %c0_37] : memref<8x8x512xf32, #tpu.memory_space<vmem>>, vector<1x8x512xf32>
    %119 = vector.shape_cast %118 : vector<1x8x512xf32> to vector<8x512xf32>
    %c0_38 = arith.constant 0 : index
    %c0_39 = arith.constant 0 : index
    %120 = vector.load %arg8[%c0_38, %c0_39] : memref<128x512xf32, #tpu.memory_space<vmem>>, vector<128x512xf32>
    %cst_40 = arith.constant dense<0.000000e+00> : vector<8x512xf32>
    %121 = tpu.matmul %112, %120, %cst_40 {dimension_numbers = #tpu.dot_dimension_numbers<[1], [0], [0], [1], [0, 0, 1, 1], [], []>} : vector<8x128xf32>, vector<128x512xf32>, vector<8x512xf32> -> vector<8x512xf32>
    %122 = arith.addf %119, %121 : vector<8x512xf32>
    %123 = vector.broadcast %3 : vector<1x512xf32> to vector<8x512xf32>
    %124 = arith.addf %122, %123 : vector<8x512xf32>
    %125 = vector.extract_strided_slice %124 {offsets = [0, 0], sizes = [8, 128], strides = [1, 1]} : vector<8x512xf32> to vector<8x128xf32>
    %126 = arith.negf %125 : vector<8x128xf32>
    %127 = math.exp %126 : vector<8x128xf32>
    %cst_41 = arith.constant 1.000000e+00 : f32
    %128 = vector.broadcast %cst_41 : f32 to vector<8x128xf32>
    %129 = arith.addf %128, %127 : vector<8x128xf32>
    %130 = arith.divf %128, %129 : vector<8x128xf32>
    %131 = vector.extract_strided_slice %124 {offsets = [0, 128], sizes = [8, 128], strides = [1, 1]} : vector<8x512xf32> to vector<8x128xf32>
    %132 = arith.negf %131 : vector<8x128xf32>
    %133 = math.exp %132 : vector<8x128xf32>
    %cst_42 = arith.constant 1.000000e+00 : f32
    %134 = vector.broadcast %cst_42 : f32 to vector<8x128xf32>
    %135 = arith.addf %134, %133 : vector<8x128xf32>
    %136 = arith.divf %134, %135 : vector<8x128xf32>
    %137 = vector.extract_strided_slice %124 {offsets = [0, 256], sizes = [8, 128], strides = [1, 1]} : vector<8x512xf32> to vector<8x128xf32>
    %138 = math.tanh %137 : vector<8x128xf32>
    %139 = vector.extract_strided_slice %124 {offsets = [0, 384], sizes = [8, 128], strides = [1, 1]} : vector<8x512xf32> to vector<8x128xf32>
    %140 = arith.negf %139 : vector<8x128xf32>
    %141 = math.exp %140 : vector<8x128xf32>
    %cst_43 = arith.constant 1.000000e+00 : f32
    %142 = vector.broadcast %cst_43 : f32 to vector<8x128xf32>
    %143 = arith.addf %142, %141 : vector<8x128xf32>
    %144 = arith.divf %142, %143 : vector<8x128xf32>
    %145 = arith.mulf %136, %110 : vector<8x128xf32>
    %146 = arith.mulf %130, %138 : vector<8x128xf32>
    %147 = arith.addf %145, %146 : vector<8x128xf32>
    %148 = math.tanh %147 : vector<8x128xf32>
    %149 = arith.mulf %144, %148 : vector<8x128xf32>
    %150 = arith.index_cast %c3_i32 : i32 to index
    %c0_44 = arith.constant 0 : index
    %c0_45 = arith.constant 0 : index
    %151 = vector.load %arg5[%150, %c0_44, %c0_45] : memref<8x8x128xf32, #tpu.memory_space<vmem>>, vector<1x8x128xf32>
    %152 = vector.shape_cast %151 : vector<1x8x128xf32> to vector<8x128xf32>
    %153 = vector.shape_cast %149 : vector<8x128xf32> to vector<1x8x128xf32>
    tpu.vector_store %arg5[%150, %c0_44, %c0_45], %153 {strides = array<i32>} : memref<8x8x128xf32, #tpu.memory_space<vmem>>, vector<1x8x128xf32>,
    %c4_i32 = arith.constant 4 : i32
    %154 = arith.index_cast %c4_i32 : i32 to index
    %c0_46 = arith.constant 0 : index
    %c0_47 = arith.constant 0 : index
    %155 = vector.load %arg2[%154, %c0_46, %c0_47] : memref<8x8x512xf32, #tpu.memory_space<vmem>>, vector<1x8x512xf32>
    %156 = vector.shape_cast %155 : vector<1x8x512xf32> to vector<8x512xf32>
    %c0_48 = arith.constant 0 : index
    %c0_49 = arith.constant 0 : index
    %157 = vector.load %arg8[%c0_48, %c0_49] : memref<128x512xf32, #tpu.memory_space<vmem>>, vector<128x512xf32>
    %cst_50 = arith.constant dense<0.000000e+00> : vector<8x512xf32>
    %158 = tpu.matmul %149, %157, %cst_50 {dimension_numbers = #tpu.dot_dimension_numbers<[1], [0], [0], [1], [0, 0, 1, 1], [], []>} : vector<8x128xf32>, vector<128x512xf32>, vector<8x512xf32> -> vector<8x512xf32>
    %159 = arith.addf %156, %158 : vector<8x512xf32>
    %160 = vector.broadcast %3 : vector<1x512xf32> to vector<8x512xf32>
    %161 = arith.addf %159, %160 : vector<8x512xf32>
    %162 = vector.extract_strided_slice %161 {offsets = [0, 0], sizes = [8, 128], strides = [1, 1]} : vector<8x512xf32> to vector<8x128xf32>
    %163 = arith.negf %162 : vector<8x128xf32>
    %164 = math.exp %163 : vector<8x128xf32>
    %cst_51 = arith.constant 1.000000e+00 : f32
    %165 = vector.broadcast %cst_51 : f32 to vector<8x128xf32>
    %166 = arith.addf %165, %164 : vector<8x128xf32>
    %167 = arith.divf %165, %166 : vector<8x128xf32>
    %168 = vector.extract_strided_slice %161 {offsets = [0, 128], sizes = [8, 128], strides = [1, 1]} : vector<8x512xf32> to vector<8x128xf32>
    %169 = arith.negf %168 : vector<8x128xf32>
    %170 = math.exp %169 : vector<8x128xf32>
    %cst_52 = arith.constant 1.000000e+00 : f32
    %171 = vector.broadcast %cst_52 : f32 to vector<8x128xf32>
    %172 = arith.addf %171, %170 : vector<8x128xf32>
    %173 = arith.divf %171, %172 : vector<8x128xf32>
    %174 = vector.extract_strided_slice %161 {offsets = [0, 256], sizes = [8, 128], strides = [1, 1]} : vector<8x512xf32> to vector<8x128xf32>
    %175 = math.tanh %174 : vector<8x128xf32>
    %176 = vector.extract_strided_slice %161 {offsets = [0, 384], sizes = [8, 128], strides = [1, 1]} : vector<8x512xf32> to vector<8x128xf32>
    %177 = arith.negf %176 : vector<8x128xf32>
    %178 = math.exp %177 : vector<8x128xf32>
    %cst_53 = arith.constant 1.000000e+00 : f32
    %179 = vector.broadcast %cst_53 : f32 to vector<8x128xf32>
    %180 = arith.addf %179, %178 : vector<8x128xf32>
    %181 = arith.divf %179, %180 : vector<8x128xf32>
    %182 = arith.mulf %173, %147 : vector<8x128xf32>
    %183 = arith.mulf %167, %175 : vector<8x128xf32>
    %184 = arith.addf %182, %183 : vector<8x128xf32>
    %185 = math.tanh %184 : vector<8x128xf32>
    %186 = arith.mulf %181, %185 : vector<8x128xf32>
    %187 = arith.index_cast %c4_i32 : i32 to index
    %c0_54 = arith.constant 0 : index
    %c0_55 = arith.constant 0 : index
    %188 = vector.load %arg5[%187, %c0_54, %c0_55] : memref<8x8x128xf32, #tpu.memory_space<vmem>>, vector<1x8x128xf32>
    %189 = vector.shape_cast %188 : vector<1x8x128xf32> to vector<8x128xf32>
    %190 = vector.shape_cast %186 : vector<8x128xf32> to vector<1x8x128xf32>
    tpu.vector_store %arg5[%187, %c0_54, %c0_55], %190 {strides = array<i32>} : memref<8x8x128xf32, #tpu.memory_space<vmem>>, vector<1x8x128xf32>,
    %c5_i32 = arith.constant 5 : i32
    %191 = arith.index_cast %c5_i32 : i32 to index
    %c0_56 = arith.constant 0 : index
    %c0_57 = arith.constant 0 : index
    %192 = vector.load %arg2[%191, %c0_56, %c0_57] : memref<8x8x512xf32, #tpu.memory_space<vmem>>, vector<1x8x512xf32>
    %193 = vector.shape_cast %192 : vector<1x8x512xf32> to vector<8x512xf32>
    %c0_58 = arith.constant 0 : index
    %c0_59 = arith.constant 0 : index
    %194 = vector.load %arg8[%c0_58, %c0_59] : memref<128x512xf32, #tpu.memory_space<vmem>>, vector<128x512xf32>
    %cst_60 = arith.constant dense<0.000000e+00> : vector<8x512xf32>
    %195 = tpu.matmul %186, %194, %cst_60 {dimension_numbers = #tpu.dot_dimension_numbers<[1], [0], [0], [1], [0, 0, 1, 1], [], []>} : vector<8x128xf32>, vector<128x512xf32>, vector<8x512xf32> -> vector<8x512xf32>
    %196 = arith.addf %193, %195 : vector<8x512xf32>
    %197 = vector.broadcast %3 : vector<1x512xf32> to vector<8x512xf32>
    %198 = arith.addf %196, %197 : vector<8x512xf32>
    %199 = vector.extract_strided_slice %198 {offsets = [0, 0], sizes = [8, 128], strides = [1, 1]} : vector<8x512xf32> to vector<8x128xf32>
    %200 = arith.negf %199 : vector<8x128xf32>
    %201 = math.exp %200 : vector<8x128xf32>
    %cst_61 = arith.constant 1.000000e+00 : f32
    %202 = vector.broadcast %cst_61 : f32 to vector<8x128xf32>
    %203 = arith.addf %202, %201 : vector<8x128xf32>
    %204 = arith.divf %202, %203 : vector<8x128xf32>
    %205 = vector.extract_strided_slice %198 {offsets = [0, 128], sizes = [8, 128], strides = [1, 1]} : vector<8x512xf32> to vector<8x128xf32>
    %206 = arith.negf %205 : vector<8x128xf32>
    %207 = math.exp %206 : vector<8x128xf32>
    %cst_62 = arith.constant 1.000000e+00 : f32
    %208 = vector.broadcast %cst_62 : f32 to vector<8x128xf32>
    %209 = arith.addf %208, %207 : vector<8x128xf32>
    %210 = arith.divf %208, %209 : vector<8x128xf32>
    %211 = vector.extract_strided_slice %198 {offsets = [0, 256], sizes = [8, 128], strides = [1, 1]} : vector<8x512xf32> to vector<8x128xf32>
    %212 = math.tanh %211 : vector<8x128xf32>
    %213 = vector.extract_strided_slice %198 {offsets = [0, 384], sizes = [8, 128], strides = [1, 1]} : vector<8x512xf32> to vector<8x128xf32>
    %214 = arith.negf %213 : vector<8x128xf32>
    %215 = math.exp %214 : vector<8x128xf32>
    %cst_63 = arith.constant 1.000000e+00 : f32
    %216 = vector.broadcast %cst_63 : f32 to vector<8x128xf32>
    %217 = arith.addf %216, %215 : vector<8x128xf32>
    %218 = arith.divf %216, %217 : vector<8x128xf32>
    %219 = arith.mulf %210, %184 : vector<8x128xf32>
    %220 = arith.mulf %204, %212 : vector<8x128xf32>
    %221 = arith.addf %219, %220 : vector<8x128xf32>
    %222 = math.tanh %221 : vector<8x128xf32>
    %223 = arith.mulf %218, %222 : vector<8x128xf32>
    %224 = arith.index_cast %c5_i32 : i32 to index
    %c0_64 = arith.constant 0 : index
    %c0_65 = arith.constant 0 : index
    %225 = vector.load %arg5[%224, %c0_64, %c0_65] : memref<8x8x128xf32, #tpu.memory_space<vmem>>, vector<1x8x128xf32>
    %226 = vector.shape_cast %225 : vector<1x8x128xf32> to vector<8x128xf32>
    %227 = vector.shape_cast %223 : vector<8x128xf32> to vector<1x8x128xf32>
    tpu.vector_store %arg5[%224, %c0_64, %c0_65], %227 {strides = array<i32>} : memref<8x8x128xf32, #tpu.memory_space<vmem>>, vector<1x8x128xf32>,
    %c6_i32 = arith.constant 6 : i32
    %228 = arith.index_cast %c6_i32 : i32 to index
    %c0_66 = arith.constant 0 : index
    %c0_67 = arith.constant 0 : index
    %229 = vector.load %arg2[%228, %c0_66, %c0_67] : memref<8x8x512xf32, #tpu.memory_space<vmem>>, vector<1x8x512xf32>
    %230 = vector.shape_cast %229 : vector<1x8x512xf32> to vector<8x512xf32>
    %c0_68 = arith.constant 0 : index
    %c0_69 = arith.constant 0 : index
    %231 = vector.load %arg8[%c0_68, %c0_69] : memref<128x512xf32, #tpu.memory_space<vmem>>, vector<128x512xf32>
    %cst_70 = arith.constant dense<0.000000e+00> : vector<8x512xf32>
    %232 = tpu.matmul %223, %231, %cst_70 {dimension_numbers = #tpu.dot_dimension_numbers<[1], [0], [0], [1], [0, 0, 1, 1], [], []>} : vector<8x128xf32>, vector<128x512xf32>, vector<8x512xf32> -> vector<8x512xf32>
    %233 = arith.addf %230, %232 : vector<8x512xf32>
    %234 = vector.broadcast %3 : vector<1x512xf32> to vector<8x512xf32>
    %235 = arith.addf %233, %234 : vector<8x512xf32>
    %236 = vector.extract_strided_slice %235 {offsets = [0, 0], sizes = [8, 128], strides = [1, 1]} : vector<8x512xf32> to vector<8x128xf32>
    %237 = arith.negf %236 : vector<8x128xf32>
    %238 = math.exp %237 : vector<8x128xf32>
    %cst_71 = arith.constant 1.000000e+00 : f32
    %239 = vector.broadcast %cst_71 : f32 to vector<8x128xf32>
    %240 = arith.addf %239, %238 : vector<8x128xf32>
    %241 = arith.divf %239, %240 : vector<8x128xf32>
    %242 = vector.extract_strided_slice %235 {offsets = [0, 128], sizes = [8, 128], strides = [1, 1]} : vector<8x512xf32> to vector<8x128xf32>
    %243 = arith.negf %242 : vector<8x128xf32>
    %244 = math.exp %243 : vector<8x128xf32>
    %cst_72 = arith.constant 1.000000e+00 : f32
    %245 = vector.broadcast %cst_72 : f32 to vector<8x128xf32>
    %246 = arith.addf %245, %244 : vector<8x128xf32>
    %247 = arith.divf %245, %246 : vector<8x128xf32>
    %248 = vector.extract_strided_slice %235 {offsets = [0, 256], sizes = [8, 128], strides = [1, 1]} : vector<8x512xf32> to vector<8x128xf32>
    %249 = math.tanh %248 : vector<8x128xf32>
    %250 = vector.extract_strided_slice %235 {offsets = [0, 384], sizes = [8, 128], strides = [1, 1]} : vector<8x512xf32> to vector<8x128xf32>
    %251 = arith.negf %250 : vector<8x128xf32>
    %252 = math.exp %251 : vector<8x128xf32>
    %cst_73 = arith.constant 1.000000e+00 : f32
    %253 = vector.broadcast %cst_73 : f32 to vector<8x128xf32>
    %254 = arith.addf %253, %252 : vector<8x128xf32>
    %255 = arith.divf %253, %254 : vector<8x128xf32>
    %256 = arith.mulf %247, %221 : vector<8x128xf32>
    %257 = arith.mulf %241, %249 : vector<8x128xf32>
    %258 = arith.addf %256, %257 : vector<8x128xf32>
    %259 = math.tanh %258 : vector<8x128xf32>
    %260 = arith.mulf %255, %259 : vector<8x128xf32>
    %261 = arith.index_cast %c6_i32 : i32 to index
    %c0_74 = arith.constant 0 : index
    %c0_75 = arith.constant 0 : index
    %262 = vector.load %arg5[%261, %c0_74, %c0_75] : memref<8x8x128xf32, #tpu.memory_space<vmem>>, vector<1x8x128xf32>
    %263 = vector.shape_cast %262 : vector<1x8x128xf32> to vector<8x128xf32>
    %264 = vector.shape_cast %260 : vector<8x128xf32> to vector<1x8x128xf32>
    tpu.vector_store %arg5[%261, %c0_74, %c0_75], %264 {strides = array<i32>} : memref<8x8x128xf32, #tpu.memory_space<vmem>>, vector<1x8x128xf32>,
    %c7_i32 = arith.constant 7 : i32
    %265 = arith.index_cast %c7_i32 : i32 to index
    %c0_76 = arith.constant 0 : index
    %c0_77 = arith.constant 0 : index
    %266 = vector.load %arg2[%265, %c0_76, %c0_77] : memref<8x8x512xf32, #tpu.memory_space<vmem>>, vector<1x8x512xf32>
    %267 = vector.shape_cast %266 : vector<1x8x512xf32> to vector<8x512xf32>
    %c0_78 = arith.constant 0 : index
    %c0_79 = arith.constant 0 : index
    %268 = vector.load %arg8[%c0_78, %c0_79] : memref<128x512xf32, #tpu.memory_space<vmem>>, vector<128x512xf32>
    %cst_80 = arith.constant dense<0.000000e+00> : vector<8x512xf32>
    %269 = tpu.matmul %260, %268, %cst_80 {dimension_numbers = #tpu.dot_dimension_numbers<[1], [0], [0], [1], [0, 0, 1, 1], [], []>} : vector<8x128xf32>, vector<128x512xf32>, vector<8x512xf32> -> vector<8x512xf32>
    %270 = arith.addf %267, %269 : vector<8x512xf32>
    %271 = vector.broadcast %3 : vector<1x512xf32> to vector<8x512xf32>
    %272 = arith.addf %270, %271 : vector<8x512xf32>
    %273 = vector.extract_strided_slice %272 {offsets = [0, 0], sizes = [8, 128], strides = [1, 1]} : vector<8x512xf32> to vector<8x128xf32>
    %274 = arith.negf %273 : vector<8x128xf32>
    %275 = math.exp %274 : vector<8x128xf32>
    %cst_81 = arith.constant 1.000000e+00 : f32
    %276 = vector.broadcast %cst_81 : f32 to vector<8x128xf32>
    %277 = arith.addf %276, %275 : vector<8x128xf32>
    %278 = arith.divf %276, %277 : vector<8x128xf32>
    %279 = vector.extract_strided_slice %272 {offsets = [0, 128], sizes = [8, 128], strides = [1, 1]} : vector<8x512xf32> to vector<8x128xf32>
    %280 = arith.negf %279 : vector<8x128xf32>
    %281 = math.exp %280 : vector<8x128xf32>
    %cst_82 = arith.constant 1.000000e+00 : f32
    %282 = vector.broadcast %cst_82 : f32 to vector<8x128xf32>
    %283 = arith.addf %282, %281 : vector<8x128xf32>
    %284 = arith.divf %282, %283 : vector<8x128xf32>
    %285 = vector.extract_strided_slice %272 {offsets = [0, 256], sizes = [8, 128], strides = [1, 1]} : vector<8x512xf32> to vector<8x128xf32>
    %286 = math.tanh %285 : vector<8x128xf32>
    %287 = vector.extract_strided_slice %272 {offsets = [0, 384], sizes = [8, 128], strides = [1, 1]} : vector<8x512xf32> to vector<8x128xf32>
    %288 = arith.negf %287 : vector<8x128xf32>
    %289 = math.exp %288 : vector<8x128xf32>
    %cst_83 = arith.constant 1.000000e+00 : f32
    %290 = vector.broadcast %cst_83 : f32 to vector<8x128xf32>
    %291 = arith.addf %290, %289 : vector<8x128xf32>
    %292 = arith.divf %290, %291 : vector<8x128xf32>
    %293 = arith.mulf %284, %258 : vector<8x128xf32>
    %294 = arith.mulf %278, %286 : vector<8x128xf32>
    %295 = arith.addf %293, %294 : vector<8x128xf32>
    %296 = math.tanh %295 : vector<8x128xf32>
    %297 = arith.mulf %292, %296 : vector<8x128xf32>
    %298 = arith.index_cast %c7_i32 : i32 to index
    %c0_84 = arith.constant 0 : index
    %c0_85 = arith.constant 0 : index
    %299 = vector.load %arg5[%298, %c0_84, %c0_85] : memref<8x8x128xf32, #tpu.memory_space<vmem>>, vector<1x8x128xf32>
    %300 = vector.shape_cast %299 : vector<1x8x128xf32> to vector<8x128xf32>
    %301 = vector.shape_cast %297 : vector<8x128xf32> to vector<1x8x128xf32>
    tpu.vector_store %arg5[%298, %c0_84, %c0_85], %301 {strides = array<i32>} : memref<8x8x128xf32, #tpu.memory_space<vmem>>, vector<1x8x128xf32>,
    %c8_i32 = arith.constant 8 : i32
    %c0_86 = arith.constant 0 : index
    %c0_87 = arith.constant 0 : index
    %302 = vector.load %arg6[%c0_86, %c0_87] : memref<8x128xf32, #tpu.memory_space<vmem>>, vector<8x128xf32>
    tpu.vector_store %arg6[%c0_86, %c0_87], %297 {strides = array<i32>} : memref<8x128xf32, #tpu.memory_space<vmem>>, vector<8x128xf32>,
    %c0_88 = arith.constant 0 : index
    %c0_89 = arith.constant 0 : index
    %303 = vector.load %arg7[%c0_88, %c0_89] : memref<8x128xf32, #tpu.memory_space<vmem>>, vector<8x128xf32>
    tpu.vector_store %arg7[%c0_88, %c0_89], %295 {strides = array<i32>} : memref<8x128xf32, #tpu.memory_space<vmem>>, vector<8x128xf32>,
    return
  }
  func.func @transform_0(%arg0: i32, %arg1: i32) -> (i32, i32, i32) {
    %c0_i32 = arith.constant 0 : i32
    %c0_i32_0 = arith.constant 0 : i32
    return %arg1, %arg0, %c0_i32 : i32, i32, i32
  }
  func.func @transform_1(%arg0: i32, %arg1: i32) -> (i32, i32) {
    %c0_i32 = arith.constant 0 : i32
    %c0_i32_0 = arith.constant 0 : i32
    %c0_i32_1 = arith.constant 0 : i32
    return %c0_i32, %c0_i32_0 : i32, i32
  }
  func.func @transform_3(%arg0: i32, %arg1: i32) -> (i32, i32, i32) {
    %c0_i32 = arith.constant 0 : i32
    %c0_i32_0 = arith.constant 0 : i32
    return %arg1, %arg0, %c0_i32 : i32, i32, i32
  }
  func.func @transform_4(%arg0: i32, %arg1: i32) -> (i32, i32) {
    %c0_i32 = arith.constant 0 : i32
    %c0_i32_0 = arith.constant 0 : i32
    return %arg0, %c0_i32 : i32, i32
  }
  func.func @transform_5(%arg0: i32, %arg1: i32) -> (i32, i32) {
    %c0_i32 = arith.constant 0 : i32
    %c0_i32_0 = arith.constant 0 : i32
    return %arg0, %c0_i32 : i32, i32
  }
}

</mosaic_0001>

<llo_original>
// kernel: my_rnn_base_forward.2
$region0: #{my_rnn_base_forward.2}
  #allocation0 [shape = 'u32[]', space=smem, size = 0x4, offset = 0x4, fixed_abs, tag = 'smem constant byte address 0x4 - core index']
  #allocation1 [shape = 'u32[144,128]{1,0:T(1,128)}', space=vmem, size = 0x12000, scoped, tag = 'internal scratch']
  %s0 = inlined_call_operand.vmem [shape: f32[8,8,128], index: 0, kind: input, shape index: {}]
  %s1 = inlined_call_operand.hbm [shape: f32[128,512], index: 1, kind: input, shape index: {}]
  %s2 = inlined_call_operand.vmem [shape: f32[8,8,512], index: 2, kind: output, shape index: {}]
  %s3 = sld [smem:[#allocation0]]
  $region22: #{my_rnn_base_forward.2} parent=0
    _
  %s5 = ssub.s32 1, %s3
  %s6 = scalar_select 0, %s5, %s3
  $region1: #{my_rnn_base_forward.2} parent=0
    #allocation2 [shape = 'u8[262144]{0}', space=vmem, size = 0x40000, scoped, tag = 'input window, operand 1, single buffered']
    #allocation3 [shape = 's32[1]{0}', space=sflag, size = 0x4, scoped, tag = 'scoped memory for my_rnn_base_forward.2']
    %7 = vsyncpa [#allocation3], 0
    // Predicated region
    $region2: #{my_rnn_base_forward.2} parent=1 // pred_check
      _
    $region3: #{my_rnn_base_forward.2} parent=1 // pred_check_branch
      %9 = sbr.rel (0) target = $region5
    $region4: #{my_rnn_base_forward.2} parent=1 // pred_region
      _
    $region5: #{my_rnn_base_forward.2} parent=1 // pred_fallthru
      _
    // Predicated region
    $region6: #{my_rnn_base_forward.2} parent=1 // pred_check
      _
    $region7: #{my_rnn_base_forward.2} parent=1 // pred_check_branch
      %11 = sbr.rel (0) target = $region9
    $region8: #{my_rnn_base_forward.2} parent=1 // pred_region
      %s13 = ssub.s32 8192, 8192
      %14 = vsyncadd [#allocation3], %s13
      %s15 = sshll.u32 [#allocation2], 4
      %s16 = int_to_ptr.vmem [resolvable:$true] %s15
      %21 = dma.hbm_to_vmem [thread:$0]  %s1, 8192, %s16, [#allocation3], 512, 512, 32
    $region9: #{my_rnn_base_forward.2} parent=1 // pred_fallthru
      _
    // Predicated region
    $region10: #{my_rnn_base_forward.2} parent=1 // pred_check
      _
    $region11: #{my_rnn_base_forward.2} parent=1 // pred_check_branch
      %23 = sbr.rel (0) target = $region13
    $region12: #{my_rnn_base_forward.2} parent=1 // pred_region
      %24 = dma.done [#allocation3], 8192
    $region13: #{my_rnn_base_forward.2} parent=1 // pred_fallthru
      _
    %v25 = vld [vmem:[%s0] sm:$0xff]
    %v26 = vld [vmem:[%s0 + $0x8] sm:$0xff]
    %v27 = vld [vmem:[%s0 + $0x10] sm:$0xff]
    %v28 = vld [vmem:[%s0 + $0x18] sm:$0xff]
    %v29 = vld [vmem:[%s0 + $0x20] sm:$0xff]
    %v30 = vld [vmem:[%s0 + $0x28] sm:$0xff]
    %v31 = vld [vmem:[%s0 + $0x30] sm:$0xff]
    %v32 = vld [vmem:[%s0 + $0x38] sm:$0xff]
    %v33 = vld [vmem:[#allocation2] sm:$0xff]
    %v34 = vld [vmem:[#allocation2 + $0x8] sm:$0xff]
    %v35 = vld [vmem:[#allocation2 + $0x10] sm:$0xff]
    %v36 = vld [vmem:[#allocation2 + $0x18] sm:$0xff]
    %v37 = vld [vmem:[#allocation2 + $0x20] sm:$0xff]
    %v38 = vld [vmem:[#allocation2 + $0x28] sm:$0xff]
    %v39 = vld [vmem:[#allocation2 + $0x30] sm:$0xff]
    %v40 = vld [vmem:[#allocation2 + $0x38] sm:$0xff]
    %v41 = vld [vmem:[#allocation2 + $0x40] sm:$0xff]
    %v42 = vld [vmem:[#allocation2 + $0x48] sm:$0xff]
    %v43 = vld [vmem:[#allocation2 + $0x50] sm:$0xff]
    %v44 = vld [vmem:[#allocation2 + $0x58] sm:$0xff]
    %v45 = vld [vmem:[#allocation2 + $0x60] sm:$0xff]
    %v46 = vld [vmem:[#allocation2 + $0x68] sm:$0xff]
    %v47 = vld [vmem:[#allocation2 + $0x70] sm:$0xff]
    %v48 = vld [vmem:[#allocation2 + $0x78] sm:$0xff]
    %v49 = vld [vmem:[#allocation2 + $0x80] sm:$0xff]
    %v50 = vld [vmem:[#allocation2 + $0x88] sm:$0xff]
    %v51 = vld [vmem:[#allocation2 + $0x90] sm:$0xff]
    %v52 = vld [vmem:[#allocation2 + $0x98] sm:$0xff]
    %v53 = vld [vmem:[#allocation2 + $0xa0] sm:$0xff]
    %v54 = vld [vmem:[#allocation2 + $0xa8] sm:$0xff]
    %v55 = vld [vmem:[#allocation2 + $0xb0] sm:$0xff]
    %v56 = vld [vmem:[#allocation2 + $0xb8] sm:$0xff]
    %v57 = vld [vmem:[#allocation2 + $0xc0] sm:$0xff]
    %v58 = vld [vmem:[#allocation2 + $0xc8] sm:$0xff]
    %v59 = vld [vmem:[#allocation2 + $0xd0] sm:$0xff]
    %v60 = vld [vmem:[#allocation2 + $0xd8] sm:$0xff]
    %v61 = vld [vmem:[#allocation2 + $0xe0] sm:$0xff]
    %v62 = vld [vmem:[#allocation2 + $0xe8] sm:$0xff]
    %v63 = vld [vmem:[#allocation2 + $0xf0] sm:$0xff]
    %v64 = vld [vmem:[#allocation2 + $0xf8] sm:$0xff]
    %v65 = vld [vmem:[#allocation2 + $0x100] sm:$0xff]
    %v66 = vld [vmem:[#allocation2 + $0x108] sm:$0xff]
    %v67 = vld [vmem:[#allocation2 + $0x110] sm:$0xff]
    %v68 = vld [vmem:[#allocation2 + $0x118] sm:$0xff]
    %v69 = vld [vmem:[#allocation2 + $0x120] sm:$0xff]
    %v70 = vld [vmem:[#allocation2 + $0x128] sm:$0xff]
    %v71 = vld [vmem:[#allocation2 + $0x130] sm:$0xff]
    %v72 = vld [vmem:[#allocation2 + $0x138] sm:$0xff]
    %v73 = vld [vmem:[#allocation2 + $0x140] sm:$0xff]
    %v74 = vld [vmem:[#allocation2 + $0x148] sm:$0xff]
    %v75 = vld [vmem:[#allocation2 + $0x150] sm:$0xff]
    %v76 = vld [vmem:[#allocation2 + $0x158] sm:$0xff]
    %v77 = vld [vmem:[#allocation2 + $0x160] sm:$0xff]
    %v78 = vld [vmem:[#allocation2 + $0x168] sm:$0xff]
    %v79 = vld [vmem:[#allocation2 + $0x170] sm:$0xff]
    %v80 = vld [vmem:[#allocation2 + $0x178] sm:$0xff]
    %v81 = vld [vmem:[#allocation2 + $0x180] sm:$0xff]
    %v82 = vld [vmem:[#allocation2 + $0x188] sm:$0xff]
    %v83 = vld [vmem:[#allocation2 + $0x190] sm:$0xff]
    %v84 = vld [vmem:[#allocation2 + $0x198] sm:$0xff]
    %v85 = vld [vmem:[#allocation2 + $0x1a0] sm:$0xff]
    %v86 = vld [vmem:[#allocation2 + $0x1a8] sm:$0xff]
    %v87 = vld [vmem:[#allocation2 + $0x1b0] sm:$0xff]
    %v88 = vld [vmem:[#allocation2 + $0x1b8] sm:$0xff]
    %v89 = vld [vmem:[#allocation2 + $0x1c0] sm:$0xff]
    %v90 = vld [vmem:[#allocation2 + $0x1c8] sm:$0xff]
    %v91 = vld [vmem:[#allocation2 + $0x1d0] sm:$0xff]
    %v92 = vld [vmem:[#allocation2 + $0x1d8] sm:$0xff]
    %v93 = vld [vmem:[#allocation2 + $0x1e0] sm:$0xff]
    %v94 = vld [vmem:[#allocation2 + $0x1e8] sm:$0xff]
    %v95 = vld [vmem:[#allocation2 + $0x1f0] sm:$0xff]
    %v96 = vld [vmem:[#allocation2 + $0x1f8] sm:$0xff]
    %97 = vmatprep.subr.mxu0 %v34
    %98 = vmatpush1.msra.mxu0 %v33
    %99 = vmatprep.subr.mxu0 %v38
    %100 = vmatpush1.msra.mxu0 %v37
    %101 = vmatprep.subr.mxu0 %v42
    %102 = vmatpush1.msra.mxu0 %v41
    %103 = vmatprep.subr.mxu0 %v46
    %104 = vmatpush1.msra.mxu0 %v45
    %105 = vmatprep.subr.mxu0 %v50
    %106 = vmatpush1.msra.mxu0 %v49
    %107 = vmatprep.subr.mxu0 %v54
    %108 = vmatpush1.msra.mxu0 %v53
    %109 = vmatprep.subr.mxu0 %v58
    %110 = vmatpush1.msra.mxu0 %v57
    %111 = vmatprep.subr.mxu0 %v62
    %112 = vmatpush1.msra.mxu0 %v61
    %113 = vmatprep.subr.mxu0 %v66
    %114 = vmatpush1.msra.mxu0 %v65
    %115 = vmatprep.subr.mxu0 %v70
    %116 = vmatpush1.msra.mxu0 %v69
    %117 = vmatprep.subr.mxu0 %v74
    %118 = vmatpush1.msra.mxu0 %v73
    %119 = vmatprep.subr.mxu0 %v78
    %120 = vmatpush1.msra.mxu0 %v77
    %121 = vmatprep.subr.mxu0 %v82
    %122 = vmatpush1.msra.mxu0 %v81
    %123 = vmatprep.subr.mxu0 %v86
    %124 = vmatpush1.msra.mxu0 %v85
    %125 = vmatprep.subr.mxu0 %v90
    %126 = vmatpush1.msra.mxu0 %v89
    %127 = vmatprep.subr.mxu0 %v94
    %128 = vmatpush1.msra.mxu0 %v93
    %129 = vmatprep.subr.mxu0 0.0
    %130 = vmatpush1.msra.mxu0 0.0
    %131 = vmatprep.subr.mxu0 0.0
    %132 = vmatpush1.msra.mxu0 0.0
    %133 = vmatprep.subr.mxu0 0.0
    %134 = vmatpush1.msra.mxu0 0.0
    %135 = vmatprep.subr.mxu0 0.0
    %136 = vmatpush1.msra.mxu0 0.0
    %137 = vmatprep.subr.mxu0 0.0
    %138 = vmatpush1.msra.mxu0 0.0
    %139 = vmatprep.subr.mxu0 0.0
    %140 = vmatpush1.msra.mxu0 0.0
    %141 = vmatprep.subr.mxu0 0.0
    %142 = vmatpush1.msra.mxu0 0.0
    %143 = vmatprep.subr.mxu0 0.0
    %144 = vmatpush1.msra.mxu0 0.0
    %145 = vmatprep.subr.mxu0 0.0
    %146 = vmatpush1.msra.mxu0 0.0
    %147 = vmatprep.subr.mxu0 0.0
    %148 = vmatpush1.msra.mxu0 0.0
    %149 = vmatprep.subr.mxu0 0.0
    %150 = vmatpush1.msra.mxu0 0.0
    %151 = vmatprep.subr.mxu0 0.0
    %152 = vmatpush1.msra.mxu0 0.0
    %153 = vmatprep.subr.mxu0 0.0
    %154 = vmatpush1.msra.mxu0 0.0
    %155 = vmatprep.subr.mxu0 0.0
    %156 = vmatpush1.msra.mxu0 0.0
    %157 = vmatprep.subr.mxu0 0.0
    %158 = vmatpush1.msra.mxu0 0.0
    %159 = vmatprep.subr.mxu0 0.0
    %160 = vmatpush1.msra.mxu0 0.0
    %161 = vmatprep.mubr.f32.mxu0 0.0
    %162 = vmatmul.mubr.f32.gmra.mrb[0].mxu0 %v25
    %v163 = vpop.f32.mrb[0].mxu0
    %v164 = vadd.f32 0.0, %v163
    %v165 = vpop.f32.mrb[0].mxu0
    %v166 = vadd.f32 0.0, %v165
    %167 = vmatprep.mubr.f32.mxu0 0.0
    %168 = vmatmul.mubr.f32.gmra.mrb[0].mxu0 %v26
    %v169 = vpop.f32.mrb[0].mxu0
    %v170 = vadd.f32 0.0, %v169
    %v171 = vpop.f32.mrb[0].mxu0
    %v172 = vadd.f32 0.0, %v171
    %173 = vmatprep.mubr.f32.mxu0 0.0
    %174 = vmatmul.mubr.f32.gmra.mrb[0].mxu0 %v27
    %v175 = vpop.f32.mrb[0].mxu0
    %v176 = vadd.f32 0.0, %v175
    %v177 = vpop.f32.mrb[0].mxu0
    %v178 = vadd.f32 0.0, %v177
    %179 = vmatprep.mubr.f32.mxu0 0.0
    %180 = vmatmul.mubr.f32.gmra.mrb[0].mxu0 %v28
    %v181 = vpop.f32.mrb[0].mxu0
    %v182 = vadd.f32 0.0, %v181
    %v183 = vpop.f32.mrb[0].mxu0
    %v184 = vadd.f32 0.0, %v183
    %185 = vmatprep.mubr.f32.mxu0 0.0
    %186 = vmatmul.mubr.f32.gmra.mrb[0].mxu0 %v29
    %v187 = vpop.f32.mrb[0].mxu0
    %v188 = vadd.f32 0.0, %v187
    %v189 = vpop.f32.mrb[0].mxu0
    %v190 = vadd.f32 0.0, %v189
    %191 = vmatprep.mubr.f32.mxu0 0.0
    %192 = vmatmul.mubr.f32.gmra.mrb[0].mxu0 %v30
    %v193 = vpop.f32.mrb[0].mxu0
    %v194 = vadd.f32 0.0, %v193
    %v195 = vpop.f32.mrb[0].mxu0
    %v196 = vadd.f32 0.0, %v195
    %197 = vmatprep.mubr.f32.mxu0 0.0
    %198 = vmatmul.mubr.f32.gmra.mrb[0].mxu0 %v31
    %v199 = vpop.f32.mrb[0].mxu0
    %v200 = vadd.f32 0.0, %v199
    %v201 = vpop.f32.mrb[0].mxu0
    %v202 = vadd.f32 0.0, %v201
    %203 = vmatprep.mubr.f32.mxu0 0.0
    %204 = vmatmul.mubr.f32.gmra.mrb[0].mxu0 %v32
    %v205 = vpop.f32.mrb[0].mxu0
    %v206 = vadd.f32 0.0, %v205
    %v207 = vpop.f32.mrb[0].mxu0
    %v208 = vadd.f32 0.0, %v207
    %209 = vdwg.mxu0
    %210 = vmatprep.subr.mxu0 %v36
    %211 = vmatpush1.msra.mxu0 %v35
    %212 = vmatprep.subr.mxu0 %v40
    %213 = vmatpush1.msra.mxu0 %v39
    %214 = vmatprep.subr.mxu0 %v44
    %215 = vmatpush1.msra.mxu0 %v43
    %216 = vmatprep.subr.mxu0 %v48
    %217 = vmatpush1.msra.mxu0 %v47
    %218 = vmatprep.subr.mxu0 %v52
    %219 = vmatpush1.msra.mxu0 %v51
    %220 = vmatprep.subr.mxu0 %v56
    %221 = vmatpush1.msra.mxu0 %v55
    %222 = vmatprep.subr.mxu0 %v60
    %223 = vmatpush1.msra.mxu0 %v59
    %224 = vmatprep.subr.mxu0 %v64
    %225 = vmatpush1.msra.mxu0 %v63
    %226 = vmatprep.subr.mxu0 %v68
    %227 = vmatpush1.msra.mxu0 %v67
    %228 = vmatprep.subr.mxu0 %v72
    %229 = vmatpush1.msra.mxu0 %v71
    %230 = vmatprep.subr.mxu0 %v76
    %231 = vmatpush1.msra.mxu0 %v75
    %232 = vmatprep.subr.mxu0 %v80
    %233 = vmatpush1.msra.mxu0 %v79
    %234 = vmatprep.subr.mxu0 %v84
    %235 = vmatpush1.msra.mxu0 %v83
    %236 = vmatprep.subr.mxu0 %v88
    %237 = vmatpush1.msra.mxu0 %v87
    %238 = vmatprep.subr.mxu0 %v92
    %239 = vmatpush1.msra.mxu0 %v91
    %240 = vmatprep.subr.mxu0 %v96
    %241 = vmatpush1.msra.mxu0 %v95
    %242 = vmatprep.subr.mxu0 0.0
    %243 = vmatpush1.msra.mxu0 0.0
    %244 = vmatprep.subr.mxu0 0.0
    %245 = vmatpush1.msra.mxu0 0.0
    %246 = vmatprep.subr.mxu0 0.0
    %247 = vmatpush1.msra.mxu0 0.0
    %248 = vmatprep.subr.mxu0 0.0
    %249 = vmatpush1.msra.mxu0 0.0
    %250 = vmatprep.subr.mxu0 0.0
    %251 = vmatpush1.msra.mxu0 0.0
    %252 = vmatprep.subr.mxu0 0.0
    %253 = vmatpush1.msra.mxu0 0.0
    %254 = vmatprep.subr.mxu0 0.0
    %255 = vmatpush1.msra.mxu0 0.0
    %256 = vmatprep.subr.mxu0 0.0
    %257 = vmatpush1.msra.mxu0 0.0
    %258 = vmatprep.subr.mxu0 0.0
    %259 = vmatpush1.msra.mxu0 0.0
    %260 = vmatprep.subr.mxu0 0.0
    %261 = vmatpush1.msra.mxu0 0.0
    %262 = vmatprep.subr.mxu0 0.0
    %263 = vmatpush1.msra.mxu0 0.0
    %264 = vmatprep.subr.mxu0 0.0
    %265 = vmatpush1.msra.mxu0 0.0
    %266 = vmatprep.subr.mxu0 0.0
    %267 = vmatpush1.msra.mxu0 0.0
    %268 = vmatprep.subr.mxu0 0.0
    %269 = vmatpush1.msra.mxu0 0.0
    %270 = vmatprep.subr.mxu0 0.0
    %271 = vmatpush1.msra.mxu0 0.0
    %272 = vmatprep.subr.mxu0 0.0
    %273 = vmatpush1.msra.mxu0 0.0
    %274 = vmatprep.mubr.f32.mxu0 0.0
    %275 = vmatmul.mubr.f32.gmra.mrb[0].mxu0 %v25
    %v276 = vpop.f32.mrb[0].mxu0
    %v277 = vadd.f32 0.0, %v276
    %v278 = vpop.f32.mrb[0].mxu0
    %v279 = vadd.f32 0.0, %v278
    %280 = vmatprep.mubr.f32.mxu0 0.0
    %281 = vmatmul.mubr.f32.gmra.mrb[0].mxu0 %v26
    %v282 = vpop.f32.mrb[0].mxu0
    %v283 = vadd.f32 0.0, %v282
    %v284 = vpop.f32.mrb[0].mxu0
    %v285 = vadd.f32 0.0, %v284
    %286 = vmatprep.mubr.f32.mxu0 0.0
    %287 = vmatmul.mubr.f32.gmra.mrb[0].mxu0 %v27
    %v288 = vpop.f32.mrb[0].mxu0
    %v289 = vadd.f32 0.0, %v288
    %v290 = vpop.f32.mrb[0].mxu0
    %v291 = vadd.f32 0.0, %v290
    %292 = vmatprep.mubr.f32.mxu0 0.0
    %293 = vmatmul.mubr.f32.gmra.mrb[0].mxu0 %v28
    %v294 = vpop.f32.mrb[0].mxu0
    %v295 = vadd.f32 0.0, %v294
    %v296 = vpop.f32.mrb[0].mxu0
    %v297 = vadd.f32 0.0, %v296
    %298 = vmatprep.mubr.f32.mxu0 0.0
    %299 = vmatmul.mubr.f32.gmra.mrb[0].mxu0 %v29
    %v300 = vpop.f32.mrb[0].mxu0
    %v301 = vadd.f32 0.0, %v300
    %v302 = vpop.f32.mrb[0].mxu0
    %v303 = vadd.f32 0.0, %v302
    %304 = vmatprep.mubr.f32.mxu0 0.0
    %305 = vmatmul.mubr.f32.gmra.mrb[0].mxu0 %v30
    %v306 = vpop.f32.mrb[0].mxu0
    %v307 = vadd.f32 0.0, %v306
    %v308 = vpop.f32.mrb[0].mxu0
    %v309 = vadd.f32 0.0, %v308
    %310 = vmatprep.mubr.f32.mxu0 0.0
    %311 = vmatmul.mubr.f32.gmra.mrb[0].mxu0 %v31
    %v312 = vpop.f32.mrb[0].mxu0
    %v313 = vadd.f32 0.0, %v312
    %v314 = vpop.f32.mrb[0].mxu0
    %v315 = vadd.f32 0.0, %v314
    %316 = vmatprep.mubr.f32.mxu0 0.0
    %317 = vmatmul.mubr.f32.gmra.mrb[0].mxu0 %v32
    %v318 = vpop.f32.mrb[0].mxu0
    %v319 = vadd.f32 0.0, %v318
    %v320 = vpop.f32.mrb[0].mxu0
    %v321 = vadd.f32 0.0, %v320
    %322 = vdwg.mxu0
    %323 = vst [vmem:[%s2] sm:$0xff] %v164
    %324 = vst [vmem:[%s2 + $0x8] sm:$0xff] %v166
    %325 = vst [vmem:[%s2 + $0x10] sm:$0xff] %v277
    %326 = vst [vmem:[%s2 + $0x18] sm:$0xff] %v279
    %327 = vst [vmem:[%s2 + $0x20] sm:$0xff] %v170
    %328 = vst [vmem:[%s2 + $0x28] sm:$0xff] %v172
    %329 = vst [vmem:[%s2 + $0x30] sm:$0xff] %v283
    %330 = vst [vmem:[%s2 + $0x38] sm:$0xff] %v285
    %331 = vst [vmem:[%s2 + $0x40] sm:$0xff] %v176
    %332 = vst [vmem:[%s2 + $0x48] sm:$0xff] %v178
    %333 = vst [vmem:[%s2 + $0x50] sm:$0xff] %v289
    %334 = vst [vmem:[%s2 + $0x58] sm:$0xff] %v291
    %335 = vst [vmem:[%s2 + $0x60] sm:$0xff] %v182
    %336 = vst [vmem:[%s2 + $0x68] sm:$0xff] %v184
    %337 = vst [vmem:[%s2 + $0x70] sm:$0xff] %v295
    %338 = vst [vmem:[%s2 + $0x78] sm:$0xff] %v297
    %339 = vst [vmem:[%s2 + $0x80] sm:$0xff] %v188
    %340 = vst [vmem:[%s2 + $0x88] sm:$0xff] %v190
    %341 = vst [vmem:[%s2 + $0x90] sm:$0xff] %v301
    %342 = vst [vmem:[%s2 + $0x98] sm:$0xff] %v303
    %343 = vst [vmem:[%s2 + $0xa0] sm:$0xff] %v194
    %344 = vst [vmem:[%s2 + $0xa8] sm:$0xff] %v196
    %345 = vst [vmem:[%s2 + $0xb0] sm:$0xff] %v307
    %346 = vst [vmem:[%s2 + $0xb8] sm:$0xff] %v309
    %347 = vst [vmem:[%s2 + $0xc0] sm:$0xff] %v200
    %348 = vst [vmem:[%s2 + $0xc8] sm:$0xff] %v202
    %349 = vst [vmem:[%s2 + $0xd0] sm:$0xff] %v313
    %350 = vst [vmem:[%s2 + $0xd8] sm:$0xff] %v315
    %351 = vst [vmem:[%s2 + $0xe0] sm:$0xff] %v206
    %352 = vst [vmem:[%s2 + $0xe8] sm:$0xff] %v208
    %353 = vst [vmem:[%s2 + $0xf0] sm:$0xff] %v319
    %354 = vst [vmem:[%s2 + $0xf8] sm:$0xff] %v321
    // Predicated region
    $region14: #{my_rnn_base_forward.2} parent=1 // pred_check
      _
    $region15: #{my_rnn_base_forward.2} parent=1 // pred_check_branch
      %356 = sbr.rel (0) target = $region17
    $region16: #{my_rnn_base_forward.2} parent=1 // pred_region
      _
    $region17: #{my_rnn_base_forward.2} parent=1 // pred_fallthru
      _
    // Predicated region
    $region18: #{my_rnn_base_forward.2} parent=1 // pred_check
      _
    $region19: #{my_rnn_base_forward.2} parent=1 // pred_check_branch
      %358 = sbr.rel (0) target = $region21
    $region20: #{my_rnn_base_forward.2} parent=1 // pred_region
      _
    $region21: #{my_rnn_base_forward.2} parent=1 // pred_fallthru
      _
    %359 = vsyncpa [#allocation3], 1

// kernel: my_rnn_base_forward.3
$region0: #{my_rnn_base_forward.3}
  #allocation0 [shape = 'u32[]', space=smem, size = 0x4, offset = 0x4, fixed_abs, tag = 'smem constant byte address 0x4 - core index']
  #allocation1 [shape = 'u32[144,128]{1,0:T(1,128)}', space=vmem, size = 0x12000, scoped, tag = 'internal scratch']
  #allocation2 [shape = 'f32[128,512]{1,0:T(8,128)}', space=vmem, size = 0x40000, scoped, tag = 'scratch operand']
  #allocation3 [shape = 's32[1]{0}', space=sflag, size = 0x4, scoped, tag = 'scratch operand']
  #allocation4 [shape = 's32[]', space=sflag, size = 0x4, offset = 0, fixed_abs, tag = 'sflag constant byte address 0x0 - dummy sync flag']
  %s0 = inlined_call_operand.vmem [shape: f32[8,8,512], index: 0, kind: input, shape index: {}]
  %s1 = inlined_call_operand.vmem [shape: f32[1,512], index: 1, kind: input, shape index: {}]
  %s2 = inlined_call_operand.vmem [shape: f32[128,512], index: 2, kind: input, shape index: {}]
  %s3 = inlined_call_operand.vmem [shape: f32[8,8,128], index: 3, kind: output, shape index: {0}]
  %s4 = inlined_call_operand.vmem [shape: f32[8,128], index: 4, kind: output, shape index: {1}]
  %s5 = inlined_call_operand.vmem [shape: f32[8,128], index: 5, kind: output, shape index: {2}]
  %6 = xla_tuple %s3, %s4, %s5
  %s7 = sld [smem:[#allocation0]]
  $region72: #{my_rnn_base_forward.3} parent=0
    _
  %s9 = ssub.s32 1, %s7
  %s10 = scalar_select 0, %s9, %s7
  // Predicated region
  $region2: #{my_rnn_base_forward.3} parent=0 // pred_check
    _
  $region3: #{my_rnn_base_forward.3} parent=0 // pred_check_branch
    %12 = sbr.rel (0) target = $region5
  $region4: #{my_rnn_base_forward.3} parent=0 // pred_region
    _
  $region5: #{my_rnn_base_forward.3} parent=0 // pred_fallthru
    _
  // Predicated region
  $region6: #{my_rnn_base_forward.3} parent=0 // pred_check
    _
  $region7: #{my_rnn_base_forward.3} parent=0 // pred_check_branch
    %14 = sbr.rel (0) target = $region9
  $region8: #{my_rnn_base_forward.3} parent=0 // pred_region
    _
  $region9: #{my_rnn_base_forward.3} parent=0 // pred_fallthru
    _
  %p15 = scmp.eq.s32.totalorder 0, 0
  // Predicated region
  $region10: #{my_rnn_base_forward.3} parent=0 // pred_check
    %p16 = pneg %p15
  $region11: #{my_rnn_base_forward.3} parent=0 // pred_check_branch
    %18 = sbr.rel (%p16) target = $region13
  $region12: #{my_rnn_base_forward.3} parent=0 // pred_region
    %p20 = scmp.lt.u32.totalorder 512, 8
    %p21 = pneg %p20
    // Predicated region
    $region14: #{my_rnn_base_forward.3} parent=12 // pred_check
      _
    $region15: #{my_rnn_base_forward.3} parent=12 // pred_check_branch
      %23 = sbr.rel (%p20) target = $region17
    $region16: #{my_rnn_base_forward.3} parent=12 // pred_region
      %s38 = sand.u32 512, 7
      %p39 = scmp.eq.s32.totalorder %s38, 0
      // Predicated region
      $region29: #{my_rnn_base_forward.3} parent=16 // pred_check
        %p40 = pneg %p39
      $region30: #{my_rnn_base_forward.3} parent=16 // pred_check_branch
        %42 = sbr.rel (%p40) target = $region32
      $region31: #{my_rnn_base_forward.3} parent=16 // pred_region
        loop: start=0, step=1, limit=1
        $region33: #{my_rnn_base_forward.3} parent=31 // loop_pre_header
          _
        $region34: #{my_rnn_base_forward.3} parent=31 // loop_header
          %s44 = sphi 0, %s48
          %p45 = scmp.ge.s32.totalorder %s44, 1
          %s49 = sphi %s2, %s2
          %s50 = sphi [#allocation2], [#allocation2]
        $region35: #{my_rnn_base_forward.3} parent=31 // loop_header_branch
          %47 = sbr.rel (%p45) target = $region39
        $region36: #{my_rnn_base_forward.3} parent=31 // loop_body
          %v51 = vld [vmem:[%s49] sm:$0xff]
          %52 = vst [vmem:[%s50] sm:$0xff] %v51
          %v53 = vld [vmem:[%s49 + $0x8] sm:$0xff]
          %54 = vst [vmem:[%s50 + $0x8] sm:$0xff] %v53
          %v55 = vld [vmem:[%s49 + $0x10] sm:$0xff]
          %56 = vst [vmem:[%s50 + $0x10] sm:$0xff] %v55
          %v57 = vld [vmem:[%s49 + $0x18] sm:$0xff]
          %58 = vst [vmem:[%s50 + $0x18] sm:$0xff] %v57
          %v59 = vld [vmem:[%s49 + $0x20] sm:$0xff]
          %60 = vst [vmem:[%s50 + $0x20] sm:$0xff] %v59
          %v61 = vld [vmem:[%s49 + $0x28] sm:$0xff]
          %62 = vst [vmem:[%s50 + $0x28] sm:$0xff] %v61
          %v63 = vld [vmem:[%s49 + $0x30] sm:$0xff]
          %64 = vst [vmem:[%s50 + $0x30] sm:$0xff] %v63
          %v65 = vld [vmem:[%s49 + $0x38] sm:$0xff]
          %66 = vst [vmem:[%s50 + $0x38] sm:$0xff] %v65
          %v67 = vld [vmem:[%s49 + $0x40] sm:$0xff]
          %68 = vst [vmem:[%s50 + $0x40] sm:$0xff] %v67
          %v69 = vld [vmem:[%s49 + $0x48] sm:$0xff]
          %70 = vst [vmem:[%s50 + $0x48] sm:$0xff] %v69
          %v71 = vld [vmem:[%s49 + $0x50] sm:$0xff]
          %72 = vst [vmem:[%s50 + $0x50] sm:$0xff] %v71
          %v73 = vld [vmem:[%s49 + $0x58] sm:$0xff]
          %74 = vst [vmem:[%s50 + $0x58] sm:$0xff] %v73
          %v75 = vld [vmem:[%s49 + $0x60] sm:$0xff]
          %76 = vst [vmem:[%s50 + $0x60] sm:$0xff] %v75
          %v77 = vld [vmem:[%s49 + $0x68] sm:$0xff]
          %78 = vst [vmem:[%s50 + $0x68] sm:$0xff] %v77
          %v79 = vld [vmem:[%s49 + $0x70] sm:$0xff]
          %80 = vst [vmem:[%s50 + $0x70] sm:$0xff] %v79
          %v81 = vld [vmem:[%s49 + $0x78] sm:$0xff]
          %82 = vst [vmem:[%s50 + $0x78] sm:$0xff] %v81
          %v83 = vld [vmem:[%s49 + $0x80] sm:$0xff]
          %84 = vst [vmem:[%s50 + $0x80] sm:$0xff] %v83
          %v85 = vld [vmem:[%s49 + $0x88] sm:$0xff]
          %86 = vst [vmem:[%s50 + $0x88] sm:$0xff] %v85
          %v87 = vld [vmem:[%s49 + $0x90] sm:$0xff]
          %88 = vst [vmem:[%s50 + $0x90] sm:$0xff] %v87
          %v89 = vld [vmem:[%s49 + $0x98] sm:$0xff]
          %90 = vst [vmem:[%s50 + $0x98] sm:$0xff] %v89
          %v91 = vld [vmem:[%s49 + $0xa0] sm:$0xff]
          %92 = vst [vmem:[%s50 + $0xa0] sm:$0xff] %v91
          %v93 = vld [vmem:[%s49 + $0xa8] sm:$0xff]
          %94 = vst [vmem:[%s50 + $0xa8] sm:$0xff] %v93
          %v95 = vld [vmem:[%s49 + $0xb0] sm:$0xff]
          %96 = vst [vmem:[%s50 + $0xb0] sm:$0xff] %v95
          %v97 = vld [vmem:[%s49 + $0xb8] sm:$0xff]
          %98 = vst [vmem:[%s50 + $0xb8] sm:$0xff] %v97
          %v99 = vld [vmem:[%s49 + $0xc0] sm:$0xff]
          %100 = vst [vmem:[%s50 + $0xc0] sm:$0xff] %v99
          %v101 = vld [vmem:[%s49 + $0xc8] sm:$0xff]
          %102 = vst [vmem:[%s50 + $0xc8] sm:$0xff] %v101
          %v103 = vld [vmem:[%s49 + $0xd0] sm:$0xff]
          %104 = vst [vmem:[%s50 + $0xd0] sm:$0xff] %v103
          %v105 = vld [vmem:[%s49 + $0xd8] sm:$0xff]
          %106 = vst [vmem:[%s50 + $0xd8] sm:$0xff] %v105
          %v107 = vld [vmem:[%s49 + $0xe0] sm:$0xff]
          %108 = vst [vmem:[%s50 + $0xe0] sm:$0xff] %v107
          %v109 = vld [vmem:[%s49 + $0xe8] sm:$0xff]
          %110 = vst [vmem:[%s50 + $0xe8] sm:$0xff] %v109
          %v111 = vld [vmem:[%s49 + $0xf0] sm:$0xff]
          %112 = vst [vmem:[%s50 + $0xf0] sm:$0xff] %v111
          %v113 = vld [vmem:[%s49 + $0xf8] sm:$0xff]
          %114 = vst [vmem:[%s50 + $0xf8] sm:$0xff] %v113
          %v115 = vld [vmem:[%s49 + $0x100] sm:$0xff]
          %116 = vst [vmem:[%s50 + $0x100] sm:$0xff] %v115
          %v117 = vld [vmem:[%s49 + $0x108] sm:$0xff]
          %118 = vst [vmem:[%s50 + $0x108] sm:$0xff] %v117
          %v119 = vld [vmem:[%s49 + $0x110] sm:$0xff]
          %120 = vst [vmem:[%s50 + $0x110] sm:$0xff] %v119
          %v121 = vld [vmem:[%s49 + $0x118] sm:$0xff]
          %122 = vst [vmem:[%s50 + $0x118] sm:$0xff] %v121
          %v123 = vld [vmem:[%s49 + $0x120] sm:$0xff]
          %124 = vst [vmem:[%s50 + $0x120] sm:$0xff] %v123
          %v125 = vld [vmem:[%s49 + $0x128] sm:$0xff]
          %126 = vst [vmem:[%s50 + $0x128] sm:$0xff] %v125
          %v127 = vld [vmem:[%s49 + $0x130] sm:$0xff]
          %128 = vst [vmem:[%s50 + $0x130] sm:$0xff] %v127
          %v129 = vld [vmem:[%s49 + $0x138] sm:$0xff]
          %130 = vst [vmem:[%s50 + $0x138] sm:$0xff] %v129
          %v131 = vld [vmem:[%s49 + $0x140] sm:$0xff]
          %132 = vst [vmem:[%s50 + $0x140] sm:$0xff] %v131
          %v133 = vld [vmem:[%s49 + $0x148] sm:$0xff]
          %134 = vst [vmem:[%s50 + $0x148] sm:$0xff] %v133
          %v135 = vld [vmem:[%s49 + $0x150] sm:$0xff]
          %136 = vst [vmem:[%s50 + $0x150] sm:$0xff] %v135
          %v137 = vld [vmem:[%s49 + $0x158] sm:$0xff]
          %138 = vst [vmem:[%s50 + $0x158] sm:$0xff] %v137
          %v139 = vld [vmem:[%s49 + $0x160] sm:$0xff]
          %140 = vst [vmem:[%s50 + $0x160] sm:$0xff] %v139
          %v141 = vld [vmem:[%s49 + $0x168] sm:$0xff]
          %142 = vst [vmem:[%s50 + $0x168] sm:$0xff] %v141
          %v143 = vld [vmem:[%s49 + $0x170] sm:$0xff]
          %144 = vst [vmem:[%s50 + $0x170] sm:$0xff] %v143
          %v145 = vld [vmem:[%s49 + $0x178] sm:$0xff]
          %146 = vst [vmem:[%s50 + $0x178] sm:$0xff] %v145
          %v147 = vld [vmem:[%s49 + $0x180] sm:$0xff]
          %148 = vst [vmem:[%s50 + $0x180] sm:$0xff] %v147
          %v149 = vld [vmem:[%s49 + $0x188] sm:$0xff]
          %150 = vst [vmem:[%s50 + $0x188] sm:$0xff] %v149
          %v151 = vld [vmem:[%s49 + $0x190] sm:$0xff]
          %152 = vst [vmem:[%s50 + $0x190] sm:$0xff] %v151
          %v153 = vld [vmem:[%s49 + $0x198] sm:$0xff]
          %154 = vst [vmem:[%s50 + $0x198] sm:$0xff] %v153
          %v155 = vld [vmem:[%s49 + $0x1a0] sm:$0xff]
          %156 = vst [vmem:[%s50 + $0x1a0] sm:$0xff] %v155
          %v157 = vld [vmem:[%s49 + $0x1a8] sm:$0xff]
          %158 = vst [vmem:[%s50 + $0x1a8] sm:$0xff] %v157
          %v159 = vld [vmem:[%s49 + $0x1b0] sm:$0xff]
          %160 = vst [vmem:[%s50 + $0x1b0] sm:$0xff] %v159
          %v161 = vld [vmem:[%s49 + $0x1b8] sm:$0xff]
          %162 = vst [vmem:[%s50 + $0x1b8] sm:$0xff] %v161
          %v163 = vld [vmem:[%s49 + $0x1c0] sm:$0xff]
          %164 = vst [vmem:[%s50 + $0x1c0] sm:$0xff] %v163
          %v165 = vld [vmem:[%s49 + $0x1c8] sm:$0xff]
          %166 = vst [vmem:[%s50 + $0x1c8] sm:$0xff] %v165
          %v167 = vld [vmem:[%s49 + $0x1d0] sm:$0xff]
          %168 = vst [vmem:[%s50 + $0x1d0] sm:$0xff] %v167
          %v169 = vld [vmem:[%s49 + $0x1d8] sm:$0xff]
          %170 = vst [vmem:[%s50 + $0x1d8] sm:$0xff] %v169
          %v171 = vld [vmem:[%s49 + $0x1e0] sm:$0xff]
          %172 = vst [vmem:[%s50 + $0x1e0] sm:$0xff] %v171
          %v173 = vld [vmem:[%s49 + $0x1e8] sm:$0xff]
          %174 = vst [vmem:[%s50 + $0x1e8] sm:$0xff] %v173
          %v175 = vld [vmem:[%s49 + $0x1f0] sm:$0xff]
          %176 = vst [vmem:[%s50 + $0x1f0] sm:$0xff] %v175
          %v177 = vld [vmem:[%s49 + $0x1f8] sm:$0xff]
          %178 = vst [vmem:[%s50 + $0x1f8] sm:$0xff] %v177
        $region37: #{my_rnn_base_forward.3} parent=31 // loop_footer
          %s48 = sadd.s32 1, %s44
        $region38: #{my_rnn_base_forward.3} parent=31 // loop_footer_branch
          %43 = sbr.rel target = $region34
        $region39: #{my_rnn_base_forward.3} parent=31 // loop_exit
          _
      $region32: #{my_rnn_base_forward.3} parent=16 // pred_fallthru
        _
      %p179 = pneg %p39
      // Predicated region
      $region40: #{my_rnn_base_forward.3} parent=16 // pred_check
        _
      $region41: #{my_rnn_base_forward.3} parent=16 // pred_check_branch
        %181 = sbr.rel (%p39) target = $region43
      $region42: #{my_rnn_base_forward.3} parent=16 // pred_region
        %s182 = sand.u32 512, 7
      $region43: #{my_rnn_base_forward.3} parent=16 // pred_fallthru
        _
    $region17: #{my_rnn_base_forward.3} parent=12 // pred_fallthru
      _
    // Predicated region
    $region18: #{my_rnn_base_forward.3} parent=12 // pred_check
      %p24 = pneg %p20
    $region19: #{my_rnn_base_forward.3} parent=12 // pred_check_branch
      %26 = sbr.rel (%p24) target = $region21
    $region20: #{my_rnn_base_forward.3} parent=12 // pred_region
      %s27 = sshllo.u32 0, 512
      loop: start=0, step=1, limit=1
      $region22: #{my_rnn_base_forward.3} parent=20 // loop_pre_header
        _
      $region23: #{my_rnn_base_forward.3} parent=20 // loop_header
        %s29 = sphi 0, %s33
        %p30 = scmp.ge.s32.totalorder %s29, 1
        %s34 = sphi %s2, %s2
        %s35 = sphi [#allocation2], [#allocation2]
      $region24: #{my_rnn_base_forward.3} parent=20 // loop_header_branch
        %32 = sbr.rel (%p30) target = $region28
      $region25: #{my_rnn_base_forward.3} parent=20 // loop_body
        %v36 = vld [vmem:[%s34] sm:%s27]
        %37 = vst [vmem:[%s35] sm:%s27] %v36
      $region26: #{my_rnn_base_forward.3} parent=20 // loop_footer
        %s33 = sadd.s32 1, %s29
      $region27: #{my_rnn_base_forward.3} parent=20 // loop_footer_branch
        %28 = sbr.rel target = $region23
      $region28: #{my_rnn_base_forward.3} parent=20 // loop_exit
        _
    $region21: #{my_rnn_base_forward.3} parent=12 // pred_fallthru
      _
    // Predicated region
    $region44: #{my_rnn_base_forward.3} parent=12 // pred_check
      _
    $region45: #{my_rnn_base_forward.3} parent=12 // pred_check_branch
      %185 = sbr.rel (0) target = $region47
    $region46: #{my_rnn_base_forward.3} parent=12 // pred_region
      %186 = vsyncadd [#allocation3], 8192
    $region47: #{my_rnn_base_forward.3} parent=12 // pred_fallthru
      _
    %s187 = smul.u32 8, 16
    %s188 = smul.u32 %s187, 4
    %s189 = sshll.u32 %s188, 4
    %190 = dma.done [#allocation3], %s189
    %191 = vst [vmem:[%s4] sm:$0xff] 0.0
    %192 = vst [vmem:[%s5] sm:$0xff] 0.0
  $region13: #{my_rnn_base_forward.3} parent=0 // pred_fallthru
    _
  %v193 = vld [vmem:[%s1] sm:$0xf]
  %v194 = vld [vmem:[%s4] sm:$0xff]
  %v195 = vld [vmem:[%s5] sm:$0xff]
  %v196 = vld [vmem:[%s0] sm:$0xff]
  %v197 = vld [vmem:[%s0 + $0x8] sm:$0xff]
  %v198 = vld [vmem:[%s0 + $0x10] sm:$0xff]
  %v199 = vld [vmem:[%s0 + $0x18] sm:$0xff]
  %v200 = vld [vmem:[#allocation2] sm:$0xff]
  %v201 = vld [vmem:[#allocation2 + $0x8] sm:$0xff]
  %v202 = vld [vmem:[#allocation2 + $0x10] sm:$0xff]
  %v203 = vld [vmem:[#allocation2 + $0x18] sm:$0xff]
  %v204 = vld [vmem:[#allocation2 + $0x20] sm:$0xff]
  %v205 = vld [vmem:[#allocation2 + $0x28] sm:$0xff]
  %v206 = vld [vmem:[#allocation2 + $0x30] sm:$0xff]
  %v207 = vld [vmem:[#allocation2 + $0x38] sm:$0xff]
  %v208 = vld [vmem:[#allocation2 + $0x40] sm:$0xff]
  %v209 = vld [vmem:[#allocation2 + $0x48] sm:$0xff]
  %v210 = vld [vmem:[#allocation2 + $0x50] sm:$0xff]
  %v211 = vld [vmem:[#allocation2 + $0x58] sm:$0xff]
  %v212 = vld [vmem:[#allocation2 + $0x60] sm:$0xff]
  %v213 = vld [vmem:[#allocation2 + $0x68] sm:$0xff]
  %v214 = vld [vmem:[#allocation2 + $0x70] sm:$0xff]
  %v215 = vld [vmem:[#allocation2 + $0x78] sm:$0xff]
  %v216 = vld [vmem:[#allocation2 + $0x80] sm:$0xff]
  %v217 = vld [vmem:[#allocation2 + $0x88] sm:$0xff]
  %v218 = vld [vmem:[#allocation2 + $0x90] sm:$0xff]
  %v219 = vld [vmem:[#allocation2 + $0x98] sm:$0xff]
  %v220 = vld [vmem:[#allocation2 + $0xa0] sm:$0xff]
  %v221 = vld [vmem:[#allocation2 + $0xa8] sm:$0xff]
  %v222 = vld [vmem:[#allocation2 + $0xb0] sm:$0xff]
  %v223 = vld [vmem:[#allocation2 + $0xb8] sm:$0xff]
  %v224 = vld [vmem:[#allocation2 + $0xc0] sm:$0xff]
  %v225 = vld [vmem:[#allocation2 + $0xc8] sm:$0xff]
  %v226 = vld [vmem:[#allocation2 + $0xd0] sm:$0xff]
  %v227 = vld [vmem:[#allocation2 + $0xd8] sm:$0xff]
  %v228 = vld [vmem:[#allocation2 + $0xe0] sm:$0xff]
  %v229 = vld [vmem:[#allocation2 + $0xe8] sm:$0xff]
  %v230 = vld [vmem:[#allocation2 + $0xf0] sm:$0xff]
  %v231 = vld [vmem:[#allocation2 + $0xf8] sm:$0xff]
  %v232 = vld [vmem:[#allocation2 + $0x100] sm:$0xff]
  %v233 = vld [vmem:[#allocation2 + $0x108] sm:$0xff]
  %v234 = vld [vmem:[#allocation2 + $0x110] sm:$0xff]
  %v235 = vld [vmem:[#allocation2 + $0x118] sm:$0xff]
  %v236 = vld [vmem:[#allocation2 + $0x120] sm:$0xff]
  %v237 = vld [vmem:[#allocation2 + $0x128] sm:$0xff]
  %v238 = vld [vmem:[#allocation2 + $0x130] sm:$0xff]
  %v239 = vld [vmem:[#allocation2 + $0x138] sm:$0xff]
  %v240 = vld [vmem:[#allocation2 + $0x140] sm:$0xff]
  %v241 = vld [vmem:[#allocation2 + $0x148] sm:$0xff]
  %v242 = vld [vmem:[#allocation2 + $0x150] sm:$0xff]
  %v243 = vld [vmem:[#allocation2 + $0x158] sm:$0xff]
  %v244 = vld [vmem:[#allocation2 + $0x160] sm:$0xff]
  %v245 = vld [vmem:[#allocation2 + $0x168] sm:$0xff]
  %v246 = vld [vmem:[#allocation2 + $0x170] sm:$0xff]
  %v247 = vld [vmem:[#allocation2 + $0x178] sm:$0xff]
  %v248 = vld [vmem:[#allocation2 + $0x180] sm:$0xff]
  %v249 = vld [vmem:[#allocation2 + $0x188] sm:$0xff]
  %v250 = vld [vmem:[#allocation2 + $0x190] sm:$0xff]
  %v251 = vld [vmem:[#allocation2 + $0x198] sm:$0xff]
  %v252 = vld [vmem:[#allocation2 + $0x1a0] sm:$0xff]
  %v253 = vld [vmem:[#allocation2 + $0x1a8] sm:$0xff]
  %v254 = vld [vmem:[#allocation2 + $0x1b0] sm:$0xff]
  %v255 = vld [vmem:[#allocation2 + $0x1b8] sm:$0xff]
  %v256 = vld [vmem:[#allocation2 + $0x1c0] sm:$0xff]
  %v257 = vld [vmem:[#allocation2 + $0x1c8] sm:$0xff]
  %v258 = vld [vmem:[#allocation2 + $0x1d0] sm:$0xff]
  %v259 = vld [vmem:[#allocation2 + $0x1d8] sm:$0xff]
  %v260 = vld [vmem:[#allocation2 + $0x1e0] sm:$0xff]
  %v261 = vld [vmem:[#allocation2 + $0x1e8] sm:$0xff]
  %v262 = vld [vmem:[#allocation2 + $0x1f0] sm:$0xff]
  %v263 = vld [vmem:[#allocation2 + $0x1f8] sm:$0xff]
  %264 = vmatprep.subr.mxu0 %v201
  %265 = vmatpush1.msra.mxu0 %v200
  %266 = vmatprep.subr.mxu0 %v205
  %267 = vmatpush1.msra.mxu0 %v204
  %268 = vmatprep.subr.mxu0 %v209
  %269 = vmatpush1.msra.mxu0 %v208
  %270 = vmatprep.subr.mxu0 %v213
  %271 = vmatpush1.msra.mxu0 %v212
  %272 = vmatprep.subr.mxu0 %v217
  %273 = vmatpush1.msra.mxu0 %v216
  %274 = vmatprep.subr.mxu0 %v221
  %275 = vmatpush1.msra.mxu0 %v220
  %276 = vmatprep.subr.mxu0 %v225
  %277 = vmatpush1.msra.mxu0 %v224
  %278 = vmatprep.subr.mxu0 %v229
  %279 = vmatpush1.msra.mxu0 %v228
  %280 = vmatprep.subr.mxu0 %v233
  %281 = vmatpush1.msra.mxu0 %v232
  %282 = vmatprep.subr.mxu0 %v237
  %283 = vmatpush1.msra.mxu0 %v236
  %284 = vmatprep.subr.mxu0 %v241
  %285 = vmatpush1.msra.mxu0 %v240
  %286 = vmatprep.subr.mxu0 %v245
  %287 = vmatpush1.msra.mxu0 %v244
  %288 = vmatprep.subr.mxu0 %v249
  %289 = vmatpush1.msra.mxu0 %v248
  %290 = vmatprep.subr.mxu0 %v253
  %291 = vmatpush1.msra.mxu0 %v252
  %292 = vmatprep.subr.mxu0 %v257
  %293 = vmatpush1.msra.mxu0 %v256
  %294 = vmatprep.subr.mxu0 %v261
  %295 = vmatpush1.msra.mxu0 %v260
  %296 = vmatprep.subr.mxu0 0.0
  %297 = vmatpush1.msra.mxu0 0.0
  %298 = vmatprep.subr.mxu0 0.0
  %299 = vmatpush1.msra.mxu0 0.0
  %300 = vmatprep.subr.mxu0 0.0
  %301 = vmatpush1.msra.mxu0 0.0
  %302 = vmatprep.subr.mxu0 0.0
  %303 = vmatpush1.msra.mxu0 0.0
  %304 = vmatprep.subr.mxu0 0.0
  %305 = vmatpush1.msra.mxu0 0.0
  %306 = vmatprep.subr.mxu0 0.0
  %307 = vmatpush1.msra.mxu0 0.0
  %308 = vmatprep.subr.mxu0 0.0
  %309 = vmatpush1.msra.mxu0 0.0
  %310 = vmatprep.subr.mxu0 0.0
  %311 = vmatpush1.msra.mxu0 0.0
  %312 = vmatprep.subr.mxu0 0.0
  %313 = vmatpush1.msra.mxu0 0.0
  %314 = vmatprep.subr.mxu0 0.0
  %315 = vmatpush1.msra.mxu0 0.0
  %316 = vmatprep.subr.mxu0 0.0
  %317 = vmatpush1.msra.mxu0 0.0
  %318 = vmatprep.subr.mxu0 0.0
  %319 = vmatpush1.msra.mxu0 0.0
  %320 = vmatprep.subr.mxu0 0.0
  %321 = vmatpush1.msra.mxu0 0.0
  %322 = vmatprep.subr.mxu0 0.0
  %323 = vmatpush1.msra.mxu0 0.0
  %324 = vmatprep.subr.mxu0 0.0
  %325 = vmatpush1.msra.mxu0 0.0
  %326 = vmatprep.subr.mxu0 0.0
  %327 = vmatpush1.msra.mxu0 0.0
  %328 = vmatprep.mubr.f32.mxu0 0.0
  %329 = vmatmul.mubr.f32.gmra.mrb[0].mxu0 %v194
  %v330 = vpop.f32.mrb[0].mxu0
  %v331 = vadd.f32 0.0, %v330
  %v332 = vpop.f32.mrb[0].mxu0
  %v333 = vadd.f32 0.0, %v332
  %334 = vdwg.mxu0
  %335 = vmatprep.subr.mxu0 %v203
  %336 = vmatpush1.msra.mxu0 %v202
  %337 = vmatprep.subr.mxu0 %v207
  %338 = vmatpush1.msra.mxu0 %v206
  %339 = vmatprep.subr.mxu0 %v211
  %340 = vmatpush1.msra.mxu0 %v210
  %341 = vmatprep.subr.mxu0 %v215
  %342 = vmatpush1.msra.mxu0 %v214
  %343 = vmatprep.subr.mxu0 %v219
  %344 = vmatpush1.msra.mxu0 %v218
  %345 = vmatprep.subr.mxu0 %v223
  %346 = vmatpush1.msra.mxu0 %v222
  %347 = vmatprep.subr.mxu0 %v227
  %348 = vmatpush1.msra.mxu0 %v226
  %349 = vmatprep.subr.mxu0 %v231
  %350 = vmatpush1.msra.mxu0 %v230
  %351 = vmatprep.subr.mxu0 %v235
  %352 = vmatpush1.msra.mxu0 %v234
  %353 = vmatprep.subr.mxu0 %v239
  %354 = vmatpush1.msra.mxu0 %v238
  %355 = vmatprep.subr.mxu0 %v243
  %356 = vmatpush1.msra.mxu0 %v242
  %357 = vmatprep.subr.mxu0 %v247
  %358 = vmatpush1.msra.mxu0 %v246
  %359 = vmatprep.subr.mxu0 %v251
  %360 = vmatpush1.msra.mxu0 %v250
  %361 = vmatprep.subr.mxu0 %v255
  %362 = vmatpush1.msra.mxu0 %v254
  %363 = vmatprep.subr.mxu0 %v259
  %364 = vmatpush1.msra.mxu0 %v258
  %365 = vmatprep.subr.mxu0 %v263
  %366 = vmatpush1.msra.mxu0 %v262
  %367 = vmatprep.subr.mxu0 0.0
  %368 = vmatpush1.msra.mxu0 0.0
  %369 = vmatprep.subr.mxu0 0.0
  %370 = vmatpush1.msra.mxu0 0.0
  %371 = vmatprep.subr.mxu0 0.0
  %372 = vmatpush1.msra.mxu0 0.0
  %373 = vmatprep.subr.mxu0 0.0
  %374 = vmatpush1.msra.mxu0 0.0
  %375 = vmatprep.subr.mxu0 0.0
  %376 = vmatpush1.msra.mxu0 0.0
  %377 = vmatprep.subr.mxu0 0.0
  %378 = vmatpush1.msra.mxu0 0.0
  %379 = vmatprep.subr.mxu0 0.0
  %380 = vmatpush1.msra.mxu0 0.0
  %381 = vmatprep.subr.mxu0 0.0
  %382 = vmatpush1.msra.mxu0 0.0
  %383 = vmatprep.subr.mxu0 0.0
  %384 = vmatpush1.msra.mxu0 0.0
  %385 = vmatprep.subr.mxu0 0.0
  %386 = vmatpush1.msra.mxu0 0.0
  %387 = vmatprep.subr.mxu0 0.0
  %388 = vmatpush1.msra.mxu0 0.0
  %389 = vmatprep.subr.mxu0 0.0
  %390 = vmatpush1.msra.mxu0 0.0
  %391 = vmatprep.subr.mxu0 0.0
  %392 = vmatpush1.msra.mxu0 0.0
  %393 = vmatprep.subr.mxu0 0.0
  %394 = vmatpush1.msra.mxu0 0.0
  %395 = vmatprep.subr.mxu0 0.0
  %396 = vmatpush1.msra.mxu0 0.0
  %397 = vmatprep.subr.mxu0 0.0
  %398 = vmatpush1.msra.mxu0 0.0
  %399 = vmatprep.mubr.f32.mxu0 0.0
  %400 = vmatmul.mubr.f32.gmra.mrb[0].mxu0 %v194
  %v401 = vpop.f32.mrb[0].mxu0
  %v402 = vadd.f32 0.0, %v401
  %v403 = vpop.f32.mrb[0].mxu0
  %v404 = vadd.f32 0.0, %v403
  %405 = vdwg.mxu0
  %v406 = vadd.f32 %v196, %v331
  %v407 = vadd.f32 %v197, %v333
  %v408 = vadd.f32 %v198, %v402
  %v409 = vadd.f32 %v199, %v404
  %v411 = vlaneseq
  %v412 = vshrl.u32 %v411, 7
  %v413 = vsub.s32 0, %v412
  %v414 = vrot.slane %v193, %v413
  %v415 = vlaneseq
  %v416 = vshrl.u32 %v415, 7
  %v417 = vsub.s32 1, %v416
  %v418 = vrot.slane %v193, %v417
  %v419 = vlaneseq
  %v420 = vshrl.u32 %v419, 7
  %v421 = vsub.s32 2, %v420
  %v422 = vrot.slane %v193, %v421
  %v423 = vlaneseq
  %v424 = vshrl.u32 %v423, 7
  %v425 = vsub.s32 3, %v424
  %v426 = vrot.slane %v193, %v425
  %v431 = vadd.f32 %v406, %v414
  %v432 = vadd.f32 %v407, %v418
  %v433 = vadd.f32 %v408, %v422
  %v434 = vadd.f32 %v409, %v426
  %v435 = vxor.u32 %v431, 2147483648
  %v436 = vmul.f32 %v435, 1.442695
  %v437 = vpow.pop %v436
  %v438 = vadd.f32 %v437, 1.0
  %v439 = vrcp.pop %v438
  %v440 = vmul.f32 1.0, %v439
  %v441 = vxor.u32 %v432, 2147483648
  %v442 = vmul.f32 %v441, 1.442695
  %v443 = vpow.pop %v442
  %v444 = vadd.f32 %v443, 1.0
  %v445 = vrcp.pop %v444
  %v446 = vmul.f32 1.0, %v445
  %v447 = vtanh.pop %v433
  %v448 = vxor.u32 %v434, 2147483648
  %v449 = vmul.f32 %v448, 1.442695
  %v450 = vpow.pop %v449
  %v451 = vadd.f32 %v450, 1.0
  %v452 = vrcp.pop %v451
  %v453 = vmul.f32 1.0, %v452
  %v454 = vmul.f32 %v446, %v195
  %v455 = vmul.f32 %v440, %v447
  %v456 = vadd.f32 %v454, %v455
  %v457 = vtanh.pop %v456
  %v458 = vmul.f32 %v453, %v457
  %459 = vst [vmem:[%s3] sm:$0xff] %v458
  %s460 = scalar_lea.vmem %s0, 32
  %v461 = vld [vmem:[%s460] sm:$0xff]
  %v462 = vld [vmem:[%s460 + $0x8] sm:$0xff]
  %v463 = vld [vmem:[%s460 + $0x10] sm:$0xff]
  %v464 = vld [vmem:[%s460 + $0x18] sm:$0xff]
  %v465 = vld [vmem:[#allocation2] sm:$0xff]
  %v466 = vld [vmem:[#allocation2 + $0x8] sm:$0xff]
  %v467 = vld [vmem:[#allocation2 + $0x10] sm:$0xff]
  %v468 = vld [vmem:[#allocation2 + $0x18] sm:$0xff]
  %v469 = vld [vmem:[#allocation2 + $0x20] sm:$0xff]
  %v470 = vld [vmem:[#allocation2 + $0x28] sm:$0xff]
  %v471 = vld [vmem:[#allocation2 + $0x30] sm:$0xff]
  %v472 = vld [vmem:[#allocation2 + $0x38] sm:$0xff]
  %v473 = vld [vmem:[#allocation2 + $0x40] sm:$0xff]
  %v474 = vld [vmem:[#allocation2 + $0x48] sm:$0xff]
  %v475 = vld [vmem:[#allocation2 + $0x50] sm:$0xff]
  %v476 = vld [vmem:[#allocation2 + $0x58] sm:$0xff]
  %v477 = vld [vmem:[#allocation2 + $0x60] sm:$0xff]
  %v478 = vld [vmem:[#allocation2 + $0x68] sm:$0xff]
  %v479 = vld [vmem:[#allocation2 + $0x70] sm:$0xff]
  %v480 = vld [vmem:[#allocation2 + $0x78] sm:$0xff]
  %v481 = vld [vmem:[#allocation2 + $0x80] sm:$0xff]
  %v482 = vld [vmem:[#allocation2 + $0x88] sm:$0xff]
  %v483 = vld [vmem:[#allocation2 + $0x90] sm:$0xff]
  %v484 = vld [vmem:[#allocation2 + $0x98] sm:$0xff]
  %v485 = vld [vmem:[#allocation2 + $0xa0] sm:$0xff]
  %v486 = vld [vmem:[#allocation2 + $0xa8] sm:$0xff]
  %v487 = vld [vmem:[#allocation2 + $0xb0] sm:$0xff]
  %v488 = vld [vmem:[#allocation2 + $0xb8] sm:$0xff]
  %v489 = vld [vmem:[#allocation2 + $0xc0] sm:$0xff]
  %v490 = vld [vmem:[#allocation2 + $0xc8] sm:$0xff]
  %v491 = vld [vmem:[#allocation2 + $0xd0] sm:$0xff]
  %v492 = vld [vmem:[#allocation2 + $0xd8] sm:$0xff]
  %v493 = vld [vmem:[#allocation2 + $0xe0] sm:$0xff]
  %v494 = vld [vmem:[#allocation2 + $0xe8] sm:$0xff]
  %v495 = vld [vmem:[#allocation2 + $0xf0] sm:$0xff]
  %v496 = vld [vmem:[#allocation2 + $0xf8] sm:$0xff]
  %v497 = vld [vmem:[#allocation2 + $0x100] sm:$0xff]
  %v498 = vld [vmem:[#allocation2 + $0x108] sm:$0xff]
  %v499 = vld [vmem:[#allocation2 + $0x110] sm:$0xff]
  %v500 = vld [vmem:[#allocation2 + $0x118] sm:$0xff]
  %v501 = vld [vmem:[#allocation2 + $0x120] sm:$0xff]
  %v502 = vld [vmem:[#allocation2 + $0x128] sm:$0xff]
  %v503 = vld [vmem:[#allocation2 + $0x130] sm:$0xff]
  %v504 = vld [vmem:[#allocation2 + $0x138] sm:$0xff]
  %v505 = vld [vmem:[#allocation2 + $0x140] sm:$0xff]
  %v506 = vld [vmem:[#allocation2 + $0x148] sm:$0xff]
  %v507 = vld [vmem:[#allocation2 + $0x150] sm:$0xff]
  %v508 = vld [vmem:[#allocation2 + $0x158] sm:$0xff]
  %v509 = vld [vmem:[#allocation2 + $0x160] sm:$0xff]
  %v510 = vld [vmem:[#allocation2 + $0x168] sm:$0xff]
  %v511 = vld [vmem:[#allocation2 + $0x170] sm:$0xff]
  %v512 = vld [vmem:[#allocation2 + $0x178] sm:$0xff]
  %v513 = vld [vmem:[#allocation2 + $0x180] sm:$0xff]
  %v514 = vld [vmem:[#allocation2 + $0x188] sm:$0xff]
  %v515 = vld [vmem:[#allocation2 + $0x190] sm:$0xff]
  %v516 = vld [vmem:[#allocation2 + $0x198] sm:$0xff]
  %v517 = vld [vmem:[#allocation2 + $0x1a0] sm:$0xff]
  %v518 = vld [vmem:[#allocation2 + $0x1a8] sm:$0xff]
  %v519 = vld [vmem:[#allocation2 + $0x1b0] sm:$0xff]
  %v520 = vld [vmem:[#allocation2 + $0x1b8] sm:$0xff]
  %v521 = vld [vmem:[#allocation2 + $0x1c0] sm:$0xff]
  %v522 = vld [vmem:[#allocation2 + $0x1c8] sm:$0xff]
  %v523 = vld [vmem:[#allocation2 + $0x1d0] sm:$0xff]
  %v524 = vld [vmem:[#allocation2 + $0x1d8] sm:$0xff]
  %v525 = vld [vmem:[#allocation2 + $0x1e0] sm:$0xff]
  %v526 = vld [vmem:[#allocation2 + $0x1e8] sm:$0xff]
  %v527 = vld [vmem:[#allocation2 + $0x1f0] sm:$0xff]
  %v528 = vld [vmem:[#allocation2 + $0x1f8] sm:$0xff]
  %529 = vmatprep.subr.mxu0 %v466
  %530 = vmatpush1.msra.mxu0 %v465
  %531 = vmatprep.subr.mxu0 %v470
  %532 = vmatpush1.msra.mxu0 %v469
  %533 = vmatprep.subr.mxu0 %v474
  %534 = vmatpush1.msra.mxu0 %v473
  %535 = vmatprep.subr.mxu0 %v478
  %536 = vmatpush1.msra.mxu0 %v477
  %537 = vmatprep.subr.mxu0 %v482
  %538 = vmatpush1.msra.mxu0 %v481
  %539 = vmatprep.subr.mxu0 %v486
  %540 = vmatpush1.msra.mxu0 %v485
  %541 = vmatprep.subr.mxu0 %v490
  %542 = vmatpush1.msra.mxu0 %v489
  %543 = vmatprep.subr.mxu0 %v494
  %544 = vmatpush1.msra.mxu0 %v493
  %545 = vmatprep.subr.mxu0 %v498
  %546 = vmatpush1.msra.mxu0 %v497
  %547 = vmatprep.subr.mxu0 %v502
  %548 = vmatpush1.msra.mxu0 %v501
  %549 = vmatprep.subr.mxu0 %v506
  %550 = vmatpush1.msra.mxu0 %v505
  %551 = vmatprep.subr.mxu0 %v510
  %552 = vmatpush1.msra.mxu0 %v509
  %553 = vmatprep.subr.mxu0 %v514
  %554 = vmatpush1.msra.mxu0 %v513
  %555 = vmatprep.subr.mxu0 %v518
  %556 = vmatpush1.msra.mxu0 %v517
  %557 = vmatprep.subr.mxu0 %v522
  %558 = vmatpush1.msra.mxu0 %v521
  %559 = vmatprep.subr.mxu0 %v526
  %560 = vmatpush1.msra.mxu0 %v525
  %561 = vmatprep.subr.mxu0 0.0
  %562 = vmatpush1.msra.mxu0 0.0
  %563 = vmatprep.subr.mxu0 0.0
  %564 = vmatpush1.msra.mxu0 0.0
  %565 = vmatprep.subr.mxu0 0.0
  %566 = vmatpush1.msra.mxu0 0.0
  %567 = vmatprep.subr.mxu0 0.0
  %568 = vmatpush1.msra.mxu0 0.0
  %569 = vmatprep.subr.mxu0 0.0
  %570 = vmatpush1.msra.mxu0 0.0
  %571 = vmatprep.subr.mxu0 0.0
  %572 = vmatpush1.msra.mxu0 0.0
  %573 = vmatprep.subr.mxu0 0.0
  %574 = vmatpush1.msra.mxu0 0.0
  %575 = vmatprep.subr.mxu0 0.0
  %576 = vmatpush1.msra.mxu0 0.0
  %577 = vmatprep.subr.mxu0 0.0
  %578 = vmatpush1.msra.mxu0 0.0
  %579 = vmatprep.subr.mxu0 0.0
  %580 = vmatpush1.msra.mxu0 0.0
  %581 = vmatprep.subr.mxu0 0.0
  %582 = vmatpush1.msra.mxu0 0.0
  %583 = vmatprep.subr.mxu0 0.0
  %584 = vmatpush1.msra.mxu0 0.0
  %585 = vmatprep.subr.mxu0 0.0
  %586 = vmatpush1.msra.mxu0 0.0
  %587 = vmatprep.subr.mxu0 0.0
  %588 = vmatpush1.msra.mxu0 0.0
  %589 = vmatprep.subr.mxu0 0.0
  %590 = vmatpush1.msra.mxu0 0.0
  %591 = vmatprep.subr.mxu0 0.0
  %592 = vmatpush1.msra.mxu0 0.0
  %593 = vmatprep.mubr.f32.mxu0 0.0
  %594 = vmatmul.mubr.f32.gmra.mrb[0].mxu0 %v458
  %v595 = vpop.f32.mrb[0].mxu0
  %v596 = vadd.f32 0.0, %v595
  %v597 = vpop.f32.mrb[0].mxu0
  %v598 = vadd.f32 0.0, %v597
  %599 = vdwg.mxu0
  %600 = vmatprep.subr.mxu0 %v468
  %601 = vmatpush1.msra.mxu0 %v467
  %602 = vmatprep.subr.mxu0 %v472
  %603 = vmatpush1.msra.mxu0 %v471
  %604 = vmatprep.subr.mxu0 %v476
  %605 = vmatpush1.msra.mxu0 %v475
  %606 = vmatprep.subr.mxu0 %v480
  %607 = vmatpush1.msra.mxu0 %v479
  %608 = vmatprep.subr.mxu0 %v484
  %609 = vmatpush1.msra.mxu0 %v483
  %610 = vmatprep.subr.mxu0 %v488
  %611 = vmatpush1.msra.mxu0 %v487
  %612 = vmatprep.subr.mxu0 %v492
  %613 = vmatpush1.msra.mxu0 %v491
  %614 = vmatprep.subr.mxu0 %v496
  %615 = vmatpush1.msra.mxu0 %v495
  %616 = vmatprep.subr.mxu0 %v500
  %617 = vmatpush1.msra.mxu0 %v499
  %618 = vmatprep.subr.mxu0 %v504
  %619 = vmatpush1.msra.mxu0 %v503
  %620 = vmatprep.subr.mxu0 %v508
  %621 = vmatpush1.msra.mxu0 %v507
  %622 = vmatprep.subr.mxu0 %v512
  %623 = vmatpush1.msra.mxu0 %v511
  %624 = vmatprep.subr.mxu0 %v516
  %625 = vmatpush1.msra.mxu0 %v515
  %626 = vmatprep.subr.mxu0 %v520
  %627 = vmatpush1.msra.mxu0 %v519
  %628 = vmatprep.subr.mxu0 %v524
  %629 = vmatpush1.msra.mxu0 %v523
  %630 = vmatprep.subr.mxu0 %v528
  %631 = vmatpush1.msra.mxu0 %v527
  %632 = vmatprep.subr.mxu0 0.0
  %633 = vmatpush1.msra.mxu0 0.0
  %634 = vmatprep.subr.mxu0 0.0
  %635 = vmatpush1.msra.mxu0 0.0
  %636 = vmatprep.subr.mxu0 0.0
  %637 = vmatpush1.msra.mxu0 0.0
  %638 = vmatprep.subr.mxu0 0.0
  %639 = vmatpush1.msra.mxu0 0.0
  %640 = vmatprep.subr.mxu0 0.0
  %641 = vmatpush1.msra.mxu0 0.0
  %642 = vmatprep.subr.mxu0 0.0
  %643 = vmatpush1.msra.mxu0 0.0
  %644 = vmatprep.subr.mxu0 0.0
  %645 = vmatpush1.msra.mxu0 0.0
  %646 = vmatprep.subr.mxu0 0.0
  %647 = vmatpush1.msra.mxu0 0.0
  %648 = vmatprep.subr.mxu0 0.0
  %649 = vmatpush1.msra.mxu0 0.0
  %650 = vmatprep.subr.mxu0 0.0
  %651 = vmatpush1.msra.mxu0 0.0
  %652 = vmatprep.subr.mxu0 0.0
  %653 = vmatpush1.msra.mxu0 0.0
  %654 = vmatprep.subr.mxu0 0.0
  %655 = vmatpush1.msra.mxu0 0.0
  %656 = vmatprep.subr.mxu0 0.0
  %657 = vmatpush1.msra.mxu0 0.0
  %658 = vmatprep.subr.mxu0 0.0
  %659 = vmatpush1.msra.mxu0 0.0
  %660 = vmatprep.subr.mxu0 0.0
  %661 = vmatpush1.msra.mxu0 0.0
  %662 = vmatprep.subr.mxu0 0.0
  %663 = vmatpush1.msra.mxu0 0.0
  %664 = vmatprep.mubr.f32.mxu0 0.0
  %665 = vmatmul.mubr.f32.gmra.mrb[0].mxu0 %v458
  %v666 = vpop.f32.mrb[0].mxu0
  %v667 = vadd.f32 0.0, %v666
  %v668 = vpop.f32.mrb[0].mxu0
  %v669 = vadd.f32 0.0, %v668
  %670 = vdwg.mxu0
  %v671 = vadd.f32 %v461, %v596
  %v672 = vadd.f32 %v462, %v598
  %v673 = vadd.f32 %v463, %v667
  %v674 = vadd.f32 %v464, %v669
  %v675 = vadd.f32 %v671, %v414
  %v676 = vadd.f32 %v672, %v418
  %v677 = vadd.f32 %v673, %v422
  %v678 = vadd.f32 %v674, %v426
  %v679 = vxor.u32 %v675, 2147483648
  %v680 = vmul.f32 %v679, 1.442695
  %v681 = vpow.pop %v680
  %v682 = vadd.f32 %v681, 1.0
  %v683 = vrcp.pop %v682
  %v684 = vmul.f32 1.0, %v683
  %v685 = vxor.u32 %v676, 2147483648
  %v686 = vmul.f32 %v685, 1.442695
  %v687 = vpow.pop %v686
  %v688 = vadd.f32 %v687, 1.0
  %v689 = vrcp.pop %v688
  %v690 = vmul.f32 1.0, %v689
  %v691 = vtanh.pop %v677
  %v692 = vxor.u32 %v678, 2147483648
  %v693 = vmul.f32 %v692, 1.442695
  %v694 = vpow.pop %v693
  %v695 = vadd.f32 %v694, 1.0
  %v696 = vrcp.pop %v695
  %v697 = vmul.f32 1.0, %v696
  %v698 = vmul.f32 %v690, %v456
  %v699 = vmul.f32 %v684, %v691
  %v700 = vadd.f32 %v698, %v699
  %v701 = vtanh.pop %v700
  %v702 = vmul.f32 %v697, %v701
  %s703 = scalar_lea.vmem %s3, 8
  %704 = vst [vmem:[%s703] sm:$0xff] %v702
  %s705 = scalar_lea.vmem %s0, 64
  %v706 = vld [vmem:[%s705] sm:$0xff]
  %v707 = vld [vmem:[%s705 + $0x8] sm:$0xff]
  %v708 = vld [vmem:[%s705 + $0x10] sm:$0xff]
  %v709 = vld [vmem:[%s705 + $0x18] sm:$0xff]
  %v710 = vld [vmem:[#allocation2] sm:$0xff]
  %v711 = vld [vmem:[#allocation2 + $0x8] sm:$0xff]
  %v712 = vld [vmem:[#allocation2 + $0x10] sm:$0xff]
  %v713 = vld [vmem:[#allocation2 + $0x18] sm:$0xff]
  %v714 = vld [vmem:[#allocation2 + $0x20] sm:$0xff]
  %v715 = vld [vmem:[#allocation2 + $0x28] sm:$0xff]
  %v716 = vld [vmem:[#allocation2 + $0x30] sm:$0xff]
  %v717 = vld [vmem:[#allocation2 + $0x38] sm:$0xff]
  %v718 = vld [vmem:[#allocation2 + $0x40] sm:$0xff]
  %v719 = vld [vmem:[#allocation2 + $0x48] sm:$0xff]
  %v720 = vld [vmem:[#allocation2 + $0x50] sm:$0xff]
  %v721 = vld [vmem:[#allocation2 + $0x58] sm:$0xff]
  %v722 = vld [vmem:[#allocation2 + $0x60] sm:$0xff]
  %v723 = vld [vmem:[#allocation2 + $0x68] sm:$0xff]
  %v724 = vld [vmem:[#allocation2 + $0x70] sm:$0xff]
  %v725 = vld [vmem:[#allocation2 + $0x78] sm:$0xff]
  %v726 = vld [vmem:[#allocation2 + $0x80] sm:$0xff]
  %v727 = vld [vmem:[#allocation2 + $0x88] sm:$0xff]
  %v728 = vld [vmem:[#allocation2 + $0x90] sm:$0xff]
  %v729 = vld [vmem:[#allocation2 + $0x98] sm:$0xff]
  %v730 = vld [vmem:[#allocation2 + $0xa0] sm:$0xff]
  %v731 = vld [vmem:[#allocation2 + $0xa8] sm:$0xff]
  %v732 = vld [vmem:[#allocation2 + $0xb0] sm:$0xff]
  %v733 = vld [vmem:[#allocation2 + $0xb8] sm:$0xff]
  %v734 = vld [vmem:[#allocation2 + $0xc0] sm:$0xff]
  %v735 = vld [vmem:[#allocation2 + $0xc8] sm:$0xff]
  %v736 = vld [vmem:[#allocation2 + $0xd0] sm:$0xff]
  %v737 = vld [vmem:[#allocation2 + $0xd8] sm:$0xff]
  %v738 = vld [vmem:[#allocation2 + $0xe0] sm:$0xff]
  %v739 = vld [vmem:[#allocation2 + $0xe8] sm:$0xff]
  %v740 = vld [vmem:[#allocation2 + $0xf0] sm:$0xff]
  %v741 = vld [vmem:[#allocation2 + $0xf8] sm:$0xff]
  %v742 = vld [vmem:[#allocation2 + $0x100] sm:$0xff]
  %v743 = vld [vmem:[#allocation2 + $0x108] sm:$0xff]
  %v744 = vld [vmem:[#allocation2 + $0x110] sm:$0xff]
  %v745 = vld [vmem:[#allocation2 + $0x118] sm:$0xff]
  %v746 = vld [vmem:[#allocation2 + $0x120] sm:$0xff]
  %v747 = vld [vmem:[#allocation2 + $0x128] sm:$0xff]
  %v748 = vld [vmem:[#allocation2 + $0x130] sm:$0xff]
  %v749 = vld [vmem:[#allocation2 + $0x138] sm:$0xff]
  %v750 = vld [vmem:[#allocation2 + $0x140] sm:$0xff]
  %v751 = vld [vmem:[#allocation2 + $0x148] sm:$0xff]
  %v752 = vld [vmem:[#allocation2 + $0x150] sm:$0xff]
  %v753 = vld [vmem:[#allocation2 + $0x158] sm:$0xff]
  %v754 = vld [vmem:[#allocation2 + $0x160] sm:$0xff]
  %v755 = vld [vmem:[#allocation2 + $0x168] sm:$0xff]
  %v756 = vld [vmem:[#allocation2 + $0x170] sm:$0xff]
  %v757 = vld [vmem:[#allocation2 + $0x178] sm:$0xff]
  %v758 = vld [vmem:[#allocation2 + $0x180] sm:$0xff]
  %v759 = vld [vmem:[#allocation2 + $0x188] sm:$0xff]
  %v760 = vld [vmem:[#allocation2 + $0x190] sm:$0xff]
  %v761 = vld [vmem:[#allocation2 + $0x198] sm:$0xff]
  %v762 = vld [vmem:[#allocation2 + $0x1a0] sm:$0xff]
  %v763 = vld [vmem:[#allocation2 + $0x1a8] sm:$0xff]
  %v764 = vld [vmem:[#allocation2 + $0x1b0] sm:$0xff]
  %v765 = vld [vmem:[#allocation2 + $0x1b8] sm:$0xff]
  %v766 = vld [vmem:[#allocation2 + $0x1c0] sm:$0xff]
  %v767 = vld [vmem:[#allocation2 + $0x1c8] sm:$0xff]
  %v768 = vld [vmem:[#allocation2 + $0x1d0] sm:$0xff]
  %v769 = vld [vmem:[#allocation2 + $0x1d8] sm:$0xff]
  %v770 = vld [vmem:[#allocation2 + $0x1e0] sm:$0xff]
  %v771 = vld [vmem:[#allocation2 + $0x1e8] sm:$0xff]
  %v772 = vld [vmem:[#allocation2 + $0x1f0] sm:$0xff]
  %v773 = vld [vmem:[#allocation2 + $0x1f8] sm:$0xff]
  %774 = vmatprep.subr.mxu0 %v711
  %775 = vmatpush1.msra.mxu0 %v710
  %776 = vmatprep.subr.mxu0 %v715
  %777 = vmatpush1.msra.mxu0 %v714
  %778 = vmatprep.subr.mxu0 %v719
  %779 = vmatpush1.msra.mxu0 %v718
  %780 = vmatprep.subr.mxu0 %v723
  %781 = vmatpush1.msra.mxu0 %v722
  %782 = vmatprep.subr.mxu0 %v727
  %783 = vmatpush1.msra.mxu0 %v726
  %784 = vmatprep.subr.mxu0 %v731
  %785 = vmatpush1.msra.mxu0 %v730
  %786 = vmatprep.subr.mxu0 %v735
  %787 = vmatpush1.msra.mxu0 %v734
  %788 = vmatprep.subr.mxu0 %v739
  %789 = vmatpush1.msra.mxu0 %v738
  %790 = vmatprep.subr.mxu0 %v743
  %791 = vmatpush1.msra.mxu0 %v742
  %792 = vmatprep.subr.mxu0 %v747
  %793 = vmatpush1.msra.mxu0 %v746
  %794 = vmatprep.subr.mxu0 %v751
  %795 = vmatpush1.msra.mxu0 %v750
  %796 = vmatprep.subr.mxu0 %v755
  %797 = vmatpush1.msra.mxu0 %v754
  %798 = vmatprep.subr.mxu0 %v759
  %799 = vmatpush1.msra.mxu0 %v758
  %800 = vmatprep.subr.mxu0 %v763
  %801 = vmatpush1.msra.mxu0 %v762
  %802 = vmatprep.subr.mxu0 %v767
  %803 = vmatpush1.msra.mxu0 %v766
  %804 = vmatprep.subr.mxu0 %v771
  %805 = vmatpush1.msra.mxu0 %v770
  %806 = vmatprep.subr.mxu0 0.0
  %807 = vmatpush1.msra.mxu0 0.0
  %808 = vmatprep.subr.mxu0 0.0
  %809 = vmatpush1.msra.mxu0 0.0
  %810 = vmatprep.subr.mxu0 0.0
  %811 = vmatpush1.msra.mxu0 0.0
  %812 = vmatprep.subr.mxu0 0.0
  %813 = vmatpush1.msra.mxu0 0.0
  %814 = vmatprep.subr.mxu0 0.0
  %815 = vmatpush1.msra.mxu0 0.0
  %816 = vmatprep.subr.mxu0 0.0
  %817 = vmatpush1.msra.mxu0 0.0
  %818 = vmatprep.subr.mxu0 0.0
  %819 = vmatpush1.msra.mxu0 0.0
  %820 = vmatprep.subr.mxu0 0.0
  %821 = vmatpush1.msra.mxu0 0.0
  %822 = vmatprep.subr.mxu0 0.0
  %823 = vmatpush1.msra.mxu0 0.0
  %824 = vmatprep.subr.mxu0 0.0
  %825 = vmatpush1.msra.mxu0 0.0
  %826 = vmatprep.subr.mxu0 0.0
  %827 = vmatpush1.msra.mxu0 0.0
  %828 = vmatprep.subr.mxu0 0.0
  %829 = vmatpush1.msra.mxu0 0.0
  %830 = vmatprep.subr.mxu0 0.0
  %831 = vmatpush1.msra.mxu0 0.0
  %832 = vmatprep.subr.mxu0 0.0
  %833 = vmatpush1.msra.mxu0 0.0
  %834 = vmatprep.subr.mxu0 0.0
  %835 = vmatpush1.msra.mxu0 0.0
  %836 = vmatprep.subr.mxu0 0.0
  %837 = vmatpush1.msra.mxu0 0.0
  %838 = vmatprep.mubr.f32.mxu0 0.0
  %839 = vmatmul.mubr.f32.gmra.mrb[0].mxu0 %v702
  %v840 = vpop.f32.mrb[0].mxu0
  %v841 = vadd.f32 0.0, %v840
  %v842 = vpop.f32.mrb[0].mxu0
  %v843 = vadd.f32 0.0, %v842
  %844 = vdwg.mxu0
  %845 = vmatprep.subr.mxu0 %v713
  %846 = vmatpush1.msra.mxu0 %v712
  %847 = vmatprep.subr.mxu0 %v717
  %848 = vmatpush1.msra.mxu0 %v716
  %849 = vmatprep.subr.mxu0 %v721
  %850 = vmatpush1.msra.mxu0 %v720
  %851 = vmatprep.subr.mxu0 %v725
  %852 = vmatpush1.msra.mxu0 %v724
  %853 = vmatprep.subr.mxu0 %v729
  %854 = vmatpush1.msra.mxu0 %v728
  %855 = vmatprep.subr.mxu0 %v733
  %856 = vmatpush1.msra.mxu0 %v732
  %857 = vmatprep.subr.mxu0 %v737
  %858 = vmatpush1.msra.mxu0 %v736
  %859 = vmatprep.subr.mxu0 %v741
  %860 = vmatpush1.msra.mxu0 %v740
  %861 = vmatprep.subr.mxu0 %v745
  %862 = vmatpush1.msra.mxu0 %v744
  %863 = vmatprep.subr.mxu0 %v749
  %864 = vmatpush1.msra.mxu0 %v748
  %865 = vmatprep.subr.mxu0 %v753
  %866 = vmatpush1.msra.mxu0 %v752
  %867 = vmatprep.subr.mxu0 %v757
  %868 = vmatpush1.msra.mxu0 %v756
  %869 = vmatprep.subr.mxu0 %v761
  %870 = vmatpush1.msra.mxu0 %v760
  %871 = vmatprep.subr.mxu0 %v765
  %872 = vmatpush1.msra.mxu0 %v764
  %873 = vmatprep.subr.mxu0 %v769
  %874 = vmatpush1.msra.mxu0 %v768
  %875 = vmatprep.subr.mxu0 %v773
  %876 = vmatpush1.msra.mxu0 %v772
  %877 = vmatprep.subr.mxu0 0.0
  %878 = vmatpush1.msra.mxu0 0.0
  %879 = vmatprep.subr.mxu0 0.0
  %880 = vmatpush1.msra.mxu0 0.0
  %881 = vmatprep.subr.mxu0 0.0
  %882 = vmatpush1.msra.mxu0 0.0
  %883 = vmatprep.subr.mxu0 0.0
  %884 = vmatpush1.msra.mxu0 0.0
  %885 = vmatprep.subr.mxu0 0.0
  %886 = vmatpush1.msra.mxu0 0.0
  %887 = vmatprep.subr.mxu0 0.0
  %888 = vmatpush1.msra.mxu0 0.0
  %889 = vmatprep.subr.mxu0 0.0
  %890 = vmatpush1.msra.mxu0 0.0
  %891 = vmatprep.subr.mxu0 0.0
  %892 = vmatpush1.msra.mxu0 0.0
  %893 = vmatprep.subr.mxu0 0.0
  %894 = vmatpush1.msra.mxu0 0.0
  %895 = vmatprep.subr.mxu0 0.0
  %896 = vmatpush1.msra.mxu0 0.0
  %897 = vmatprep.subr.mxu0 0.0
  %898 = vmatpush1.msra.mxu0 0.0
  %899 = vmatprep.subr.mxu0 0.0
  %900 = vmatpush1.msra.mxu0 0.0
  %901 = vmatprep.subr.mxu0 0.0
  %902 = vmatpush1.msra.mxu0 0.0
  %903 = vmatprep.subr.mxu0 0.0
  %904 = vmatpush1.msra.mxu0 0.0
  %905 = vmatprep.subr.mxu0 0.0
  %906 = vmatpush1.msra.mxu0 0.0
  %907 = vmatprep.subr.mxu0 0.0
  %908 = vmatpush1.msra.mxu0 0.0
  %909 = vmatprep.mubr.f32.mxu0 0.0
  %910 = vmatmul.mubr.f32.gmra.mrb[0].mxu0 %v702
  %v911 = vpop.f32.mrb[0].mxu0
  %v912 = vadd.f32 0.0, %v911
  %v913 = vpop.f32.mrb[0].mxu0
  %v914 = vadd.f32 0.0, %v913
  %915 = vdwg.mxu0
  %v916 = vadd.f32 %v706, %v841
  %v917 = vadd.f32 %v707, %v843
  %v918 = vadd.f32 %v708, %v912
  %v919 = vadd.f32 %v709, %v914
  %v920 = vadd.f32 %v916, %v414
  %v921 = vadd.f32 %v917, %v418
  %v922 = vadd.f32 %v918, %v422
  %v923 = vadd.f32 %v919, %v426
  %v924 = vxor.u32 %v920, 2147483648
  %v925 = vmul.f32 %v924, 1.442695
  %v926 = vpow.pop %v925
  %v927 = vadd.f32 %v926, 1.0
  %v928 = vrcp.pop %v927
  %v929 = vmul.f32 1.0, %v928
  %v930 = vxor.u32 %v921, 2147483648
  %v931 = vmul.f32 %v930, 1.442695
  %v932 = vpow.pop %v931
  %v933 = vadd.f32 %v932, 1.0
  %v934 = vrcp.pop %v933
  %v935 = vmul.f32 1.0, %v934
  %v936 = vtanh.pop %v922
  %v937 = vxor.u32 %v923, 2147483648
  %v938 = vmul.f32 %v937, 1.442695
  %v939 = vpow.pop %v938
  %v940 = vadd.f32 %v939, 1.0
  %v941 = vrcp.pop %v940
  %v942 = vmul.f32 1.0, %v941
  %v943 = vmul.f32 %v935, %v700
  %v944 = vmul.f32 %v929, %v936
  %v945 = vadd.f32 %v943, %v944
  %v946 = vtanh.pop %v945
  %v947 = vmul.f32 %v942, %v946
  %s948 = scalar_lea.vmem %s3, 16
  %949 = vst [vmem:[%s948] sm:$0xff] %v947
  %s950 = scalar_lea.vmem %s0, 96
  %v951 = vld [vmem:[%s950] sm:$0xff]
  %v952 = vld [vmem:[%s950 + $0x8] sm:$0xff]
  %v953 = vld [vmem:[%s950 + $0x10] sm:$0xff]
  %v954 = vld [vmem:[%s950 + $0x18] sm:$0xff]
  %v955 = vld [vmem:[#allocation2] sm:$0xff]
  %v956 = vld [vmem:[#allocation2 + $0x8] sm:$0xff]
  %v957 = vld [vmem:[#allocation2 + $0x10] sm:$0xff]
  %v958 = vld [vmem:[#allocation2 + $0x18] sm:$0xff]
  %v959 = vld [vmem:[#allocation2 + $0x20] sm:$0xff]
  %v960 = vld [vmem:[#allocation2 + $0x28] sm:$0xff]
  %v961 = vld [vmem:[#allocation2 + $0x30] sm:$0xff]
  %v962 = vld [vmem:[#allocation2 + $0x38] sm:$0xff]
  %v963 = vld [vmem:[#allocation2 + $0x40] sm:$0xff]
  %v964 = vld [vmem:[#allocation2 + $0x48] sm:$0xff]
  %v965 = vld [vmem:[#allocation2 + $0x50] sm:$0xff]
  %v966 = vld [vmem:[#allocation2 + $0x58] sm:$0xff]
  %v967 = vld [vmem:[#allocation2 + $0x60] sm:$0xff]
  %v968 = vld [vmem:[#allocation2 + $0x68] sm:$0xff]
  %v969 = vld [vmem:[#allocation2 + $0x70] sm:$0xff]
  %v970 = vld [vmem:[#allocation2 + $0x78] sm:$0xff]
  %v971 = vld [vmem:[#allocation2 + $0x80] sm:$0xff]
  %v972 = vld [vmem:[#allocation2 + $0x88] sm:$0xff]
  %v973 = vld [vmem:[#allocation2 + $0x90] sm:$0xff]
  %v974 = vld [vmem:[#allocation2 + $0x98] sm:$0xff]
  %v975 = vld [vmem:[#allocation2 + $0xa0] sm:$0xff]
  %v976 = vld [vmem:[#allocation2 + $0xa8] sm:$0xff]
  %v977 = vld [vmem:[#allocation2 + $0xb0] sm:$0xff]
  %v978 = vld [vmem:[#allocation2 + $0xb8] sm:$0xff]
  %v979 = vld [vmem:[#allocation2 + $0xc0] sm:$0xff]
  %v980 = vld [vmem:[#allocation2 + $0xc8] sm:$0xff]
  %v981 = vld [vmem:[#allocation2 + $0xd0] sm:$0xff]
  %v982 = vld [vmem:[#allocation2 + $0xd8] sm:$0xff]
  %v983 = vld [vmem:[#allocation2 + $0xe0] sm:$0xff]
  %v984 = vld [vmem:[#allocation2 + $0xe8] sm:$0xff]
  %v985 = vld [vmem:[#allocation2 + $0xf0] sm:$0xff]
  %v986 = vld [vmem:[#allocation2 + $0xf8] sm:$0xff]
  %v987 = vld [vmem:[#allocation2 + $0x100] sm:$0xff]
  %v988 = vld [vmem:[#allocation2 + $0x108] sm:$0xff]
  %v989 = vld [vmem:[#allocation2 + $0x110] sm:$0xff]
  %v990 = vld [vmem:[#allocation2 + $0x118] sm:$0xff]
  %v991 = vld [vmem:[#allocation2 + $0x120] sm:$0xff]
  %v992 = vld [vmem:[#allocation2 + $0x128] sm:$0xff]
  %v993 = vld [vmem:[#allocation2 + $0x130] sm:$0xff]
  %v994 = vld [vmem:[#allocation2 + $0x138] sm:$0xff]
  %v995 = vld [vmem:[#allocation2 + $0x140] sm:$0xff]
  %v996 = vld [vmem:[#allocation2 + $0x148] sm:$0xff]
  %v997 = vld [vmem:[#allocation2 + $0x150] sm:$0xff]
  %v998 = vld [vmem:[#allocation2 + $0x158] sm:$0xff]
  %v999 = vld [vmem:[#allocation2 + $0x160] sm:$0xff]
  %v1000 = vld [vmem:[#allocation2 + $0x168] sm:$0xff]
  %v1001 = vld [vmem:[#allocation2 + $0x170] sm:$0xff]
  %v1002 = vld [vmem:[#allocation2 + $0x178] sm:$0xff]
  %v1003 = vld [vmem:[#allocation2 + $0x180] sm:$0xff]
  %v1004 = vld [vmem:[#allocation2 + $0x188] sm:$0xff]
  %v1005 = vld [vmem:[#allocation2 + $0x190] sm:$0xff]
  %v1006 = vld [vmem:[#allocation2 + $0x198] sm:$0xff]
  %v1007 = vld [vmem:[#allocation2 + $0x1a0] sm:$0xff]
  %v1008 = vld [vmem:[#allocation2 + $0x1a8] sm:$0xff]
  %v1009 = vld [vmem:[#allocation2 + $0x1b0] sm:$0xff]
  %v1010 = vld [vmem:[#allocation2 + $0x1b8] sm:$0xff]
  %v1011 = vld [vmem:[#allocation2 + $0x1c0] sm:$0xff]
  %v1012 = vld [vmem:[#allocation2 + $0x1c8] sm:$0xff]
  %v1013 = vld [vmem:[#allocation2 + $0x1d0] sm:$0xff]
  %v1014 = vld [vmem:[#allocation2 + $0x1d8] sm:$0xff]
  %v1015 = vld [vmem:[#allocation2 + $0x1e0] sm:$0xff]
  %v1016 = vld [vmem:[#allocation2 + $0x1e8] sm:$0xff]
  %v1017 = vld [vmem:[#allocation2 + $0x1f0] sm:$0xff]
  %v1018 = vld [vmem:[#allocation2 + $0x1f8] sm:$0xff]
  %1019 = vmatprep.subr.mxu0 %v956
  %1020 = vmatpush1.msra.mxu0 %v955
  %1021 = vmatprep.subr.mxu0 %v960
  %1022 = vmatpush1.msra.mxu0 %v959
  %1023 = vmatprep.subr.mxu0 %v964
  %1024 = vmatpush1.msra.mxu0 %v963
  %1025 = vmatprep.subr.mxu0 %v968
  %1026 = vmatpush1.msra.mxu0 %v967
  %1027 = vmatprep.subr.mxu0 %v972
  %1028 = vmatpush1.msra.mxu0 %v971
  %1029 = vmatprep.subr.mxu0 %v976
  %1030 = vmatpush1.msra.mxu0 %v975
  %1031 = vmatprep.subr.mxu0 %v980
  %1032 = vmatpush1.msra.mxu0 %v979
  %1033 = vmatprep.subr.mxu0 %v984
  %1034 = vmatpush1.msra.mxu0 %v983
  %1035 = vmatprep.subr.mxu0 %v988
  %1036 = vmatpush1.msra.mxu0 %v987
  %1037 = vmatprep.subr.mxu0 %v992
  %1038 = vmatpush1.msra.mxu0 %v991
  %1039 = vmatprep.subr.mxu0 %v996
  %1040 = vmatpush1.msra.mxu0 %v995
  %1041 = vmatprep.subr.mxu0 %v1000
  %1042 = vmatpush1.msra.mxu0 %v999
  %1043 = vmatprep.subr.mxu0 %v1004
  %1044 = vmatpush1.msra.mxu0 %v1003
  %1045 = vmatprep.subr.mxu0 %v1008
  %1046 = vmatpush1.msra.mxu0 %v1007
  %1047 = vmatprep.subr.mxu0 %v1012
  %1048 = vmatpush1.msra.mxu0 %v1011
  %1049 = vmatprep.subr.mxu0 %v1016
  %1050 = vmatpush1.msra.mxu0 %v1015
  %1051 = vmatprep.subr.mxu0 0.0
  %1052 = vmatpush1.msra.mxu0 0.0
  %1053 = vmatprep.subr.mxu0 0.0
  %1054 = vmatpush1.msra.mxu0 0.0
  %1055 = vmatprep.subr.mxu0 0.0
  %1056 = vmatpush1.msra.mxu0 0.0
  %1057 = vmatprep.subr.mxu0 0.0
  %1058 = vmatpush1.msra.mxu0 0.0
  %1059 = vmatprep.subr.mxu0 0.0
  %1060 = vmatpush1.msra.mxu0 0.0
  %1061 = vmatprep.subr.mxu0 0.0
  %1062 = vmatpush1.msra.mxu0 0.0
  %1063 = vmatprep.subr.mxu0 0.0
  %1064 = vmatpush1.msra.mxu0 0.0
  %1065 = vmatprep.subr.mxu0 0.0
  %1066 = vmatpush1.msra.mxu0 0.0
  %1067 = vmatprep.subr.mxu0 0.0
  %1068 = vmatpush1.msra.mxu0 0.0
  %1069 = vmatprep.subr.mxu0 0.0
  %1070 = vmatpush1.msra.mxu0 0.0
  %1071 = vmatprep.subr.mxu0 0.0
  %1072 = vmatpush1.msra.mxu0 0.0
  %1073 = vmatprep.subr.mxu0 0.0
  %1074 = vmatpush1.msra.mxu0 0.0
  %1075 = vmatprep.subr.mxu0 0.0
  %1076 = vmatpush1.msra.mxu0 0.0
  %1077 = vmatprep.subr.mxu0 0.0
  %1078 = vmatpush1.msra.mxu0 0.0
  %1079 = vmatprep.subr.mxu0 0.0
  %1080 = vmatpush1.msra.mxu0 0.0
  %1081 = vmatprep.subr.mxu0 0.0
  %1082 = vmatpush1.msra.mxu0 0.0
  %1083 = vmatprep.mubr.f32.mxu0 0.0
  %1084 = vmatmul.mubr.f32.gmra.mrb[0].mxu0 %v947
  %v1085 = vpop.f32.mrb[0].mxu0
  %v1086 = vadd.f32 0.0, %v1085
  %v1087 = vpop.f32.mrb[0].mxu0
  %v1088 = vadd.f32 0.0, %v1087
  %1089 = vdwg.mxu0
  %1090 = vmatprep.subr.mxu0 %v958
  %1091 = vmatpush1.msra.mxu0 %v957
  %1092 = vmatprep.subr.mxu0 %v962
  %1093 = vmatpush1.msra.mxu0 %v961
  %1094 = vmatprep.subr.mxu0 %v966
  %1095 = vmatpush1.msra.mxu0 %v965
  %1096 = vmatprep.subr.mxu0 %v970
  %1097 = vmatpush1.msra.mxu0 %v969
  %1098 = vmatprep.subr.mxu0 %v974
  %1099 = vmatpush1.msra.mxu0 %v973
  %1100 = vmatprep.subr.mxu0 %v978
  %1101 = vmatpush1.msra.mxu0 %v977
  %1102 = vmatprep.subr.mxu0 %v982
  %1103 = vmatpush1.msra.mxu0 %v981
  %1104 = vmatprep.subr.mxu0 %v986
  %1105 = vmatpush1.msra.mxu0 %v985
  %1106 = vmatprep.subr.mxu0 %v990
  %1107 = vmatpush1.msra.mxu0 %v989
  %1108 = vmatprep.subr.mxu0 %v994
  %1109 = vmatpush1.msra.mxu0 %v993
  %1110 = vmatprep.subr.mxu0 %v998
  %1111 = vmatpush1.msra.mxu0 %v997
  %1112 = vmatprep.subr.mxu0 %v1002
  %1113 = vmatpush1.msra.mxu0 %v1001
  %1114 = vmatprep.subr.mxu0 %v1006
  %1115 = vmatpush1.msra.mxu0 %v1005
  %1116 = vmatprep.subr.mxu0 %v1010
  %1117 = vmatpush1.msra.mxu0 %v1009
  %1118 = vmatprep.subr.mxu0 %v1014
  %1119 = vmatpush1.msra.mxu0 %v1013
  %1120 = vmatprep.subr.mxu0 %v1018
  %1121 = vmatpush1.msra.mxu0 %v1017
  %1122 = vmatprep.subr.mxu0 0.0
  %1123 = vmatpush1.msra.mxu0 0.0
  %1124 = vmatprep.subr.mxu0 0.0
  %1125 = vmatpush1.msra.mxu0 0.0
  %1126 = vmatprep.subr.mxu0 0.0
  %1127 = vmatpush1.msra.mxu0 0.0
  %1128 = vmatprep.subr.mxu0 0.0
  %1129 = vmatpush1.msra.mxu0 0.0
  %1130 = vmatprep.subr.mxu0 0.0
  %1131 = vmatpush1.msra.mxu0 0.0
  %1132 = vmatprep.subr.mxu0 0.0
  %1133 = vmatpush1.msra.mxu0 0.0
  %1134 = vmatprep.subr.mxu0 0.0
  %1135 = vmatpush1.msra.mxu0 0.0
  %1136 = vmatprep.subr.mxu0 0.0
  %1137 = vmatpush1.msra.mxu0 0.0
  %1138 = vmatprep.subr.mxu0 0.0
  %1139 = vmatpush1.msra.mxu0 0.0
  %1140 = vmatprep.subr.mxu0 0.0
  %1141 = vmatpush1.msra.mxu0 0.0
  %1142 = vmatprep.subr.mxu0 0.0
  %1143 = vmatpush1.msra.mxu0 0.0
  %1144 = vmatprep.subr.mxu0 0.0
  %1145 = vmatpush1.msra.mxu0 0.0
  %1146 = vmatprep.subr.mxu0 0.0
  %1147 = vmatpush1.msra.mxu0 0.0
  %1148 = vmatprep.subr.mxu0 0.0
  %1149 = vmatpush1.msra.mxu0 0.0
  %1150 = vmatprep.subr.mxu0 0.0
  %1151 = vmatpush1.msra.mxu0 0.0
  %1152 = vmatprep.subr.mxu0 0.0
  %1153 = vmatpush1.msra.mxu0 0.0
  %1154 = vmatprep.mubr.f32.mxu0 0.0
  %1155 = vmatmul.mubr.f32.gmra.mrb[0].mxu0 %v947
  %v1156 = vpop.f32.mrb[0].mxu0
  %v1157 = vadd.f32 0.0, %v1156
  %v1158 = vpop.f32.mrb[0].mxu0
  %v1159 = vadd.f32 0.0, %v1158
  %1160 = vdwg.mxu0
  %v1161 = vadd.f32 %v951, %v1086
  %v1162 = vadd.f32 %v952, %v1088
  %v1163 = vadd.f32 %v953, %v1157
  %v1164 = vadd.f32 %v954, %v1159
  %v1165 = vadd.f32 %v1161, %v414
  %v1166 = vadd.f32 %v1162, %v418
  %v1167 = vadd.f32 %v1163, %v422
  %v1168 = vadd.f32 %v1164, %v426
  %v1169 = vxor.u32 %v1165, 2147483648
  %v1170 = vmul.f32 %v1169, 1.442695
  %v1171 = vpow.pop %v1170
  %v1172 = vadd.f32 %v1171, 1.0
  %v1173 = vrcp.pop %v1172
  %v1174 = vmul.f32 1.0, %v1173
  %v1175 = vxor.u32 %v1166, 2147483648
  %v1176 = vmul.f32 %v1175, 1.442695
  %v1177 = vpow.pop %v1176
  %v1178 = vadd.f32 %v1177, 1.0
  %v1179 = vrcp.pop %v1178
  %v1180 = vmul.f32 1.0, %v1179
  %v1181 = vtanh.pop %v1167
  %v1182 = vxor.u32 %v1168, 2147483648
  %v1183 = vmul.f32 %v1182, 1.442695
  %v1184 = vpow.pop %v1183
  %v1185 = vadd.f32 %v1184, 1.0
  %v1186 = vrcp.pop %v1185
  %v1187 = vmul.f32 1.0, %v1186
  %v1188 = vmul.f32 %v1180, %v945
  %v1189 = vmul.f32 %v1174, %v1181
  %v1190 = vadd.f32 %v1188, %v1189
  %v1191 = vtanh.pop %v1190
  %v1192 = vmul.f32 %v1187, %v1191
  %s1193 = scalar_lea.vmem %s3, 24
  %1194 = vst [vmem:[%s1193] sm:$0xff] %v1192
  %s1195 = scalar_lea.vmem %s0, 128
  %v1196 = vld [vmem:[%s1195] sm:$0xff]
  %v1197 = vld [vmem:[%s1195 + $0x8] sm:$0xff]
  %v1198 = vld [vmem:[%s1195 + $0x10] sm:$0xff]
  %v1199 = vld [vmem:[%s1195 + $0x18] sm:$0xff]
  %v1200 = vld [vmem:[#allocation2] sm:$0xff]
  %v1201 = vld [vmem:[#allocation2 + $0x8] sm:$0xff]
  %v1202 = vld [vmem:[#allocation2 + $0x10] sm:$0xff]
  %v1203 = vld [vmem:[#allocation2 + $0x18] sm:$0xff]
  %v1204 = vld [vmem:[#allocation2 + $0x20] sm:$0xff]
  %v1205 = vld [vmem:[#allocation2 + $0x28] sm:$0xff]
  %v1206 = vld [vmem:[#allocation2 + $0x30] sm:$0xff]
  %v1207 = vld [vmem:[#allocation2 + $0x38] sm:$0xff]
  %v1208 = vld [vmem:[#allocation2 + $0x40] sm:$0xff]
  %v1209 = vld [vmem:[#allocation2 + $0x48] sm:$0xff]
  %v1210 = vld [vmem:[#allocation2 + $0x50] sm:$0xff]
  %v1211 = vld [vmem:[#allocation2 + $0x58] sm:$0xff]
  %v1212 = vld [vmem:[#allocation2 + $0x60] sm:$0xff]
  %v1213 = vld [vmem:[#allocation2 + $0x68] sm:$0xff]
  %v1214 = vld [vmem:[#allocation2 + $0x70] sm:$0xff]
  %v1215 = vld [vmem:[#allocation2 + $0x78] sm:$0xff]
  %v1216 = vld [vmem:[#allocation2 + $0x80] sm:$0xff]
  %v1217 = vld [vmem:[#allocation2 + $0x88] sm:$0xff]
  %v1218 = vld [vmem:[#allocation2 + $0x90] sm:$0xff]
  %v1219 = vld [vmem:[#allocation2 + $0x98] sm:$0xff]
  %v1220 = vld [vmem:[#allocation2 + $0xa0] sm:$0xff]
  %v1221 = vld [vmem:[#allocation2 + $0xa8] sm:$0xff]
  %v1222 = vld [vmem:[#allocation2 + $0xb0] sm:$0xff]
  %v1223 = vld [vmem:[#allocation2 + $0xb8] sm:$0xff]
  %v1224 = vld [vmem:[#allocation2 + $0xc0] sm:$0xff]
  %v1225 = vld [vmem:[#allocation2 + $0xc8] sm:$0xff]
  %v1226 = vld [vmem:[#allocation2 + $0xd0] sm:$0xff]
  %v1227 = vld [vmem:[#allocation2 + $0xd8] sm:$0xff]
  %v1228 = vld [vmem:[#allocation2 + $0xe0] sm:$0xff]
  %v1229 = vld [vmem:[#allocation2 + $0xe8] sm:$0xff]
  %v1230 = vld [vmem:[#allocation2 + $0xf0] sm:$0xff]
  %v1231 = vld [vmem:[#allocation2 + $0xf8] sm:$0xff]
  %v1232 = vld [vmem:[#allocation2 + $0x100] sm:$0xff]
  %v1233 = vld [vmem:[#allocation2 + $0x108] sm:$0xff]
  %v1234 = vld [vmem:[#allocation2 + $0x110] sm:$0xff]
  %v1235 = vld [vmem:[#allocation2 + $0x118] sm:$0xff]
  %v1236 = vld [vmem:[#allocation2 + $0x120] sm:$0xff]
  %v1237 = vld [vmem:[#allocation2 + $0x128] sm:$0xff]
  %v1238 = vld [vmem:[#allocation2 + $0x130] sm:$0xff]
  %v1239 = vld [vmem:[#allocation2 + $0x138] sm:$0xff]
  %v1240 = vld [vmem:[#allocation2 + $0x140] sm:$0xff]
  %v1241 = vld [vmem:[#allocation2 + $0x148] sm:$0xff]
  %v1242 = vld [vmem:[#allocation2 + $0x150] sm:$0xff]
  %v1243 = vld [vmem:[#allocation2 + $0x158] sm:$0xff]
  %v1244 = vld [vmem:[#allocation2 + $0x160] sm:$0xff]
  %v1245 = vld [vmem:[#allocation2 + $0x168] sm:$0xff]
  %v1246 = vld [vmem:[#allocation2 + $0x170] sm:$0xff]
  %v1247 = vld [vmem:[#allocation2 + $0x178] sm:$0xff]
  %v1248 = vld [vmem:[#allocation2 + $0x180] sm:$0xff]
  %v1249 = vld [vmem:[#allocation2 + $0x188] sm:$0xff]
  %v1250 = vld [vmem:[#allocation2 + $0x190] sm:$0xff]
  %v1251 = vld [vmem:[#allocation2 + $0x198] sm:$0xff]
  %v1252 = vld [vmem:[#allocation2 + $0x1a0] sm:$0xff]
  %v1253 = vld [vmem:[#allocation2 + $0x1a8] sm:$0xff]
  %v1254 = vld [vmem:[#allocation2 + $0x1b0] sm:$0xff]
  %v1255 = vld [vmem:[#allocation2 + $0x1b8] sm:$0xff]
  %v1256 = vld [vmem:[#allocation2 + $0x1c0] sm:$0xff]
  %v1257 = vld [vmem:[#allocation2 + $0x1c8] sm:$0xff]
  %v1258 = vld [vmem:[#allocation2 + $0x1d0] sm:$0xff]
  %v1259 = vld [vmem:[#allocation2 + $0x1d8] sm:$0xff]
  %v1260 = vld [vmem:[#allocation2 + $0x1e0] sm:$0xff]
  %v1261 = vld [vmem:[#allocation2 + $0x1e8] sm:$0xff]
  %v1262 = vld [vmem:[#allocation2 + $0x1f0] sm:$0xff]
  %v1263 = vld [vmem:[#allocation2 + $0x1f8] sm:$0xff]
  %1264 = vmatprep.subr.mxu0 %v1201
  %1265 = vmatpush1.msra.mxu0 %v1200
  %1266 = vmatprep.subr.mxu0 %v1205
  %1267 = vmatpush1.msra.mxu0 %v1204
  %1268 = vmatprep.subr.mxu0 %v1209
  %1269 = vmatpush1.msra.mxu0 %v1208
  %1270 = vmatprep.subr.mxu0 %v1213
  %1271 = vmatpush1.msra.mxu0 %v1212
  %1272 = vmatprep.subr.mxu0 %v1217
  %1273 = vmatpush1.msra.mxu0 %v1216
  %1274 = vmatprep.subr.mxu0 %v1221
  %1275 = vmatpush1.msra.mxu0 %v1220
  %1276 = vmatprep.subr.mxu0 %v1225
  %1277 = vmatpush1.msra.mxu0 %v1224
  %1278 = vmatprep.subr.mxu0 %v1229
  %1279 = vmatpush1.msra.mxu0 %v1228
  %1280 = vmatprep.subr.mxu0 %v1233
  %1281 = vmatpush1.msra.mxu0 %v1232
  %1282 = vmatprep.subr.mxu0 %v1237
  %1283 = vmatpush1.msra.mxu0 %v1236
  %1284 = vmatprep.subr.mxu0 %v1241
  %1285 = vmatpush1.msra.mxu0 %v1240
  %1286 = vmatprep.subr.mxu0 %v1245
  %1287 = vmatpush1.msra.mxu0 %v1244
  %1288 = vmatprep.subr.mxu0 %v1249
  %1289 = vmatpush1.msra.mxu0 %v1248
  %1290 = vmatprep.subr.mxu0 %v1253
  %1291 = vmatpush1.msra.mxu0 %v1252
  %1292 = vmatprep.subr.mxu0 %v1257
  %1293 = vmatpush1.msra.mxu0 %v1256
  %1294 = vmatprep.subr.mxu0 %v1261
  %1295 = vmatpush1.msra.mxu0 %v1260
  %1296 = vmatprep.subr.mxu0 0.0
  %1297 = vmatpush1.msra.mxu0 0.0
  %1298 = vmatprep.subr.mxu0 0.0
  %1299 = vmatpush1.msra.mxu0 0.0
  %1300 = vmatprep.subr.mxu0 0.0
  %1301 = vmatpush1.msra.mxu0 0.0
  %1302 = vmatprep.subr.mxu0 0.0
  %1303 = vmatpush1.msra.mxu0 0.0
  %1304 = vmatprep.subr.mxu0 0.0
  %1305 = vmatpush1.msra.mxu0 0.0
  %1306 = vmatprep.subr.mxu0 0.0
  %1307 = vmatpush1.msra.mxu0 0.0
  %1308 = vmatprep.subr.mxu0 0.0
  %1309 = vmatpush1.msra.mxu0 0.0
  %1310 = vmatprep.subr.mxu0 0.0
  %1311 = vmatpush1.msra.mxu0 0.0
  %1312 = vmatprep.subr.mxu0 0.0
  %1313 = vmatpush1.msra.mxu0 0.0
  %1314 = vmatprep.subr.mxu0 0.0
  %1315 = vmatpush1.msra.mxu0 0.0
  %1316 = vmatprep.subr.mxu0 0.0
  %1317 = vmatpush1.msra.mxu0 0.0
  %1318 = vmatprep.subr.mxu0 0.0
  %1319 = vmatpush1.msra.mxu0 0.0
  %1320 = vmatprep.subr.mxu0 0.0
  %1321 = vmatpush1.msra.mxu0 0.0
  %1322 = vmatprep.subr.mxu0 0.0
  %1323 = vmatpush1.msra.mxu0 0.0
  %1324 = vmatprep.subr.mxu0 0.0
  %1325 = vmatpush1.msra.mxu0 0.0
  %1326 = vmatprep.subr.mxu0 0.0
  %1327 = vmatpush1.msra.mxu0 0.0
  %1328 = vmatprep.mubr.f32.mxu0 0.0
  %1329 = vmatmul.mubr.f32.gmra.mrb[0].mxu0 %v1192
  %v1330 = vpop.f32.mrb[0].mxu0
  %v1331 = vadd.f32 0.0, %v1330
  %v1332 = vpop.f32.mrb[0].mxu0
  %v1333 = vadd.f32 0.0, %v1332
  %1334 = vdwg.mxu0
  %1335 = vmatprep.subr.mxu0 %v1203
  %1336 = vmatpush1.msra.mxu0 %v1202
  %1337 = vmatprep.subr.mxu0 %v1207
  %1338 = vmatpush1.msra.mxu0 %v1206
  %1339 = vmatprep.subr.mxu0 %v1211
  %1340 = vmatpush1.msra.mxu0 %v1210
  %1341 = vmatprep.subr.mxu0 %v1215
  %1342 = vmatpush1.msra.mxu0 %v1214
  %1343 = vmatprep.subr.mxu0 %v1219
  %1344 = vmatpush1.msra.mxu0 %v1218
  %1345 = vmatprep.subr.mxu0 %v1223
  %1346 = vmatpush1.msra.mxu0 %v1222
  %1347 = vmatprep.subr.mxu0 %v1227
  %1348 = vmatpush1.msra.mxu0 %v1226
  %1349 = vmatprep.subr.mxu0 %v1231
  %1350 = vmatpush1.msra.mxu0 %v1230
  %1351 = vmatprep.subr.mxu0 %v1235
  %1352 = vmatpush1.msra.mxu0 %v1234
  %1353 = vmatprep.subr.mxu0 %v1239
  %1354 = vmatpush1.msra.mxu0 %v1238
  %1355 = vmatprep.subr.mxu0 %v1243
  %1356 = vmatpush1.msra.mxu0 %v1242
  %1357 = vmatprep.subr.mxu0 %v1247
  %1358 = vmatpush1.msra.mxu0 %v1246
  %1359 = vmatprep.subr.mxu0 %v1251
  %1360 = vmatpush1.msra.mxu0 %v1250
  %1361 = vmatprep.subr.mxu0 %v1255
  %1362 = vmatpush1.msra.mxu0 %v1254
  %1363 = vmatprep.subr.mxu0 %v1259
  %1364 = vmatpush1.msra.mxu0 %v1258
  %1365 = vmatprep.subr.mxu0 %v1263
  %1366 = vmatpush1.msra.mxu0 %v1262
  %1367 = vmatprep.subr.mxu0 0.0
  %1368 = vmatpush1.msra.mxu0 0.0
  %1369 = vmatprep.subr.mxu0 0.0
  %1370 = vmatpush1.msra.mxu0 0.0
  %1371 = vmatprep.subr.mxu0 0.0
  %1372 = vmatpush1.msra.mxu0 0.0
  %1373 = vmatprep.subr.mxu0 0.0
  %1374 = vmatpush1.msra.mxu0 0.0
  %1375 = vmatprep.subr.mxu0 0.0
  %1376 = vmatpush1.msra.mxu0 0.0
  %1377 = vmatprep.subr.mxu0 0.0
  %1378 = vmatpush1.msra.mxu0 0.0
  %1379 = vmatprep.subr.mxu0 0.0
  %1380 = vmatpush1.msra.mxu0 0.0
  %1381 = vmatprep.subr.mxu0 0.0
  %1382 = vmatpush1.msra.mxu0 0.0
  %1383 = vmatprep.subr.mxu0 0.0
  %1384 = vmatpush1.msra.mxu0 0.0
  %1385 = vmatprep.subr.mxu0 0.0
  %1386 = vmatpush1.msra.mxu0 0.0
  %1387 = vmatprep.subr.mxu0 0.0
  %1388 = vmatpush1.msra.mxu0 0.0
  %1389 = vmatprep.subr.mxu0 0.0
  %1390 = vmatpush1.msra.mxu0 0.0
  %1391 = vmatprep.subr.mxu0 0.0
  %1392 = vmatpush1.msra.mxu0 0.0
  %1393 = vmatprep.subr.mxu0 0.0
  %1394 = vmatpush1.msra.mxu0 0.0
  %1395 = vmatprep.subr.mxu0 0.0
  %1396 = vmatpush1.msra.mxu0 0.0
  %1397 = vmatprep.subr.mxu0 0.0
  %1398 = vmatpush1.msra.mxu0 0.0
  %1399 = vmatprep.mubr.f32.mxu0 0.0
  %1400 = vmatmul.mubr.f32.gmra.mrb[0].mxu0 %v1192
  %v1401 = vpop.f32.mrb[0].mxu0
  %v1402 = vadd.f32 0.0, %v1401
  %v1403 = vpop.f32.mrb[0].mxu0
  %v1404 = vadd.f32 0.0, %v1403
  %1405 = vdwg.mxu0
  %v1406 = vadd.f32 %v1196, %v1331
  %v1407 = vadd.f32 %v1197, %v1333
  %v1408 = vadd.f32 %v1198, %v1402
  %v1409 = vadd.f32 %v1199, %v1404
  %v1410 = vadd.f32 %v1406, %v414
  %v1411 = vadd.f32 %v1407, %v418
  %v1412 = vadd.f32 %v1408, %v422
  %v1413 = vadd.f32 %v1409, %v426
  %v1414 = vxor.u32 %v1410, 2147483648
  %v1415 = vmul.f32 %v1414, 1.442695
  %v1416 = vpow.pop %v1415
  %v1417 = vadd.f32 %v1416, 1.0
  %v1418 = vrcp.pop %v1417
  %v1419 = vmul.f32 1.0, %v1418
  %v1420 = vxor.u32 %v1411, 2147483648
  %v1421 = vmul.f32 %v1420, 1.442695
  %v1422 = vpow.pop %v1421
  %v1423 = vadd.f32 %v1422, 1.0
  %v1424 = vrcp.pop %v1423
  %v1425 = vmul.f32 1.0, %v1424
  %v1426 = vtanh.pop %v1412
  %v1427 = vxor.u32 %v1413, 2147483648
  %v1428 = vmul.f32 %v1427, 1.442695
  %v1429 = vpow.pop %v1428
  %v1430 = vadd.f32 %v1429, 1.0
  %v1431 = vrcp.pop %v1430
  %v1432 = vmul.f32 1.0, %v1431
  %v1433 = vmul.f32 %v1425, %v1190
  %v1434 = vmul.f32 %v1419, %v1426
  %v1435 = vadd.f32 %v1433, %v1434
  %v1436 = vtanh.pop %v1435
  %v1437 = vmul.f32 %v1432, %v1436
  %s1438 = scalar_lea.vmem %s3, 32
  %1439 = vst [vmem:[%s1438] sm:$0xff] %v1437
  %s1440 = scalar_lea.vmem %s0, 160
  %v1441 = vld [vmem:[%s1440] sm:$0xff]
  %v1442 = vld [vmem:[%s1440 + $0x8] sm:$0xff]
  %v1443 = vld [vmem:[%s1440 + $0x10] sm:$0xff]
  %v1444 = vld [vmem:[%s1440 + $0x18] sm:$0xff]
  %v1445 = vld [vmem:[#allocation2] sm:$0xff]
  %v1446 = vld [vmem:[#allocation2 + $0x8] sm:$0xff]
  %v1447 = vld [vmem:[#allocation2 + $0x10] sm:$0xff]
  %v1448 = vld [vmem:[#allocation2 + $0x18] sm:$0xff]
  %v1449 = vld [vmem:[#allocation2 + $0x20] sm:$0xff]
  %v1450 = vld [vmem:[#allocation2 + $0x28] sm:$0xff]
  %v1451 = vld [vmem:[#allocation2 + $0x30] sm:$0xff]
  %v1452 = vld [vmem:[#allocation2 + $0x38] sm:$0xff]
  %v1453 = vld [vmem:[#allocation2 + $0x40] sm:$0xff]
  %v1454 = vld [vmem:[#allocation2 + $0x48] sm:$0xff]
  %v1455 = vld [vmem:[#allocation2 + $0x50] sm:$0xff]
  %v1456 = vld [vmem:[#allocation2 + $0x58] sm:$0xff]
  %v1457 = vld [vmem:[#allocation2 + $0x60] sm:$0xff]
  %v1458 = vld [vmem:[#allocation2 + $0x68] sm:$0xff]
  %v1459 = vld [vmem:[#allocation2 + $0x70] sm:$0xff]
  %v1460 = vld [vmem:[#allocation2 + $0x78] sm:$0xff]
  %v1461 = vld [vmem:[#allocation2 + $0x80] sm:$0xff]
  %v1462 = vld [vmem:[#allocation2 + $0x88] sm:$0xff]
  %v1463 = vld [vmem:[#allocation2 + $0x90] sm:$0xff]
  %v1464 = vld [vmem:[#allocation2 + $0x98] sm:$0xff]
  %v1465 = vld [vmem:[#allocation2 + $0xa0] sm:$0xff]
  %v1466 = vld [vmem:[#allocation2 + $0xa8] sm:$0xff]
  %v1467 = vld [vmem:[#allocation2 + $0xb0] sm:$0xff]
  %v1468 = vld [vmem:[#allocation2 + $0xb8] sm:$0xff]
  %v1469 = vld [vmem:[#allocation2 + $0xc0] sm:$0xff]
  %v1470 = vld [vmem:[#allocation2 + $0xc8] sm:$0xff]
  %v1471 = vld [vmem:[#allocation2 + $0xd0] sm:$0xff]
  %v1472 = vld [vmem:[#allocation2 + $0xd8] sm:$0xff]
  %v1473 = vld [vmem:[#allocation2 + $0xe0] sm:$0xff]
  %v1474 = vld [vmem:[#allocation2 + $0xe8] sm:$0xff]
  %v1475 = vld [vmem:[#allocation2 + $0xf0] sm:$0xff]
  %v1476 = vld [vmem:[#allocation2 + $0xf8] sm:$0xff]
  %v1477 = vld [vmem:[#allocation2 + $0x100] sm:$0xff]
  %v1478 = vld [vmem:[#allocation2 + $0x108] sm:$0xff]
  %v1479 = vld [vmem:[#allocation2 + $0x110] sm:$0xff]
  %v1480 = vld [vmem:[#allocation2 + $0x118] sm:$0xff]
  %v1481 = vld [vmem:[#allocation2 + $0x120] sm:$0xff]
  %v1482 = vld [vmem:[#allocation2 + $0x128] sm:$0xff]
  %v1483 = vld [vmem:[#allocation2 + $0x130] sm:$0xff]
  %v1484 = vld [vmem:[#allocation2 + $0x138] sm:$0xff]
  %v1485 = vld [vmem:[#allocation2 + $0x140] sm:$0xff]
  %v1486 = vld [vmem:[#allocation2 + $0x148] sm:$0xff]
  %v1487 = vld [vmem:[#allocation2 + $0x150] sm:$0xff]
  %v1488 = vld [vmem:[#allocation2 + $0x158] sm:$0xff]
  %v1489 = vld [vmem:[#allocation2 + $0x160] sm:$0xff]
  %v1490 = vld [vmem:[#allocation2 + $0x168] sm:$0xff]
  %v1491 = vld [vmem:[#allocation2 + $0x170] sm:$0xff]
  %v1492 = vld [vmem:[#allocation2 + $0x178] sm:$0xff]
  %v1493 = vld [vmem:[#allocation2 + $0x180] sm:$0xff]
  %v1494 = vld [vmem:[#allocation2 + $0x188] sm:$0xff]
  %v1495 = vld [vmem:[#allocation2 + $0x190] sm:$0xff]
  %v1496 = vld [vmem:[#allocation2 + $0x198] sm:$0xff]
  %v1497 = vld [vmem:[#allocation2 + $0x1a0] sm:$0xff]
  %v1498 = vld [vmem:[#allocation2 + $0x1a8] sm:$0xff]
  %v1499 = vld [vmem:[#allocation2 + $0x1b0] sm:$0xff]
  %v1500 = vld [vmem:[#allocation2 + $0x1b8] sm:$0xff]
  %v1501 = vld [vmem:[#allocation2 + $0x1c0] sm:$0xff]
  %v1502 = vld [vmem:[#allocation2 + $0x1c8] sm:$0xff]
  %v1503 = vld [vmem:[#allocation2 + $0x1d0] sm:$0xff]
  %v1504 = vld [vmem:[#allocation2 + $0x1d8] sm:$0xff]
  %v1505 = vld [vmem:[#allocation2 + $0x1e0] sm:$0xff]
  %v1506 = vld [vmem:[#allocation2 + $0x1e8] sm:$0xff]
  %v1507 = vld [vmem:[#allocation2 + $0x1f0] sm:$0xff]
  %v1508 = vld [vmem:[#allocation2 + $0x1f8] sm:$0xff]
  %1509 = vmatprep.subr.mxu0 %v1446
  %1510 = vmatpush1.msra.mxu0 %v1445
  %1511 = vmatprep.subr.mxu0 %v1450
  %1512 = vmatpush1.msra.mxu0 %v1449
  %1513 = vmatprep.subr.mxu0 %v1454
  %1514 = vmatpush1.msra.mxu0 %v1453
  %1515 = vmatprep.subr.mxu0 %v1458
  %1516 = vmatpush1.msra.mxu0 %v1457
  %1517 = vmatprep.subr.mxu0 %v1462
  %1518 = vmatpush1.msra.mxu0 %v1461
  %1519 = vmatprep.subr.mxu0 %v1466
  %1520 = vmatpush1.msra.mxu0 %v1465
  %1521 = vmatprep.subr.mxu0 %v1470
  %1522 = vmatpush1.msra.mxu0 %v1469
  %1523 = vmatprep.subr.mxu0 %v1474
  %1524 = vmatpush1.msra.mxu0 %v1473
  %1525 = vmatprep.subr.mxu0 %v1478
  %1526 = vmatpush1.msra.mxu0 %v1477
  %1527 = vmatprep.subr.mxu0 %v1482
  %1528 = vmatpush1.msra.mxu0 %v1481
  %1529 = vmatprep.subr.mxu0 %v1486
  %1530 = vmatpush1.msra.mxu0 %v1485
  %1531 = vmatprep.subr.mxu0 %v1490
  %1532 = vmatpush1.msra.mxu0 %v1489
  %1533 = vmatprep.subr.mxu0 %v1494
  %1534 = vmatpush1.msra.mxu0 %v1493
  %1535 = vmatprep.subr.mxu0 %v1498
  %1536 = vmatpush1.msra.mxu0 %v1497
  %1537 = vmatprep.subr.mxu0 %v1502
  %1538 = vmatpush1.msra.mxu0 %v1501
  %1539 = vmatprep.subr.mxu0 %v1506
  %1540 = vmatpush1.msra.mxu0 %v1505
  %1541 = vmatprep.subr.mxu0 0.0
  %1542 = vmatpush1.msra.mxu0 0.0
  %1543 = vmatprep.subr.mxu0 0.0
  %1544 = vmatpush1.msra.mxu0 0.0
  %1545 = vmatprep.subr.mxu0 0.0
  %1546 = vmatpush1.msra.mxu0 0.0
  %1547 = vmatprep.subr.mxu0 0.0
  %1548 = vmatpush1.msra.mxu0 0.0
  %1549 = vmatprep.subr.mxu0 0.0
  %1550 = vmatpush1.msra.mxu0 0.0
  %1551 = vmatprep.subr.mxu0 0.0
  %1552 = vmatpush1.msra.mxu0 0.0
  %1553 = vmatprep.subr.mxu0 0.0
  %1554 = vmatpush1.msra.mxu0 0.0
  %1555 = vmatprep.subr.mxu0 0.0
  %1556 = vmatpush1.msra.mxu0 0.0
  %1557 = vmatprep.subr.mxu0 0.0
  %1558 = vmatpush1.msra.mxu0 0.0
  %1559 = vmatprep.subr.mxu0 0.0
  %1560 = vmatpush1.msra.mxu0 0.0
  %1561 = vmatprep.subr.mxu0 0.0
  %1562 = vmatpush1.msra.mxu0 0.0
  %1563 = vmatprep.subr.mxu0 0.0
  %1564 = vmatpush1.msra.mxu0 0.0
  %1565 = vmatprep.subr.mxu0 0.0
  %1566 = vmatpush1.msra.mxu0 0.0
  %1567 = vmatprep.subr.mxu0 0.0
  %1568 = vmatpush1.msra.mxu0 0.0
  %1569 = vmatprep.subr.mxu0 0.0
  %1570 = vmatpush1.msra.mxu0 0.0
  %1571 = vmatprep.subr.mxu0 0.0
  %1572 = vmatpush1.msra.mxu0 0.0
  %1573 = vmatprep.mubr.f32.mxu0 0.0
  %1574 = vmatmul.mubr.f32.gmra.mrb[0].mxu0 %v1437
  %v1575 = vpop.f32.mrb[0].mxu0
  %v1576 = vadd.f32 0.0, %v1575
  %v1577 = vpop.f32.mrb[0].mxu0
  %v1578 = vadd.f32 0.0, %v1577
  %1579 = vdwg.mxu0
  %1580 = vmatprep.subr.mxu0 %v1448
  %1581 = vmatpush1.msra.mxu0 %v1447
  %1582 = vmatprep.subr.mxu0 %v1452
  %1583 = vmatpush1.msra.mxu0 %v1451
  %1584 = vmatprep.subr.mxu0 %v1456
  %1585 = vmatpush1.msra.mxu0 %v1455
  %1586 = vmatprep.subr.mxu0 %v1460
  %1587 = vmatpush1.msra.mxu0 %v1459
  %1588 = vmatprep.subr.mxu0 %v1464
  %1589 = vmatpush1.msra.mxu0 %v1463
  %1590 = vmatprep.subr.mxu0 %v1468
  %1591 = vmatpush1.msra.mxu0 %v1467
  %1592 = vmatprep.subr.mxu0 %v1472
  %1593 = vmatpush1.msra.mxu0 %v1471
  %1594 = vmatprep.subr.mxu0 %v1476
  %1595 = vmatpush1.msra.mxu0 %v1475
  %1596 = vmatprep.subr.mxu0 %v1480
  %1597 = vmatpush1.msra.mxu0 %v1479
  %1598 = vmatprep.subr.mxu0 %v1484
  %1599 = vmatpush1.msra.mxu0 %v1483
  %1600 = vmatprep.subr.mxu0 %v1488
  %1601 = vmatpush1.msra.mxu0 %v1487
  %1602 = vmatprep.subr.mxu0 %v1492
  %1603 = vmatpush1.msra.mxu0 %v1491
  %1604 = vmatprep.subr.mxu0 %v1496
  %1605 = vmatpush1.msra.mxu0 %v1495
  %1606 = vmatprep.subr.mxu0 %v1500
  %1607 = vmatpush1.msra.mxu0 %v1499
  %1608 = vmatprep.subr.mxu0 %v1504
  %1609 = vmatpush1.msra.mxu0 %v1503
  %1610 = vmatprep.subr.mxu0 %v1508
  %1611 = vmatpush1.msra.mxu0 %v1507
  %1612 = vmatprep.subr.mxu0 0.0
  %1613 = vmatpush1.msra.mxu0 0.0
  %1614 = vmatprep.subr.mxu0 0.0
  %1615 = vmatpush1.msra.mxu0 0.0
  %1616 = vmatprep.subr.mxu0 0.0
  %1617 = vmatpush1.msra.mxu0 0.0
  %1618 = vmatprep.subr.mxu0 0.0
  %1619 = vmatpush1.msra.mxu0 0.0
  %1620 = vmatprep.subr.mxu0 0.0
  %1621 = vmatpush1.msra.mxu0 0.0
  %1622 = vmatprep.subr.mxu0 0.0
  %1623 = vmatpush1.msra.mxu0 0.0
  %1624 = vmatprep.subr.mxu0 0.0
  %1625 = vmatpush1.msra.mxu0 0.0
  %1626 = vmatprep.subr.mxu0 0.0
  %1627 = vmatpush1.msra.mxu0 0.0
  %1628 = vmatprep.subr.mxu0 0.0
  %1629 = vmatpush1.msra.mxu0 0.0
  %1630 = vmatprep.subr.mxu0 0.0
  %1631 = vmatpush1.msra.mxu0 0.0
  %1632 = vmatprep.subr.mxu0 0.0
  %1633 = vmatpush1.msra.mxu0 0.0
  %1634 = vmatprep.subr.mxu0 0.0
  %1635 = vmatpush1.msra.mxu0 0.0
  %1636 = vmatprep.subr.mxu0 0.0
  %1637 = vmatpush1.msra.mxu0 0.0
  %1638 = vmatprep.subr.mxu0 0.0
  %1639 = vmatpush1.msra.mxu0 0.0
  %1640 = vmatprep.subr.mxu0 0.0
  %1641 = vmatpush1.msra.mxu0 0.0
  %1642 = vmatprep.subr.mxu0 0.0
  %1643 = vmatpush1.msra.mxu0 0.0
  %1644 = vmatprep.mubr.f32.mxu0 0.0
  %1645 = vmatmul.mubr.f32.gmra.mrb[0].mxu0 %v1437
  %v1646 = vpop.f32.mrb[0].mxu0
  %v1647 = vadd.f32 0.0, %v1646
  %v1648 = vpop.f32.mrb[0].mxu0
  %v1649 = vadd.f32 0.0, %v1648
  %1650 = vdwg.mxu0
  %v1651 = vadd.f32 %v1441, %v1576
  %v1652 = vadd.f32 %v1442, %v1578
  %v1653 = vadd.f32 %v1443, %v1647
  %v1654 = vadd.f32 %v1444, %v1649
  %v1655 = vadd.f32 %v1651, %v414
  %v1656 = vadd.f32 %v1652, %v418
  %v1657 = vadd.f32 %v1653, %v422
  %v1658 = vadd.f32 %v1654, %v426
  %v1659 = vxor.u32 %v1655, 2147483648
  %v1660 = vmul.f32 %v1659, 1.442695
  %v1661 = vpow.pop %v1660
  %v1662 = vadd.f32 %v1661, 1.0
  %v1663 = vrcp.pop %v1662
  %v1664 = vmul.f32 1.0, %v1663
  %v1665 = vxor.u32 %v1656, 2147483648
  %v1666 = vmul.f32 %v1665, 1.442695
  %v1667 = vpow.pop %v1666
  %v1668 = vadd.f32 %v1667, 1.0
  %v1669 = vrcp.pop %v1668
  %v1670 = vmul.f32 1.0, %v1669
  %v1671 = vtanh.pop %v1657
  %v1672 = vxor.u32 %v1658, 2147483648
  %v1673 = vmul.f32 %v1672, 1.442695
  %v1674 = vpow.pop %v1673
  %v1675 = vadd.f32 %v1674, 1.0
  %v1676 = vrcp.pop %v1675
  %v1677 = vmul.f32 1.0, %v1676
  %v1678 = vmul.f32 %v1670, %v1435
  %v1679 = vmul.f32 %v1664, %v1671
  %v1680 = vadd.f32 %v1678, %v1679
  %v1681 = vtanh.pop %v1680
  %v1682 = vmul.f32 %v1677, %v1681
  %s1683 = scalar_lea.vmem %s3, 40
  %1684 = vst [vmem:[%s1683] sm:$0xff] %v1682
  %s1685 = scalar_lea.vmem %s0, 192
  %v1686 = vld [vmem:[%s1685] sm:$0xff]
  %v1687 = vld [vmem:[%s1685 + $0x8] sm:$0xff]
  %v1688 = vld [vmem:[%s1685 + $0x10] sm:$0xff]
  %v1689 = vld [vmem:[%s1685 + $0x18] sm:$0xff]
  %v1690 = vld [vmem:[#allocation2] sm:$0xff]
  %v1691 = vld [vmem:[#allocation2 + $0x8] sm:$0xff]
  %v1692 = vld [vmem:[#allocation2 + $0x10] sm:$0xff]
  %v1693 = vld [vmem:[#allocation2 + $0x18] sm:$0xff]
  %v1694 = vld [vmem:[#allocation2 + $0x20] sm:$0xff]
  %v1695 = vld [vmem:[#allocation2 + $0x28] sm:$0xff]
  %v1696 = vld [vmem:[#allocation2 + $0x30] sm:$0xff]
  %v1697 = vld [vmem:[#allocation2 + $0x38] sm:$0xff]
  %v1698 = vld [vmem:[#allocation2 + $0x40] sm:$0xff]
  %v1699 = vld [vmem:[#allocation2 + $0x48] sm:$0xff]
  %v1700 = vld [vmem:[#allocation2 + $0x50] sm:$0xff]
  %v1701 = vld [vmem:[#allocation2 + $0x58] sm:$0xff]
  %v1702 = vld [vmem:[#allocation2 + $0x60] sm:$0xff]
  %v1703 = vld [vmem:[#allocation2 + $0x68] sm:$0xff]
  %v1704 = vld [vmem:[#allocation2 + $0x70] sm:$0xff]
  %v1705 = vld [vmem:[#allocation2 + $0x78] sm:$0xff]
  %v1706 = vld [vmem:[#allocation2 + $0x80] sm:$0xff]
  %v1707 = vld [vmem:[#allocation2 + $0x88] sm:$0xff]
  %v1708 = vld [vmem:[#allocation2 + $0x90] sm:$0xff]
  %v1709 = vld [vmem:[#allocation2 + $0x98] sm:$0xff]
  %v1710 = vld [vmem:[#allocation2 + $0xa0] sm:$0xff]
  %v1711 = vld [vmem:[#allocation2 + $0xa8] sm:$0xff]
  %v1712 = vld [vmem:[#allocation2 + $0xb0] sm:$0xff]
  %v1713 = vld [vmem:[#allocation2 + $0xb8] sm:$0xff]
  %v1714 = vld [vmem:[#allocation2 + $0xc0] sm:$0xff]
  %v1715 = vld [vmem:[#allocation2 + $0xc8] sm:$0xff]
  %v1716 = vld [vmem:[#allocation2 + $0xd0] sm:$0xff]
  %v1717 = vld [vmem:[#allocation2 + $0xd8] sm:$0xff]
  %v1718 = vld [vmem:[#allocation2 + $0xe0] sm:$0xff]
  %v1719 = vld [vmem:[#allocation2 + $0xe8] sm:$0xff]
  %v1720 = vld [vmem:[#allocation2 + $0xf0] sm:$0xff]
  %v1721 = vld [vmem:[#allocation2 + $0xf8] sm:$0xff]
  %v1722 = vld [vmem:[#allocation2 + $0x100] sm:$0xff]
  %v1723 = vld [vmem:[#allocation2 + $0x108] sm:$0xff]
  %v1724 = vld [vmem:[#allocation2 + $0x110] sm:$0xff]
  %v1725 = vld [vmem:[#allocation2 + $0x118] sm:$0xff]
  %v1726 = vld [vmem:[#allocation2 + $0x120] sm:$0xff]
  %v1727 = vld [vmem:[#allocation2 + $0x128] sm:$0xff]
  %v1728 = vld [vmem:[#allocation2 + $0x130] sm:$0xff]
  %v1729 = vld [vmem:[#allocation2 + $0x138] sm:$0xff]
  %v1730 = vld [vmem:[#allocation2 + $0x140] sm:$0xff]
  %v1731 = vld [vmem:[#allocation2 + $0x148] sm:$0xff]
  %v1732 = vld [vmem:[#allocation2 + $0x150] sm:$0xff]
  %v1733 = vld [vmem:[#allocation2 + $0x158] sm:$0xff]
  %v1734 = vld [vmem:[#allocation2 + $0x160] sm:$0xff]
  %v1735 = vld [vmem:[#allocation2 + $0x168] sm:$0xff]
  %v1736 = vld [vmem:[#allocation2 + $0x170] sm:$0xff]
  %v1737 = vld [vmem:[#allocation2 + $0x178] sm:$0xff]
  %v1738 = vld [vmem:[#allocation2 + $0x180] sm:$0xff]
  %v1739 = vld [vmem:[#allocation2 + $0x188] sm:$0xff]
  %v1740 = vld [vmem:[#allocation2 + $0x190] sm:$0xff]
  %v1741 = vld [vmem:[#allocation2 + $0x198] sm:$0xff]
  %v1742 = vld [vmem:[#allocation2 + $0x1a0] sm:$0xff]
  %v1743 = vld [vmem:[#allocation2 + $0x1a8] sm:$0xff]
  %v1744 = vld [vmem:[#allocation2 + $0x1b0] sm:$0xff]
  %v1745 = vld [vmem:[#allocation2 + $0x1b8] sm:$0xff]
  %v1746 = vld [vmem:[#allocation2 + $0x1c0] sm:$0xff]
  %v1747 = vld [vmem:[#allocation2 + $0x1c8] sm:$0xff]
  %v1748 = vld [vmem:[#allocation2 + $0x1d0] sm:$0xff]
  %v1749 = vld [vmem:[#allocation2 + $0x1d8] sm:$0xff]
  %v1750 = vld [vmem:[#allocation2 + $0x1e0] sm:$0xff]
  %v1751 = vld [vmem:[#allocation2 + $0x1e8] sm:$0xff]
  %v1752 = vld [vmem:[#allocation2 + $0x1f0] sm:$0xff]
  %v1753 = vld [vmem:[#allocation2 + $0x1f8] sm:$0xff]
  %1754 = vmatprep.subr.mxu0 %v1691
  %1755 = vmatpush1.msra.mxu0 %v1690
  %1756 = vmatprep.subr.mxu0 %v1695
  %1757 = vmatpush1.msra.mxu0 %v1694
  %1758 = vmatprep.subr.mxu0 %v1699
  %1759 = vmatpush1.msra.mxu0 %v1698
  %1760 = vmatprep.subr.mxu0 %v1703
  %1761 = vmatpush1.msra.mxu0 %v1702
  %1762 = vmatprep.subr.mxu0 %v1707
  %1763 = vmatpush1.msra.mxu0 %v1706
  %1764 = vmatprep.subr.mxu0 %v1711
  %1765 = vmatpush1.msra.mxu0 %v1710
  %1766 = vmatprep.subr.mxu0 %v1715
  %1767 = vmatpush1.msra.mxu0 %v1714
  %1768 = vmatprep.subr.mxu0 %v1719
  %1769 = vmatpush1.msra.mxu0 %v1718
  %1770 = vmatprep.subr.mxu0 %v1723
  %1771 = vmatpush1.msra.mxu0 %v1722
  %1772 = vmatprep.subr.mxu0 %v1727
  %1773 = vmatpush1.msra.mxu0 %v1726
  %1774 = vmatprep.subr.mxu0 %v1731
  %1775 = vmatpush1.msra.mxu0 %v1730
  %1776 = vmatprep.subr.mxu0 %v1735
  %1777 = vmatpush1.msra.mxu0 %v1734
  %1778 = vmatprep.subr.mxu0 %v1739
  %1779 = vmatpush1.msra.mxu0 %v1738
  %1780 = vmatprep.subr.mxu0 %v1743
  %1781 = vmatpush1.msra.mxu0 %v1742
  %1782 = vmatprep.subr.mxu0 %v1747
  %1783 = vmatpush1.msra.mxu0 %v1746
  %1784 = vmatprep.subr.mxu0 %v1751
  %1785 = vmatpush1.msra.mxu0 %v1750
  %1786 = vmatprep.subr.mxu0 0.0
  %1787 = vmatpush1.msra.mxu0 0.0
  %1788 = vmatprep.subr.mxu0 0.0
  %1789 = vmatpush1.msra.mxu0 0.0
  %1790 = vmatprep.subr.mxu0 0.0
  %1791 = vmatpush1.msra.mxu0 0.0
  %1792 = vmatprep.subr.mxu0 0.0
  %1793 = vmatpush1.msra.mxu0 0.0
  %1794 = vmatprep.subr.mxu0 0.0
  %1795 = vmatpush1.msra.mxu0 0.0
  %1796 = vmatprep.subr.mxu0 0.0
  %1797 = vmatpush1.msra.mxu0 0.0
  %1798 = vmatprep.subr.mxu0 0.0
  %1799 = vmatpush1.msra.mxu0 0.0
  %1800 = vmatprep.subr.mxu0 0.0
  %1801 = vmatpush1.msra.mxu0 0.0
  %1802 = vmatprep.subr.mxu0 0.0
  %1803 = vmatpush1.msra.mxu0 0.0
  %1804 = vmatprep.subr.mxu0 0.0
  %1805 = vmatpush1.msra.mxu0 0.0
  %1806 = vmatprep.subr.mxu0 0.0
  %1807 = vmatpush1.msra.mxu0 0.0
  %1808 = vmatprep.subr.mxu0 0.0
  %1809 = vmatpush1.msra.mxu0 0.0
  %1810 = vmatprep.subr.mxu0 0.0
  %1811 = vmatpush1.msra.mxu0 0.0
  %1812 = vmatprep.subr.mxu0 0.0
  %1813 = vmatpush1.msra.mxu0 0.0
  %1814 = vmatprep.subr.mxu0 0.0
  %1815 = vmatpush1.msra.mxu0 0.0
  %1816 = vmatprep.subr.mxu0 0.0
  %1817 = vmatpush1.msra.mxu0 0.0
  %1818 = vmatprep.mubr.f32.mxu0 0.0
  %1819 = vmatmul.mubr.f32.gmra.mrb[0].mxu0 %v1682
  %v1820 = vpop.f32.mrb[0].mxu0
  %v1821 = vadd.f32 0.0, %v1820
  %v1822 = vpop.f32.mrb[0].mxu0
  %v1823 = vadd.f32 0.0, %v1822
  %1824 = vdwg.mxu0
  %1825 = vmatprep.subr.mxu0 %v1693
  %1826 = vmatpush1.msra.mxu0 %v1692
  %1827 = vmatprep.subr.mxu0 %v1697
  %1828 = vmatpush1.msra.mxu0 %v1696
  %1829 = vmatprep.subr.mxu0 %v1701
  %1830 = vmatpush1.msra.mxu0 %v1700
  %1831 = vmatprep.subr.mxu0 %v1705
  %1832 = vmatpush1.msra.mxu0 %v1704
  %1833 = vmatprep.subr.mxu0 %v1709
  %1834 = vmatpush1.msra.mxu0 %v1708
  %1835 = vmatprep.subr.mxu0 %v1713
  %1836 = vmatpush1.msra.mxu0 %v1712
  %1837 = vmatprep.subr.mxu0 %v1717
  %1838 = vmatpush1.msra.mxu0 %v1716
  %1839 = vmatprep.subr.mxu0 %v1721
  %1840 = vmatpush1.msra.mxu0 %v1720
  %1841 = vmatprep.subr.mxu0 %v1725
  %1842 = vmatpush1.msra.mxu0 %v1724
  %1843 = vmatprep.subr.mxu0 %v1729
  %1844 = vmatpush1.msra.mxu0 %v1728
  %1845 = vmatprep.subr.mxu0 %v1733
  %1846 = vmatpush1.msra.mxu0 %v1732
  %1847 = vmatprep.subr.mxu0 %v1737
  %1848 = vmatpush1.msra.mxu0 %v1736
  %1849 = vmatprep.subr.mxu0 %v1741
  %1850 = vmatpush1.msra.mxu0 %v1740
  %1851 = vmatprep.subr.mxu0 %v1745
  %1852 = vmatpush1.msra.mxu0 %v1744
  %1853 = vmatprep.subr.mxu0 %v1749
  %1854 = vmatpush1.msra.mxu0 %v1748
  %1855 = vmatprep.subr.mxu0 %v1753
  %1856 = vmatpush1.msra.mxu0 %v1752
  %1857 = vmatprep.subr.mxu0 0.0
  %1858 = vmatpush1.msra.mxu0 0.0
  %1859 = vmatprep.subr.mxu0 0.0
  %1860 = vmatpush1.msra.mxu0 0.0
  %1861 = vmatprep.subr.mxu0 0.0
  %1862 = vmatpush1.msra.mxu0 0.0
  %1863 = vmatprep.subr.mxu0 0.0
  %1864 = vmatpush1.msra.mxu0 0.0
  %1865 = vmatprep.subr.mxu0 0.0
  %1866 = vmatpush1.msra.mxu0 0.0
  %1867 = vmatprep.subr.mxu0 0.0
  %1868 = vmatpush1.msra.mxu0 0.0
  %1869 = vmatprep.subr.mxu0 0.0
  %1870 = vmatpush1.msra.mxu0 0.0
  %1871 = vmatprep.subr.mxu0 0.0
  %1872 = vmatpush1.msra.mxu0 0.0
  %1873 = vmatprep.subr.mxu0 0.0
  %1874 = vmatpush1.msra.mxu0 0.0
  %1875 = vmatprep.subr.mxu0 0.0
  %1876 = vmatpush1.msra.mxu0 0.0
  %1877 = vmatprep.subr.mxu0 0.0
  %1878 = vmatpush1.msra.mxu0 0.0
  %1879 = vmatprep.subr.mxu0 0.0
  %1880 = vmatpush1.msra.mxu0 0.0
  %1881 = vmatprep.subr.mxu0 0.0
  %1882 = vmatpush1.msra.mxu0 0.0
  %1883 = vmatprep.subr.mxu0 0.0
  %1884 = vmatpush1.msra.mxu0 0.0
  %1885 = vmatprep.subr.mxu0 0.0
  %1886 = vmatpush1.msra.mxu0 0.0
  %1887 = vmatprep.subr.mxu0 0.0
  %1888 = vmatpush1.msra.mxu0 0.0
  %1889 = vmatprep.mubr.f32.mxu0 0.0
  %1890 = vmatmul.mubr.f32.gmra.mrb[0].mxu0 %v1682
  %v1891 = vpop.f32.mrb[0].mxu0
  %v1892 = vadd.f32 0.0, %v1891
  %v1893 = vpop.f32.mrb[0].mxu0
  %v1894 = vadd.f32 0.0, %v1893
  %1895 = vdwg.mxu0
  %v1896 = vadd.f32 %v1686, %v1821
  %v1897 = vadd.f32 %v1687, %v1823
  %v1898 = vadd.f32 %v1688, %v1892
  %v1899 = vadd.f32 %v1689, %v1894
  %v1900 = vadd.f32 %v1896, %v414
  %v1901 = vadd.f32 %v1897, %v418
  %v1902 = vadd.f32 %v1898, %v422
  %v1903 = vadd.f32 %v1899, %v426
  %v1904 = vxor.u32 %v1900, 2147483648
  %v1905 = vmul.f32 %v1904, 1.442695
  %v1906 = vpow.pop %v1905
  %v1907 = vadd.f32 %v1906, 1.0
  %v1908 = vrcp.pop %v1907
  %v1909 = vmul.f32 1.0, %v1908
  %v1910 = vxor.u32 %v1901, 2147483648
  %v1911 = vmul.f32 %v1910, 1.442695
  %v1912 = vpow.pop %v1911
  %v1913 = vadd.f32 %v1912, 1.0
  %v1914 = vrcp.pop %v1913
  %v1915 = vmul.f32 1.0, %v1914
  %v1916 = vtanh.pop %v1902
  %v1917 = vxor.u32 %v1903, 2147483648
  %v1918 = vmul.f32 %v1917, 1.442695
  %v1919 = vpow.pop %v1918
  %v1920 = vadd.f32 %v1919, 1.0
  %v1921 = vrcp.pop %v1920
  %v1922 = vmul.f32 1.0, %v1921
  %v1923 = vmul.f32 %v1915, %v1680
  %v1924 = vmul.f32 %v1909, %v1916
  %v1925 = vadd.f32 %v1923, %v1924
  %v1926 = vtanh.pop %v1925
  %v1927 = vmul.f32 %v1922, %v1926
  %s1928 = scalar_lea.vmem %s3, 48
  %1929 = vst [vmem:[%s1928] sm:$0xff] %v1927
  %s1930 = scalar_lea.vmem %s0, 224
  %v1931 = vld [vmem:[%s1930] sm:$0xff]
  %v1932 = vld [vmem:[%s1930 + $0x8] sm:$0xff]
  %v1933 = vld [vmem:[%s1930 + $0x10] sm:$0xff]
  %v1934 = vld [vmem:[%s1930 + $0x18] sm:$0xff]
  %v1935 = vld [vmem:[#allocation2] sm:$0xff]
  %v1936 = vld [vmem:[#allocation2 + $0x8] sm:$0xff]
  %v1937 = vld [vmem:[#allocation2 + $0x10] sm:$0xff]
  %v1938 = vld [vmem:[#allocation2 + $0x18] sm:$0xff]
  %v1939 = vld [vmem:[#allocation2 + $0x20] sm:$0xff]
  %v1940 = vld [vmem:[#allocation2 + $0x28] sm:$0xff]
  %v1941 = vld [vmem:[#allocation2 + $0x30] sm:$0xff]
  %v1942 = vld [vmem:[#allocation2 + $0x38] sm:$0xff]
  %v1943 = vld [vmem:[#allocation2 + $0x40] sm:$0xff]
  %v1944 = vld [vmem:[#allocation2 + $0x48] sm:$0xff]
  %v1945 = vld [vmem:[#allocation2 + $0x50] sm:$0xff]
  %v1946 = vld [vmem:[#allocation2 + $0x58] sm:$0xff]
  %v1947 = vld [vmem:[#allocation2 + $0x60] sm:$0xff]
  %v1948 = vld [vmem:[#allocation2 + $0x68] sm:$0xff]
  %v1949 = vld [vmem:[#allocation2 + $0x70] sm:$0xff]
  %v1950 = vld [vmem:[#allocation2 + $0x78] sm:$0xff]
  %v1951 = vld [vmem:[#allocation2 + $0x80] sm:$0xff]
  %v1952 = vld [vmem:[#allocation2 + $0x88] sm:$0xff]
  %v1953 = vld [vmem:[#allocation2 + $0x90] sm:$0xff]
  %v1954 = vld [vmem:[#allocation2 + $0x98] sm:$0xff]
  %v1955 = vld [vmem:[#allocation2 + $0xa0] sm:$0xff]
  %v1956 = vld [vmem:[#allocation2 + $0xa8] sm:$0xff]
  %v1957 = vld [vmem:[#allocation2 + $0xb0] sm:$0xff]
  %v1958 = vld [vmem:[#allocation2 + $0xb8] sm:$0xff]
  %v1959 = vld [vmem:[#allocation2 + $0xc0] sm:$0xff]
  %v1960 = vld [vmem:[#allocation2 + $0xc8] sm:$0xff]
  %v1961 = vld [vmem:[#allocation2 + $0xd0] sm:$0xff]
  %v1962 = vld [vmem:[#allocation2 + $0xd8] sm:$0xff]
  %v1963 = vld [vmem:[#allocation2 + $0xe0] sm:$0xff]
  %v1964 = vld [vmem:[#allocation2 + $0xe8] sm:$0xff]
  %v1965 = vld [vmem:[#allocation2 + $0xf0] sm:$0xff]
  %v1966 = vld [vmem:[#allocation2 + $0xf8] sm:$0xff]
  %v1967 = vld [vmem:[#allocation2 + $0x100] sm:$0xff]
  %v1968 = vld [vmem:[#allocation2 + $0x108] sm:$0xff]
  %v1969 = vld [vmem:[#allocation2 + $0x110] sm:$0xff]
  %v1970 = vld [vmem:[#allocation2 + $0x118] sm:$0xff]
  %v1971 = vld [vmem:[#allocation2 + $0x120] sm:$0xff]
  %v1972 = vld [vmem:[#allocation2 + $0x128] sm:$0xff]
  %v1973 = vld [vmem:[#allocation2 + $0x130] sm:$0xff]
  %v1974 = vld [vmem:[#allocation2 + $0x138] sm:$0xff]
  %v1975 = vld [vmem:[#allocation2 + $0x140] sm:$0xff]
  %v1976 = vld [vmem:[#allocation2 + $0x148] sm:$0xff]
  %v1977 = vld [vmem:[#allocation2 + $0x150] sm:$0xff]
  %v1978 = vld [vmem:[#allocation2 + $0x158] sm:$0xff]
  %v1979 = vld [vmem:[#allocation2 + $0x160] sm:$0xff]
  %v1980 = vld [vmem:[#allocation2 + $0x168] sm:$0xff]
  %v1981 = vld [vmem:[#allocation2 + $0x170] sm:$0xff]
  %v1982 = vld [vmem:[#allocation2 + $0x178] sm:$0xff]
  %v1983 = vld [vmem:[#allocation2 + $0x180] sm:$0xff]
  %v1984 = vld [vmem:[#allocation2 + $0x188] sm:$0xff]
  %v1985 = vld [vmem:[#allocation2 + $0x190] sm:$0xff]
  %v1986 = vld [vmem:[#allocation2 + $0x198] sm:$0xff]
  %v1987 = vld [vmem:[#allocation2 + $0x1a0] sm:$0xff]
  %v1988 = vld [vmem:[#allocation2 + $0x1a8] sm:$0xff]
  %v1989 = vld [vmem:[#allocation2 + $0x1b0] sm:$0xff]
  %v1990 = vld [vmem:[#allocation2 + $0x1b8] sm:$0xff]
  %v1991 = vld [vmem:[#allocation2 + $0x1c0] sm:$0xff]
  %v1992 = vld [vmem:[#allocation2 + $0x1c8] sm:$0xff]
  %v1993 = vld [vmem:[#allocation2 + $0x1d0] sm:$0xff]
  %v1994 = vld [vmem:[#allocation2 + $0x1d8] sm:$0xff]
  %v1995 = vld [vmem:[#allocation2 + $0x1e0] sm:$0xff]
  %v1996 = vld [vmem:[#allocation2 + $0x1e8] sm:$0xff]
  %v1997 = vld [vmem:[#allocation2 + $0x1f0] sm:$0xff]
  %v1998 = vld [vmem:[#allocation2 + $0x1f8] sm:$0xff]
  %1999 = vmatprep.subr.mxu0 %v1936
  %2000 = vmatpush1.msra.mxu0 %v1935
  %2001 = vmatprep.subr.mxu0 %v1940
  %2002 = vmatpush1.msra.mxu0 %v1939
  %2003 = vmatprep.subr.mxu0 %v1944
  %2004 = vmatpush1.msra.mxu0 %v1943
  %2005 = vmatprep.subr.mxu0 %v1948
  %2006 = vmatpush1.msra.mxu0 %v1947
  %2007 = vmatprep.subr.mxu0 %v1952
  %2008 = vmatpush1.msra.mxu0 %v1951
  %2009 = vmatprep.subr.mxu0 %v1956
  %2010 = vmatpush1.msra.mxu0 %v1955
  %2011 = vmatprep.subr.mxu0 %v1960
  %2012 = vmatpush1.msra.mxu0 %v1959
  %2013 = vmatprep.subr.mxu0 %v1964
  %2014 = vmatpush1.msra.mxu0 %v1963
  %2015 = vmatprep.subr.mxu0 %v1968
  %2016 = vmatpush1.msra.mxu0 %v1967
  %2017 = vmatprep.subr.mxu0 %v1972
  %2018 = vmatpush1.msra.mxu0 %v1971
  %2019 = vmatprep.subr.mxu0 %v1976
  %2020 = vmatpush1.msra.mxu0 %v1975
  %2021 = vmatprep.subr.mxu0 %v1980
  %2022 = vmatpush1.msra.mxu0 %v1979
  %2023 = vmatprep.subr.mxu0 %v1984
  %2024 = vmatpush1.msra.mxu0 %v1983
  %2025 = vmatprep.subr.mxu0 %v1988
  %2026 = vmatpush1.msra.mxu0 %v1987
  %2027 = vmatprep.subr.mxu0 %v1992
  %2028 = vmatpush1.msra.mxu0 %v1991
  %2029 = vmatprep.subr.mxu0 %v1996
  %2030 = vmatpush1.msra.mxu0 %v1995
  %2031 = vmatprep.subr.mxu0 0.0
  %2032 = vmatpush1.msra.mxu0 0.0
  %2033 = vmatprep.subr.mxu0 0.0
  %2034 = vmatpush1.msra.mxu0 0.0
  %2035 = vmatprep.subr.mxu0 0.0
  %2036 = vmatpush1.msra.mxu0 0.0
  %2037 = vmatprep.subr.mxu0 0.0
  %2038 = vmatpush1.msra.mxu0 0.0
  %2039 = vmatprep.subr.mxu0 0.0
  %2040 = vmatpush1.msra.mxu0 0.0
  %2041 = vmatprep.subr.mxu0 0.0
  %2042 = vmatpush1.msra.mxu0 0.0
  %2043 = vmatprep.subr.mxu0 0.0
  %2044 = vmatpush1.msra.mxu0 0.0
  %2045 = vmatprep.subr.mxu0 0.0
  %2046 = vmatpush1.msra.mxu0 0.0
  %2047 = vmatprep.subr.mxu0 0.0
  %2048 = vmatpush1.msra.mxu0 0.0
  %2049 = vmatprep.subr.mxu0 0.0
  %2050 = vmatpush1.msra.mxu0 0.0
  %2051 = vmatprep.subr.mxu0 0.0
  %2052 = vmatpush1.msra.mxu0 0.0
  %2053 = vmatprep.subr.mxu0 0.0
  %2054 = vmatpush1.msra.mxu0 0.0
  %2055 = vmatprep.subr.mxu0 0.0
  %2056 = vmatpush1.msra.mxu0 0.0
  %2057 = vmatprep.subr.mxu0 0.0
  %2058 = vmatpush1.msra.mxu0 0.0
  %2059 = vmatprep.subr.mxu0 0.0
  %2060 = vmatpush1.msra.mxu0 0.0
  %2061 = vmatprep.subr.mxu0 0.0
  %2062 = vmatpush1.msra.mxu0 0.0
  %2063 = vmatprep.mubr.f32.mxu0 0.0
  %2064 = vmatmul.mubr.f32.gmra.mrb[0].mxu0 %v1927
  %v2065 = vpop.f32.mrb[0].mxu0
  %v2066 = vadd.f32 0.0, %v2065
  %v2067 = vpop.f32.mrb[0].mxu0
  %v2068 = vadd.f32 0.0, %v2067
  %2069 = vdwg.mxu0
  %2070 = vmatprep.subr.mxu0 %v1938
  %2071 = vmatpush1.msra.mxu0 %v1937
  %2072 = vmatprep.subr.mxu0 %v1942
  %2073 = vmatpush1.msra.mxu0 %v1941
  %2074 = vmatprep.subr.mxu0 %v1946
  %2075 = vmatpush1.msra.mxu0 %v1945
  %2076 = vmatprep.subr.mxu0 %v1950
  %2077 = vmatpush1.msra.mxu0 %v1949
  %2078 = vmatprep.subr.mxu0 %v1954
  %2079 = vmatpush1.msra.mxu0 %v1953
  %2080 = vmatprep.subr.mxu0 %v1958
  %2081 = vmatpush1.msra.mxu0 %v1957
  %2082 = vmatprep.subr.mxu0 %v1962
  %2083 = vmatpush1.msra.mxu0 %v1961
  %2084 = vmatprep.subr.mxu0 %v1966
  %2085 = vmatpush1.msra.mxu0 %v1965
  %2086 = vmatprep.subr.mxu0 %v1970
  %2087 = vmatpush1.msra.mxu0 %v1969
  %2088 = vmatprep.subr.mxu0 %v1974
  %2089 = vmatpush1.msra.mxu0 %v1973
  %2090 = vmatprep.subr.mxu0 %v1978
  %2091 = vmatpush1.msra.mxu0 %v1977
  %2092 = vmatprep.subr.mxu0 %v1982
  %2093 = vmatpush1.msra.mxu0 %v1981
  %2094 = vmatprep.subr.mxu0 %v1986
  %2095 = vmatpush1.msra.mxu0 %v1985
  %2096 = vmatprep.subr.mxu0 %v1990
  %2097 = vmatpush1.msra.mxu0 %v1989
  %2098 = vmatprep.subr.mxu0 %v1994
  %2099 = vmatpush1.msra.mxu0 %v1993
  %2100 = vmatprep.subr.mxu0 %v1998
  %2101 = vmatpush1.msra.mxu0 %v1997
  %2102 = vmatprep.subr.mxu0 0.0
  %2103 = vmatpush1.msra.mxu0 0.0
  %2104 = vmatprep.subr.mxu0 0.0
  %2105 = vmatpush1.msra.mxu0 0.0
  %2106 = vmatprep.subr.mxu0 0.0
  %2107 = vmatpush1.msra.mxu0 0.0
  %2108 = vmatprep.subr.mxu0 0.0
  %2109 = vmatpush1.msra.mxu0 0.0
  %2110 = vmatprep.subr.mxu0 0.0
  %2111 = vmatpush1.msra.mxu0 0.0
  %2112 = vmatprep.subr.mxu0 0.0
  %2113 = vmatpush1.msra.mxu0 0.0
  %2114 = vmatprep.subr.mxu0 0.0
  %2115 = vmatpush1.msra.mxu0 0.0
  %2116 = vmatprep.subr.mxu0 0.0
  %2117 = vmatpush1.msra.mxu0 0.0
  %2118 = vmatprep.subr.mxu0 0.0
  %2119 = vmatpush1.msra.mxu0 0.0
  %2120 = vmatprep.subr.mxu0 0.0
  %2121 = vmatpush1.msra.mxu0 0.0
  %2122 = vmatprep.subr.mxu0 0.0
  %2123 = vmatpush1.msra.mxu0 0.0
  %2124 = vmatprep.subr.mxu0 0.0
  %2125 = vmatpush1.msra.mxu0 0.0
  %2126 = vmatprep.subr.mxu0 0.0
  %2127 = vmatpush1.msra.mxu0 0.0
  %2128 = vmatprep.subr.mxu0 0.0
  %2129 = vmatpush1.msra.mxu0 0.0
  %2130 = vmatprep.subr.mxu0 0.0
  %2131 = vmatpush1.msra.mxu0 0.0
  %2132 = vmatprep.subr.mxu0 0.0
  %2133 = vmatpush1.msra.mxu0 0.0
  %2134 = vmatprep.mubr.f32.mxu0 0.0
  %2135 = vmatmul.mubr.f32.gmra.mrb[0].mxu0 %v1927
  %v2136 = vpop.f32.mrb[0].mxu0
  %v2137 = vadd.f32 0.0, %v2136
  %v2138 = vpop.f32.mrb[0].mxu0
  %v2139 = vadd.f32 0.0, %v2138
  %2140 = vdwg.mxu0
  %v2141 = vadd.f32 %v1931, %v2066
  %v2142 = vadd.f32 %v1932, %v2068
  %v2143 = vadd.f32 %v1933, %v2137
  %v2144 = vadd.f32 %v1934, %v2139
  %v2145 = vadd.f32 %v2141, %v414
  %v2146 = vadd.f32 %v2142, %v418
  %v2147 = vadd.f32 %v2143, %v422
  %v2148 = vadd.f32 %v2144, %v426
  %v2149 = vxor.u32 %v2145, 2147483648
  %v2150 = vmul.f32 %v2149, 1.442695
  %v2151 = vpow.pop %v2150
  %v2152 = vadd.f32 %v2151, 1.0
  %v2153 = vrcp.pop %v2152
  %v2154 = vmul.f32 1.0, %v2153
  %v2155 = vxor.u32 %v2146, 2147483648
  %v2156 = vmul.f32 %v2155, 1.442695
  %v2157 = vpow.pop %v2156
  %v2158 = vadd.f32 %v2157, 1.0
  %v2159 = vrcp.pop %v2158
  %v2160 = vmul.f32 1.0, %v2159
  %v2161 = vtanh.pop %v2147
  %v2162 = vxor.u32 %v2148, 2147483648
  %v2163 = vmul.f32 %v2162, 1.442695
  %v2164 = vpow.pop %v2163
  %v2165 = vadd.f32 %v2164, 1.0
  %v2166 = vrcp.pop %v2165
  %v2167 = vmul.f32 1.0, %v2166
  %v2168 = vmul.f32 %v2160, %v1925
  %v2169 = vmul.f32 %v2154, %v2161
  %v2170 = vadd.f32 %v2168, %v2169
  %v2171 = vtanh.pop %v2170
  %v2172 = vmul.f32 %v2167, %v2171
  %s2173 = scalar_lea.vmem %s3, 56
  %2174 = vst [vmem:[%s2173] sm:$0xff] %v2172
  %2175 = vst [vmem:[%s4] sm:$0xff] %v2172
  %2176 = vst [vmem:[%s5] sm:$0xff] %v2170
  // Predicated region
  $region48: #{my_rnn_base_forward.3} parent=0 // pred_check
    _
  $region49: #{my_rnn_base_forward.3} parent=0 // pred_check_branch
    %2178 = sbr.rel (0) target = $region51
  $region50: #{my_rnn_base_forward.3} parent=0 // pred_region
    _
  $region51: #{my_rnn_base_forward.3} parent=0 // pred_fallthru
    _
  // Predicated region
  $region52: #{my_rnn_base_forward.3} parent=0 // pred_check
    _
  $region53: #{my_rnn_base_forward.3} parent=0 // pred_check_branch
    %2180 = sbr.rel (0) target = $region55
  $region54: #{my_rnn_base_forward.3} parent=0 // pred_region
    _
  $region55: #{my_rnn_base_forward.3} parent=0 // pred_fallthru
    _
  // Predicated region
  $region56: #{my_rnn_base_forward.3} parent=0 // pred_check
    _
  $region57: #{my_rnn_base_forward.3} parent=0 // pred_check_branch
    %2182 = sbr.rel (0) target = $region59
  $region58: #{my_rnn_base_forward.3} parent=0 // pred_region
    _
  $region59: #{my_rnn_base_forward.3} parent=0 // pred_fallthru
    _
  // Predicated region
  $region60: #{my_rnn_base_forward.3} parent=0 // pred_check
    _
  $region61: #{my_rnn_base_forward.3} parent=0 // pred_check_branch
    %2184 = sbr.rel (0) target = $region63
  $region62: #{my_rnn_base_forward.3} parent=0 // pred_region
    _
  $region63: #{my_rnn_base_forward.3} parent=0 // pred_fallthru
    _
  // Predicated region
  $region64: #{my_rnn_base_forward.3} parent=0 // pred_check
    _
  $region65: #{my_rnn_base_forward.3} parent=0 // pred_check_branch
    %2186 = sbr.rel (0) target = $region67
  $region66: #{my_rnn_base_forward.3} parent=0 // pred_region
    _
  $region67: #{my_rnn_base_forward.3} parent=0 // pred_fallthru
    _
  // Predicated region
  $region68: #{my_rnn_base_forward.3} parent=0 // pred_check
    _
  $region69: #{my_rnn_base_forward.3} parent=0 // pred_check_branch
    %2188 = sbr.rel (0) target = $region71
  $region70: #{my_rnn_base_forward.3} parent=0 // pred_region
    _
  $region71: #{my_rnn_base_forward.3} parent=0 // pred_fallthru
    _
  %2189 = vsyncmov [#allocation3]
  %s2190 = vpop.sfrf %2189
  %p2191 = scmp.eq.s32.totalorder %s2190, 0
  %p2192 = pneg %p2191
  %2194 = shalt.err (%p2192)

</llo_original>
